<compile_context>
chip_gen: v6e
topology: v6e:2x2x1
jax: 0.10.0
libtpu: 0.0.40
codegen_flags: <defaults>
</compile_context>

<pallas_src>
import jax
import jax.numpy as jnp
import numpy as np
from jax import lax
from jax.experimental import pallas as pl
from jax.experimental.pallas import tpu as pltpu


def _make_kernel(H, TH, W, Cp):
    """One (batch, row-band) grid step; static shapes closed over.

    Input band refs (f32, channel-padded to Cp, columns padded 8 left / 8 right):
      a_ref : (TH, W+16, Cp)   image rows [t*TH-2, t*TH+TH-2)
      b_ref : (4,  W+16, Cp)   image rows [t*TH+TH-2, t*TH+TH+2)
    Together they form the 2-row-halo'd band of output rows [t*TH, (t+1)*TH).
    """
    Wm = W + 8  # conv1 / mid column extent: image columns [-1, W+7)

    def kernel(a_ref, b_ref, w1_ref, b1_ref, w2_ref, b2_ref, out_ref):
        t = pl.program_id(1)

        a = a_ref[...]                                    # f32 (also identity source)
        b = b_ref[...]

        # Single bf16 cast of the halo'd band BEFORE any im2col slicing.
        xb = jnp.concatenate([a.astype(jnp.bfloat16),
                              b.astype(jnp.bfloat16)], axis=0)    # (TH+4, W+16, Cp)

        # ---- conv1: dx-stack (K = 3*Cp) + 3 accumulating MXU dots over dy ----
        # xs1[j, m, kx*Cp:(kx+1)*Cp] = xb[j, m + 6 + kx]  (image column (m-1) - 1 + kx)
        xs1 = jnp.concatenate([xb[:, 6:6 + Wm, :],
                               xb[:, 7:7 + Wm, :],
                               xb[:, 8:8 + Wm, :]], axis=-1)      # (TH+4, Wm, 3*Cp) bf16

        m_rows = (TH + 2) * Wm
        acc1 = jnp.dot(xs1[0:TH + 2].reshape(m_rows, 3 * Cp), w1_ref[0],
                       preferred_element_type=jnp.float32)
        acc1 += jnp.dot(xs1[1:TH + 3].reshape(m_rows, 3 * Cp), w1_ref[1],
                        preferred_element_type=jnp.float32)
        acc1 += jnp.dot(xs1[2:TH + 4].reshape(m_rows, 3 * Cp), w1_ref[2],
                        preferred_element_type=jnp.float32)
        acc1 = acc1.reshape(TH + 2, Wm, Cp)

        # Bias + ReLU + zeroing of out-of-image rows/cols (= conv2's zero padding),
        # fused into one select; result is the bf16 conv2 operand.
        row = lax.broadcasted_iota(jnp.int32, (TH + 2, Wm, 1), 0) + (t * TH - 1)
        col = lax.broadcasted_iota(jnp.int32, (TH + 2, Wm, 1), 1) - 1
        ok = (row >= 0) & (row < H) & (col >= 0) & (col < W)
        mid = jnp.where(ok, jnp.maximum(acc1 + b1_ref[...], 0.0),
                        0.0).astype(jnp.bfloat16)                 # (TH+2, Wm, Cp)

        # ---- conv2: dx-stack + 3 accumulating MXU dots over dy ----
        xs2 = jnp.concatenate([mid[:, 0:W, :],
                               mid[:, 1:1 + W, :],
                               mid[:, 2:2 + W, :]], axis=-1)      # (TH+2, W, 3*Cp) bf16

        o_rows = TH * W
        acc2 = jnp.dot(xs2[0:TH].reshape(o_rows, 3 * Cp), w2_ref[0],
                       preferred_element_type=jnp.float32)
        acc2 += jnp.dot(xs2[1:TH + 1].reshape(o_rows, 3 * Cp), w2_ref[1],
                        preferred_element_type=jnp.float32)
        acc2 += jnp.dot(xs2[2:TH + 2].reshape(o_rows, 3 * Cp), w2_ref[2],
                        preferred_element_type=jnp.float32)
        acc2 = (acc2 + b2_ref[...]).reshape(TH, W, Cp)

        # ---- residual add: identity exact f32, sublane-aligned (column offset 8) ----
        out_ref[0:TH - 2] = acc2[0:TH - 2] + a[2:TH, 8:8 + W, :]
        out_ref[TH - 2:TH] = acc2[TH - 2:TH] + b[0:2, 8:8 + W, :]

    return kernel


def _vmem_config():
    """(band-height target, vmem_limit_bytes) for this TPU generation."""
    try:
        cap = pltpu.get_tpu_info().vmem_capacity_bytes
    except Exception:
        cap = 64 * 1024 * 1024
    if cap >= 100 * 1024 * 1024:          # v4/v5e/v6e class: 128 MiB physical VMEM
        return 64, 96 * 1024 * 1024
    return 32, 48 * 1024 * 1024           # v7x class: 64 MiB physical VMEM


def _pick_band(H, target):
    for th in range(min(H, target), 3, -1):
        if H % th == 0 and th % 4 == 0:
            return th
    raise ValueError(f"H={H}: pass band_h explicitly (multiple of 4 dividing H)")


def residual_block_nobn(x_nchw, w1, b1, w2, b2, band_h=None):
    """Forward of ResidualBlock_noBN.

    x_nchw: (N, C, H, W) f32;  w*: (C, C, 3, 3) PyTorch OIHW;  b*: (C,).
    """
    N, C, H, W = x_nchw.shape
    assert W % 8 == 0, "W must be a multiple of 8 (TPU sublane width)"

    Cp = ((C + 127) // 128) * 128          # lane-dense channel padding
    target_band, vmem_limit = _vmem_config()
    TH = band_h if band_h is not None else _pick_band(H, target_band)
    assert H % TH == 0 and TH % 4 == 0 and TH >= 4
    nb = H // TH
    Wp = W + 16

    # Layout prep (NCHW -> padded NHWC, channel pad, 2-row / 8-column halo pad).
    # For a chain of residual blocks this conversion should be hoisted out and the
    # padded-NHWC activation kept between blocks; it is per-call here only so the
    # wrapper is drop-in for a single module.
    x_nhwc = jnp.transpose(x_nchw, (0, 2, 3, 1)).astype(jnp.float32)
    xpad = jnp.pad(x_nhwc, ((0, 0), (2, 2), (8, 8), (0, Cp - C)))   # (N, H+4, W+16, Cp)

    def prep_w(w):
        # torch (Cout, Cin, kh, kw) -> 3 dy-blocks of dx-stacked (3*Cp, Cp), bf16.
        wk = jnp.transpose(w, (2, 3, 1, 0)).astype(jnp.float32)     # (kh, kw, Cin, Cout)
        wk = jnp.pad(wk, ((0, 0), (0, 0), (0, Cp - C), (0, Cp - C)))
        return wk.reshape(3, 3 * Cp, Cp).astype(jnp.bfloat16)

    def prep_b(bias):
        return jnp.pad(bias.astype(jnp.float32), (0, Cp - C)).reshape(1, Cp)

    w1k, w2k = prep_w(w1), prep_w(w2)
    b1k, b2k = prep_b(b1), prep_b(b2)

    kernel = _make_kernel(H, TH, W, Cp)

    out = pl.pallas_call(
        kernel,
        out_shape=jax.ShapeDtypeStruct((N, H, W, Cp), jnp.float32),
        grid_spec=pltpu.PrefetchScalarGridSpec(
            num_scalar_prefetch=0,
            grid=(N, nb),
            in_specs=[
                # core TH rows of the halo'd band: padded rows [t*TH, (t+1)*TH)
                pl.BlockSpec((None, TH, Wp, Cp), lambda n, t: (n, t, 0, 0)),
                # bottom 4 halo rows: padded rows [(t+1)*TH, (t+1)*TH + 4)
                pl.BlockSpec((None, 4, Wp, Cp),
                             lambda n, t: (n, (t + 1) * (TH // 4), 0, 0)),
                pl.BlockSpec((3, 3 * Cp, Cp), lambda n, t: (0, 0, 0)),
                pl.BlockSpec((1, Cp), lambda n, t: (0, 0)),
                pl.BlockSpec((3, 3 * Cp, Cp), lambda n, t: (0, 0, 0)),
                pl.BlockSpec((1, Cp), lambda n, t: (0, 0)),
            ],
            out_specs=pl.BlockSpec((None, TH, W, Cp), lambda n, t: (n, t, 0, 0)),
        ),
        compiler_params=pltpu.CompilerParams(
            dimension_semantics=("parallel", "parallel"),
            vmem_limit_bytes=vmem_limit,
        ),
    )(xpad, xpad, w1k, b1k, w2k, b2k)

    out_nhwc = out[..., :C]
    return jnp.transpose(out_nhwc, (0, 3, 1, 2))


def _reference(x, w1, b1, w2, b2):
    """Pure-JAX f32 reference mirroring the PyTorch forward (NCHW)."""
    dn = ("NCHW", "OIHW", "NCHW")
    c1 = lax.conv_general_dilated(x, w1, (1, 1), ((1, 1), (1, 1)),
                                  dimension_numbers=dn)
    c1 = jnp.maximum(c1 + b1.reshape(1, -1, 1, 1), 0.0)
    c2 = lax.conv_general_dilated(c1, w2, (1, 1), ((1, 1), (1, 1)),
                                  dimension_numbers=dn)
    c2 = c2 + b2.reshape(1, -1, 1, 1)
    return x + c2


if __name__ == "__main__":
    # Small deterministic config: nf=4 channels, batch=2, 16x16 spatial, 4-row bands
    # (nb=4 exercises first / interior / last band paths).
    N, nf, H, W = 2, 4, 16, 16
    key = jax.random.PRNGKey(0)
    kx, k1, k2, k3, k4 = jax.random.split(key, 5)

    x = jax.random.normal(kx, (N, nf, H, W), dtype=jnp.float32)

    # "kaiming-normal * 0.1" style init (as in initialize_weights); small random
    # biases so the bias path is actually exercised.
    fan_in = nf * 3 * 3
    std = float(np.sqrt(2.0 / fan_in))
    w1 = jax.random.normal(k1, (nf, nf, 3, 3), dtype=jnp.float32) * std * 0.1
    w2 = jax.random.normal(k2, (nf, nf, 3, 3), dtype=jnp.float32) * std * 0.1
    b1 = jax.random.normal(k3, (nf,), dtype=jnp.float32) * 0.1
    b2 = jax.random.normal(k4, (nf,), dtype=jnp.float32) * 0.1

    out = jax.block_until_ready(residual_block_nobn(x, w1, b1, w2, b2, band_h=4))
    ref = jax.block_until_ready(_reference(x, w1, b1, w2, b2))

    # bf16 MXU operands (f32 accumulation) vs. f32 reference -> relaxed tolerance.
    np.testing.assert_allclose(np.asarray(out), np.asarray(ref),
                               rtol=1e-2, atol=1e-2)

    print("KERNEL_OK")
</pallas_src>

<mosaic_0001>
module attributes {stable_mosaic.version = 11 : i64} {
  func.func @kernel(%arg0: i32, %arg1: i32, %arg2: memref<1x4x32x128xf32, #tpu.memory_space<vmem>>, %arg3: memref<1x4x32x128xf32, #tpu.memory_space<vmem>>, %arg4: memref<3x384x128xbf16, #tpu.memory_space<vmem>>, %arg5: memref<1x128xf32, #tpu.memory_space<vmem>>, %arg6: memref<3x384x128xbf16, #tpu.memory_space<vmem>>, %arg7: memref<1x128xf32, #tpu.memory_space<vmem>>, %arg8: memref<1x4x16x128xf32, #tpu.memory_space<vmem>>) attributes {dimension_semantics = [#tpu.dimension_semantics<parallel>, #tpu.dimension_semantics<parallel>], iteration_bounds = array<i64: 2, 4>, scalar_prefetch = 0 : i64, scratch_operands = 0 : i64, tpu.core_type = #tpu.core_type<tc>, window_params = [{transform_indices = @transform_0, window_bounds = array<i64: 1, 4, 32, 128>}, {transform_indices = @transform_1, window_bounds = array<i64: 1, 4, 32, 128>}, {pipeline_mode = #tpu.pipeline_mode<synchronous>, transform_indices = @transform_2, window_bounds = array<i64: 3, 384, 128>}, {pipeline_mode = #tpu.pipeline_mode<synchronous>, transform_indices = @transform_3, window_bounds = array<i64: 1, 128>}, {pipeline_mode = #tpu.pipeline_mode<synchronous>, transform_indices = @transform_4, window_bounds = array<i64: 3, 384, 128>}, {pipeline_mode = #tpu.pipeline_mode<synchronous>, transform_indices = @transform_5, window_bounds = array<i64: 1, 128>}, {transform_indices = @transform_6, window_bounds = array<i64: 1, 4, 16, 128>}]} {
    %c0 = arith.constant 0 : index
    %c0_0 = arith.constant 0 : index
    %c0_1 = arith.constant 0 : index
    %c0_2 = arith.constant 0 : index
    %0 = vector.load %arg2[%c0, %c0_0, %c0_1, %c0_2] : memref<1x4x32x128xf32, #tpu.memory_space<vmem>>, vector<1x4x32x128xf32>
    %1 = vector.shape_cast %0 : vector<1x4x32x128xf32> to vector<4x32x128xf32>
    %c0_3 = arith.constant 0 : index
    %c0_4 = arith.constant 0 : index
    %c0_5 = arith.constant 0 : index
    %c0_6 = arith.constant 0 : index
    %2 = vector.load %arg3[%c0_3, %c0_4, %c0_5, %c0_6] : memref<1x4x32x128xf32, #tpu.memory_space<vmem>>, vector<1x4x32x128xf32>
    %3 = vector.shape_cast %2 : vector<1x4x32x128xf32> to vector<4x32x128xf32>
    %4 = arith.truncf %1 : vector<4x32x128xf32> to vector<4x32x128xbf16>
    %5 = arith.truncf %3 : vector<4x32x128xf32> to vector<4x32x128xbf16>
    %6 = tpu.concatenate %4, %5 in 0 : vector<4x32x128xbf16>, vector<4x32x128xbf16> -> vector<8x32x128xbf16>
    %7 = vector.extract_strided_slice %6 {offsets = [0, 6, 0], sizes = [8, 24, 128], strides = [1, 1, 1]} : vector<8x32x128xbf16> to vector<8x24x128xbf16>
    %8 = vector.extract_strided_slice %6 {offsets = [0, 7, 0], sizes = [8, 24, 128], strides = [1, 1, 1]} : vector<8x32x128xbf16> to vector<8x24x128xbf16>
    %9 = vector.extract_strided_slice %6 {offsets = [0, 8, 0], sizes = [8, 24, 128], strides = [1, 1, 1]} : vector<8x32x128xbf16> to vector<8x24x128xbf16>
    %10 = tpu.concatenate %7, %8, %9 in 2 : vector<8x24x128xbf16>, vector<8x24x128xbf16>, vector<8x24x128xbf16> -> vector<8x24x384xbf16>
    %11 = vector.extract_strided_slice %10 {offsets = [0, 0, 0], sizes = [6, 24, 384], strides = [1, 1, 1]} : vector<8x24x384xbf16> to vector<6x24x384xbf16>
    %12 = vector.shape_cast %11 : vector<6x24x384xbf16> to vector<144x384xbf16>
    %c0_7 = arith.constant 0 : index
    %c0_8 = arith.constant 0 : index
    %c0_9 = arith.constant 0 : index
    %13 = vector.load %arg4[%c0_7, %c0_8, %c0_9] : memref<3x384x128xbf16, #tpu.memory_space<vmem>>, vector<1x384x128xbf16>
    %14 = vector.shape_cast %13 : vector<1x384x128xbf16> to vector<384x128xbf16>
    %cst = arith.constant dense<0.000000e+00> : vector<144x128xf32>
    %15 = tpu.matmul %12, %14, %cst {dimension_numbers = #tpu.dot_dimension_numbers<[1], [0], [0], [1], [0, 0, 1, 1], [], []>} : vector<144x384xbf16>, vector<384x128xbf16>, vector<144x128xf32> -> vector<144x128xf32>
    %16 = vector.extract_strided_slice %10 {offsets = [1, 0, 0], sizes = [6, 24, 384], strides = [1, 1, 1]} : vector<8x24x384xbf16> to vector<6x24x384xbf16>
    %17 = vector.shape_cast %16 : vector<6x24x384xbf16> to vector<144x384xbf16>
    %c1 = arith.constant 1 : index
    %c0_10 = arith.constant 0 : index
    %c0_11 = arith.constant 0 : index
    %18 = vector.load %arg4[%c1, %c0_10, %c0_11] : memref<3x384x128xbf16, #tpu.memory_space<vmem>>, vector<1x384x128xbf16>
    %19 = vector.shape_cast %18 : vector<1x384x128xbf16> to vector<384x128xbf16>
    %cst_12 = arith.constant dense<0.000000e+00> : vector<144x128xf32>
    %20 = tpu.matmul %17, %19, %cst_12 {dimension_numbers = #tpu.dot_dimension_numbers<[1], [0], [0], [1], [0, 0, 1, 1], [], []>} : vector<144x384xbf16>, vector<384x128xbf16>, vector<144x128xf32> -> vector<144x128xf32>
    %21 = arith.addf %15, %20 : vector<144x128xf32>
    %22 = vector.extract_strided_slice %10 {offsets = [2, 0, 0], sizes = [6, 24, 384], strides = [1, 1, 1]} : vector<8x24x384xbf16> to vector<6x24x384xbf16>
    %23 = vector.shape_cast %22 : vector<6x24x384xbf16> to vector<144x384xbf16>
    %c2 = arith.constant 2 : index
    %c0_13 = arith.constant 0 : index
    %c0_14 = arith.constant 0 : index
    %24 = vector.load %arg4[%c2, %c0_13, %c0_14] : memref<3x384x128xbf16, #tpu.memory_space<vmem>>, vector<1x384x128xbf16>
    %25 = vector.shape_cast %24 : vector<1x384x128xbf16> to vector<384x128xbf16>
    %cst_15 = arith.constant dense<0.000000e+00> : vector<144x128xf32>
    %26 = tpu.matmul %23, %25, %cst_15 {dimension_numbers = #tpu.dot_dimension_numbers<[1], [0], [0], [1], [0, 0, 1, 1], [], []>} : vector<144x384xbf16>, vector<384x128xbf16>, vector<144x128xf32> -> vector<144x128xf32>
    %27 = arith.addf %21, %26 : vector<144x128xf32>
    %28 = vector.shape_cast %27 : vector<144x128xf32> to vector<6x24x128xf32>
    %29 = tpu.iota {dimensions = array<i32: 0>} : vector<6x24x1xi32>
    %c4_i32 = arith.constant 4 : i32
    %30 = arith.muli %arg1, %c4_i32 : i32
    %c1_i32 = arith.constant 1 : i32
    %31 = arith.subi %30, %c1_i32 : i32
    %32 = vector.broadcast %31 : i32 to vector<6x24x1xi32>
    %33 = arith.addi %29, %32 : vector<6x24x1xi32>
    %34 = tpu.iota {dimensions = array<i32: 1>} : vector<6x24x1xi32>
    %c1_i32_16 = arith.constant 1 : i32
    %35 = vector.broadcast %c1_i32_16 : i32 to vector<6x24x1xi32>
    %36 = arith.subi %34, %35 : vector<6x24x1xi32>
    %c0_i32 = arith.constant 0 : i32
    %37 = vector.broadcast %c0_i32 : i32 to vector<6x24x1xi32>
    %38 = arith.cmpi sge, %33, %37 : vector<6x24x1xi32>
    %c16_i32 = arith.constant 16 : i32
    %39 = vector.broadcast %c16_i32 : i32 to vector<6x24x1xi32>
    %40 = arith.cmpi slt, %33, %39 : vector<6x24x1xi32>
    %41 = arith.andi %38, %40 : vector<6x24x1xi1>
    %c0_i32_17 = arith.constant 0 : i32
    %42 = vector.broadcast %c0_i32_17 : i32 to vector<6x24x1xi32>
    %43 = arith.cmpi sge, %36, %42 : vector<6x24x1xi32>
    %44 = arith.andi %41, %43 : vector<6x24x1xi1>
    %c16_i32_18 = arith.constant 16 : i32
    %45 = vector.broadcast %c16_i32_18 : i32 to vector<6x24x1xi32>
    %46 = arith.cmpi slt, %36, %45 : vector<6x24x1xi32>
    %47 = arith.andi %44, %46 : vector<6x24x1xi1>
    %c0_19 = arith.constant 0 : index
    %c0_20 = arith.constant 0 : index
    %48 = vector.load %arg5[%c0_19, %c0_20] : memref<1x128xf32, #tpu.memory_space<vmem>>, vector<1x128xf32>
    %49 = vector.shape_cast %48 : vector<1x128xf32> to vector<1x1x128xf32>
    %50 = vector.broadcast %49 : vector<1x1x128xf32> to vector<6x24x128xf32>
    %51 = arith.addf %28, %50 : vector<6x24x128xf32>
    %cst_21 = arith.constant 0.000000e+00 : f32
    %52 = vector.broadcast %cst_21 : f32 to vector<6x24x128xf32>
    %53 = arith.maximumf %51, %52 : vector<6x24x128xf32>
    %cst_22 = arith.constant 0.000000e+00 : f32
    %54 = vector.shape_cast %47 : vector<6x24x1xi1> to vector<6x24x1xi1>
    %55 = vector.broadcast %54 : vector<6x24x1xi1> to vector<6x24x128xi1>
    %56 = vector.broadcast %cst_22 : f32 to vector<6x24x128xf32>
    %57 = arith.select %55, %53, %56 : vector<6x24x128xi1>, vector<6x24x128xf32>
    %58 = arith.truncf %57 : vector<6x24x128xf32> to vector<6x24x128xbf16>
    %59 = vector.extract_strided_slice %58 {offsets = [0, 0, 0], sizes = [6, 16, 128], strides = [1, 1, 1]} : vector<6x24x128xbf16> to vector<6x16x128xbf16>
    %60 = vector.extract_strided_slice %58 {offsets = [0, 1, 0], sizes = [6, 16, 128], strides = [1, 1, 1]} : vector<6x24x128xbf16> to vector<6x16x128xbf16>
    %61 = vector.extract_strided_slice %58 {offsets = [0, 2, 0], sizes = [6, 16, 128], strides = [1, 1, 1]} : vector<6x24x128xbf16> to vector<6x16x128xbf16>
    %62 = tpu.concatenate %59, %60, %61 in 2 : vector<6x16x128xbf16>, vector<6x16x128xbf16>, vector<6x16x128xbf16> -> vector<6x16x384xbf16>
    %63 = vector.extract_strided_slice %62 {offsets = [0, 0, 0], sizes = [4, 16, 384], strides = [1, 1, 1]} : vector<6x16x384xbf16> to vector<4x16x384xbf16>
    %64 = vector.shape_cast %63 : vector<4x16x384xbf16> to vector<64x384xbf16>
    %c0_23 = arith.constant 0 : index
    %c0_24 = arith.constant 0 : index
    %c0_25 = arith.constant 0 : index
    %65 = vector.load %arg6[%c0_23, %c0_24, %c0_25] : memref<3x384x128xbf16, #tpu.memory_space<vmem>>, vector<1x384x128xbf16>
    %66 = vector.shape_cast %65 : vector<1x384x128xbf16> to vector<384x128xbf16>
    %cst_26 = arith.constant dense<0.000000e+00> : vector<64x128xf32>
    %67 = tpu.matmul %64, %66, %cst_26 {dimension_numbers = #tpu.dot_dimension_numbers<[1], [0], [0], [1], [0, 0, 1, 1], [], []>} : vector<64x384xbf16>, vector<384x128xbf16>, vector<64x128xf32> -> vector<64x128xf32>
    %68 = vector.extract_strided_slice %62 {offsets = [1, 0, 0], sizes = [4, 16, 384], strides = [1, 1, 1]} : vector<6x16x384xbf16> to vector<4x16x384xbf16>
    %69 = vector.shape_cast %68 : vector<4x16x384xbf16> to vector<64x384xbf16>
    %c1_27 = arith.constant 1 : index
    %c0_28 = arith.constant 0 : index
    %c0_29 = arith.constant 0 : index
    %70 = vector.load %arg6[%c1_27, %c0_28, %c0_29] : memref<3x384x128xbf16, #tpu.memory_space<vmem>>, vector<1x384x128xbf16>
    %71 = vector.shape_cast %70 : vector<1x384x128xbf16> to vector<384x128xbf16>
    %cst_30 = arith.constant dense<0.000000e+00> : vector<64x128xf32>
    %72 = tpu.matmul %69, %71, %cst_30 {dimension_numbers = #tpu.dot_dimension_numbers<[1], [0], [0], [1], [0, 0, 1, 1], [], []>} : vector<64x384xbf16>, vector<384x128xbf16>, vector<64x128xf32> -> vector<64x128xf32>
    %73 = arith.addf %67, %72 : vector<64x128xf32>
    %74 = vector.extract_strided_slice %62 {offsets = [2, 0, 0], sizes = [4, 16, 384], strides = [1, 1, 1]} : vector<6x16x384xbf16> to vector<4x16x384xbf16>
    %75 = vector.shape_cast %74 : vector<4x16x384xbf16> to vector<64x384xbf16>
    %c2_31 = arith.constant 2 : index
    %c0_32 = arith.constant 0 : index
    %c0_33 = arith.constant 0 : index
    %76 = vector.load %arg6[%c2_31, %c0_32, %c0_33] : memref<3x384x128xbf16, #tpu.memory_space<vmem>>, vector<1x384x128xbf16>
    %77 = vector.shape_cast %76 : vector<1x384x128xbf16> to vector<384x128xbf16>
    %cst_34 = arith.constant dense<0.000000e+00> : vector<64x128xf32>
    %78 = tpu.matmul %75, %77, %cst_34 {dimension_numbers = #tpu.dot_dimension_numbers<[1], [0], [0], [1], [0, 0, 1, 1], [], []>} : vector<64x384xbf16>, vector<384x128xbf16>, vector<64x128xf32> -> vector<64x128xf32>
    %79 = arith.addf %73, %78 : vector<64x128xf32>
    %c0_35 = arith.constant 0 : index
    %c0_36 = arith.constant 0 : index
    %80 = vector.load %arg7[%c0_35, %c0_36] : memref<1x128xf32, #tpu.memory_space<vmem>>, vector<1x128xf32>
    %81 = vector.broadcast %80 : vector<1x128xf32> to vector<64x128xf32>
    %82 = arith.addf %79, %81 : vector<64x128xf32>
    %83 = vector.shape_cast %82 : vector<64x128xf32> to vector<4x16x128xf32>
    %84 = vector.extract_strided_slice %83 {offsets = [0, 0, 0], sizes = [2, 16, 128], strides = [1, 1, 1]} : vector<4x16x128xf32> to vector<2x16x128xf32>
    %85 = vector.extract_strided_slice %1 {offsets = [2, 8, 0], sizes = [2, 16, 128], strides = [1, 1, 1]} : vector<4x32x128xf32> to vector<2x16x128xf32>
    %86 = arith.addf %84, %85 : vector<2x16x128xf32>
    %c0_37 = arith.constant 0 : index
    %c0_38 = arith.constant 0 : index
    %c0_39 = arith.constant 0 : index
    %c0_40 = arith.constant 0 : index
    %87 = vector.load %arg8[%c0_37, %c0_38, %c0_39, %c0_40] : memref<1x4x16x128xf32, #tpu.memory_space<vmem>>, vector<1x2x16x128xf32>
    %88 = vector.shape_cast %87 : vector<1x2x16x128xf32> to vector<2x16x128xf32>
    %89 = vector.shape_cast %86 : vector<2x16x128xf32> to vector<1x2x16x128xf32>
    tpu.vector_store %arg8[%c0_37, %c0_38, %c0_39, %c0_40], %89 {strides = array<i32>} : memref<1x4x16x128xf32, #tpu.memory_space<vmem>>, vector<1x2x16x128xf32>,
    %90 = vector.extract_strided_slice %83 {offsets = [2, 0, 0], sizes = [2, 16, 128], strides = [1, 1, 1]} : vector<4x16x128xf32> to vector<2x16x128xf32>
    %91 = vector.extract_strided_slice %3 {offsets = [0, 8, 0], sizes = [2, 16, 128], strides = [1, 1, 1]} : vector<4x32x128xf32> to vector<2x16x128xf32>
    %92 = arith.addf %90, %91 : vector<2x16x128xf32>
    %c0_41 = arith.constant 0 : index
    %c2_42 = arith.constant 2 : index
    %c0_43 = arith.constant 0 : index
    %c0_44 = arith.constant 0 : index
    %93 = vector.load %arg8[%c0_41, %c2_42, %c0_43, %c0_44] : memref<1x4x16x128xf32, #tpu.memory_space<vmem>>, vector<1x2x16x128xf32>
    %94 = vector.shape_cast %93 : vector<1x2x16x128xf32> to vector<2x16x128xf32>
    %95 = vector.shape_cast %92 : vector<2x16x128xf32> to vector<1x2x16x128xf32>
    tpu.vector_store %arg8[%c0_41, %c2_42, %c0_43, %c0_44], %95 {strides = array<i32>} : memref<1x4x16x128xf32, #tpu.memory_space<vmem>>, vector<1x2x16x128xf32>,
    return
  }
  func.func @transform_0(%arg0: i32, %arg1: i32) -> (i32, i32, i32, i32) {
    %c0_i32 = arith.constant 0 : i32
    %c0_i32_0 = arith.constant 0 : i32
    %c0_i32_1 = arith.constant 0 : i32
    return %arg0, %arg1, %c0_i32, %c0_i32_0 : i32, i32, i32, i32
  }
  func.func @transform_1(%arg0: i32, %arg1: i32) -> (i32, i32, i32, i32) {
    %c1_i32 = arith.constant 1 : i32
    %0 = arith.addi %arg1, %c1_i32 : i32
    %c1_i32_0 = arith.constant 1 : i32
    %1 = arith.muli %0, %c1_i32_0 : i32
    %c0_i32 = arith.constant 0 : i32
    %c0_i32_1 = arith.constant 0 : i32
    %c0_i32_2 = arith.constant 0 : i32
    return %arg0, %1, %c0_i32, %c0_i32_1 : i32, i32, i32, i32
  }
  func.func @transform_2(%arg0: i32, %arg1: i32) -> (i32, i32, i32) {
    %c0_i32 = arith.constant 0 : i32
    %c0_i32_0 = arith.constant 0 : i32
    %c0_i32_1 = arith.constant 0 : i32
    %c0_i32_2 = arith.constant 0 : i32
    return %c0_i32, %c0_i32_0, %c0_i32_1 : i32, i32, i32
  }
  func.func @transform_3(%arg0: i32, %arg1: i32) -> (i32, i32) {
    %c0_i32 = arith.constant 0 : i32
    %c0_i32_0 = arith.constant 0 : i32
    %c0_i32_1 = arith.constant 0 : i32
    return %c0_i32, %c0_i32_0 : i32, i32
  }
  func.func @transform_4(%arg0: i32, %arg1: i32) -> (i32, i32, i32) {
    %c0_i32 = arith.constant 0 : i32
    %c0_i32_0 = arith.constant 0 : i32
    %c0_i32_1 = arith.constant 0 : i32
    %c0_i32_2 = arith.constant 0 : i32
    return %c0_i32, %c0_i32_0, %c0_i32_1 : i32, i32, i32
  }
  func.func @transform_5(%arg0: i32, %arg1: i32) -> (i32, i32) {
    %c0_i32 = arith.constant 0 : i32
    %c0_i32_0 = arith.constant 0 : i32
    %c0_i32_1 = arith.constant 0 : i32
    return %c0_i32, %c0_i32_0 : i32, i32
  }
  func.func @transform_6(%arg0: i32, %arg1: i32) -> (i32, i32, i32, i32) {
    %c0_i32 = arith.constant 0 : i32
    %c0_i32_0 = arith.constant 0 : i32
    %c0_i32_1 = arith.constant 0 : i32
    return %arg0, %arg1, %c0_i32, %c0_i32_0 : i32, i32, i32, i32
  }
}

</mosaic_0001>

<llo_original>
// kernel: tpu_custom_call.1
$region0: #{tpu_custom_call.1}
  #allocation0 [shape = 'u32[]', space=smem, size = 0x4, offset = 0x4, fixed_abs, tag = 'smem constant byte address 0x4 - core index']
  #allocation1 [shape = 'u32[144,128]{1,0:T(1,128)}', space=vmem, size = 0x12000, scoped, tag = 'internal scratch']
  %s0 = inlined_call_operand.hbm [shape: f32[2,20,32,128], index: 0, kind: input, shape index: {}]
  %s1 = inlined_call_operand.hbm [shape: f32[2,20,32,128], index: 1, kind: input, shape index: {}]
  %s2 = inlined_call_operand.hbm [shape: bf16[3,384,128], index: 2, kind: input, shape index: {}]
  %s3 = inlined_call_operand.vmem [shape: f32[1,128], index: 3, kind: input, shape index: {}]
  %s4 = inlined_call_operand.hbm [shape: bf16[3,384,128], index: 4, kind: input, shape index: {}]
  %s5 = inlined_call_operand.vmem [shape: f32[1,128], index: 5, kind: input, shape index: {}]
  %s6 = inlined_call_operand.hbm [shape: f32[2,16,16,128], index: 6, kind: output, shape index: {}]
  %s7 = sld [smem:[#allocation0]]
  $region73: #{tpu_custom_call.1} parent=0
    _
  %s9 = ssub.s32 1, %s7
  %s10 = scalar_select 0, %s9, %s7
  $region1: #{tpu_custom_call.1} parent=0
    #allocation2 [shape = 'u8[131072]{0}', space=vmem, size = 0x20000, scoped, tag = 'input window, operand 0']
    #allocation3 [shape = 's32[2]{0}', space=sflag, size = 0x8, scoped, tag = 'scoped memory for tpu_custom_call.1']
    #allocation4 [shape = 's32[2]{0}', space=sflag, size = 0x8, scoped, tag = 'scoped memory for tpu_custom_call.1']
    #allocation5 [shape = 'u8[131072]{0}', space=vmem, size = 0x20000, scoped, tag = 'input window, operand 1']
    #allocation6 [shape = 's32[2]{0}', space=sflag, size = 0x8, scoped, tag = 'scoped memory for tpu_custom_call.1']
    #allocation7 [shape = 'u8[294912]{0}', space=vmem, size = 0x48000, scoped, tag = 'input window, operand 2, single buffered']
    #allocation8 [shape = 'u8[294912]{0}', space=vmem, size = 0x48000, scoped, tag = 'input window, operand 4, single buffered']
    #allocation9 [shape = 's32[1]{0}', space=sflag, size = 0x4, scoped, tag = 'scoped memory for tpu_custom_call.1']
    #allocation10 [shape = 'u8[65536]{0}', space=vmem, size = 0x10000, scoped, tag = 'output window, operand 0']
    %11 = vsyncpa [#allocation3], 0
    %s12 = scalar_lea.sflag [#allocation3], 1
    %13 = vsyncpa %s12, 0
    %14 = vsyncpa [#allocation6], 0
    %s15 = scalar_lea.sflag [#allocation6], 1
    %16 = vsyncpa %s15, 0
    %17 = vsyncpa [#allocation9], 0
    %18 = vsyncpa [#allocation4], 0
    %s19 = scalar_lea.sflag [#allocation4], 1
    %20 = vsyncpa %s19, 0
    loop: start=0, step=1, limit=10
    $region2: #{tpu_custom_call.1} parent=1 // loop_pre_header
      _
    $region3: #{tpu_custom_call.1} parent=1 // loop_header
      %s22 = sphi 0, %s26
      %p23 = scmp.ge.s32.totalorder %s22, 10
      %s29 = sphi 0, %s41
      %s30 = sphi 0, %s37
      %s31 = sphi 0, %s29
      %s32 = sphi 0, %s30
      %s33 = sphi 0, %s31
      %s34 = sphi 0, %s32
      %s46 = sphi 0, %s48
      %s49 = sphi 0, %s46
      %s50 = sphi 0, %s49
      %s66 = sphi 0, %s50
      %s76 = sphi 0, %s78
      %s79 = sphi 0, %s76
      %s80 = sphi 0, %s79
      %s96 = sphi 0, %s80
      %s100 = sphi 0, %s100
      %s102 = sphi 0, %s100
      %s103 = sphi 0, %s102
      %s117 = sphi 0, %s103
      %s121 = sphi 0, %s121
      %s123 = sphi 0, %s121
      %s124 = sphi 0, %s123
      %s138 = sphi 0, %s124
      %s142 = sphi 0, %s142
      %s144 = sphi 0, %s142
      %s145 = sphi 0, %s144
      %s159 = sphi 0, %s145
      %s163 = sphi 0, %s163
      %s165 = sphi 0, %s163
      %s166 = sphi 0, %s165
      %s180 = sphi 0, %s166
      %s188 = sphi 0, %s190
      %s191 = sphi 0, %s188
      %s192 = sphi 0, %s191
      %s208 = sphi 0, %s192
    $region4: #{tpu_custom_call.1} parent=1 // loop_header_branch
      %25 = sbr.rel (%p23) target = $region8
    $region5: #{tpu_custom_call.1} parent=1 // loop_body
      %s27 = ssub.s32 %s22, 1
      %s28 = ssub.s32 %s22, 2
      %s35 = sadd.s32 1, %s30
      %p36 = scmp.ge.s32.totalorder %s35, 4
      %s37 = scalar_select %p36, 0, %s35
      %s38 = sadd.s32 1, %s29
      %s39 = scalar_select %p36, %s38, %s29
      %p40 = scmp.ge.s32.totalorder %s39, 2
      %s41 = scalar_select %p40, 0, %s39
      %s42 = ssub.s32 %s29, %s41
      %s43 = ssub.s32 %s30, %s37
      %s44 = sor.u32 %s42, %s43
      %p45 = scmp.eq.s32.totalorder %s44, 0
      %s47 = sadd.s32 %s46, 1
      %s48 = scalar_select %p45, %s46, %s47
      %p51 = pneg %p45
      %p52 = scmp.eq.s32.totalorder %s22, 7
      %p53 = por %p51, %p52
      %p54 = scmp.ne.s32.totalorder %s46, %s49
      %p55 = scmp.eq.s32.totalorder %s22, 0
      %p56 = por %p54, %p55
      %p57 = scmp.ne.s32.totalorder %s46, %s49
      %p58 = scmp.eq.s32.totalorder %s27, 7
      %p59 = por %p57, %p58
      %p60 = scmp.ne.s32.totalorder %s49, %s50
      %p61 = scmp.eq.s32.totalorder %s27, 0
      %p62 = por %p60, %p61
      %p63 = scmp.ne.s32.totalorder %s49, %s50
      %p64 = scmp.eq.s32.totalorder %s28, 7
      %p65 = por %p63, %p64
      %p67 = scmp.ne.s32.totalorder %s50, %s66
      %p68 = scmp.eq.s32.totalorder %s28, 0
      %p69 = por %p67, %p68
      %s70 = sadd.s32 %s30, 1
      %s71 = sadd.s32 %s37, 1
      %s72 = ssub.s32 %s29, %s41
      %s73 = ssub.s32 %s70, %s71
      %s74 = sor.u32 %s72, %s73
      %p75 = scmp.eq.s32.totalorder %s74, 0
      %s77 = sadd.s32 %s76, 1
      %s78 = scalar_select %p75, %s76, %s77
      %p81 = pneg %p75
      %p82 = scmp.eq.s32.totalorder %s22, 7
      %p83 = por %p81, %p82
      %p84 = scmp.ne.s32.totalorder %s76, %s79
      %p85 = scmp.eq.s32.totalorder %s22, 0
      %p86 = por %p84, %p85
      %p87 = scmp.ne.s32.totalorder %s76, %s79
      %p88 = scmp.eq.s32.totalorder %s27, 7
      %p89 = por %p87, %p88
      %p90 = scmp.ne.s32.totalorder %s79, %s80
      %p91 = scmp.eq.s32.totalorder %s27, 0
      %p92 = por %p90, %p91
      %p93 = scmp.ne.s32.totalorder %s79, %s80
      %p94 = scmp.eq.s32.totalorder %s28, 7
      %p95 = por %p93, %p94
      %p97 = scmp.ne.s32.totalorder %s80, %s96
      %p98 = scmp.eq.s32.totalorder %s28, 0
      %p99 = por %p97, %p98
      %s101 = sadd.s32 %s100, 1
      %p104 = scmp.eq.s32.totalorder %s22, 7
      %p105 = scmp.ne.s32.totalorder %s100, %s102
      %p106 = scmp.eq.s32.totalorder %s22, 0
      %p107 = por %p105, %p106
      %p108 = scmp.ne.s32.totalorder %s100, %s102
      %p109 = scmp.eq.s32.totalorder %s27, 7
      %p110 = por %p108, %p109
      %p111 = scmp.ne.s32.totalorder %s102, %s103
      %p112 = scmp.eq.s32.totalorder %s27, 0
      %p113 = por %p111, %p112
      %p114 = scmp.ne.s32.totalorder %s102, %s103
      %p115 = scmp.eq.s32.totalorder %s28, 7
      %p116 = por %p114, %p115
      %p118 = scmp.ne.s32.totalorder %s103, %s117
      %p119 = scmp.eq.s32.totalorder %s28, 0
      %p120 = por %p118, %p119
      %s122 = sadd.s32 %s121, 1
      %p125 = scmp.eq.s32.totalorder %s22, 7
      %p126 = scmp.ne.s32.totalorder %s121, %s123
      %p127 = scmp.eq.s32.totalorder %s22, 0
      %p128 = por %p126, %p127
      %p129 = scmp.ne.s32.totalorder %s121, %s123
      %p130 = scmp.eq.s32.totalorder %s27, 7
      %p131 = por %p129, %p130
      %p132 = scmp.ne.s32.totalorder %s123, %s124
      %p133 = scmp.eq.s32.totalorder %s27, 0
      %p134 = por %p132, %p133
      %p135 = scmp.ne.s32.totalorder %s123, %s124
      %p136 = scmp.eq.s32.totalorder %s28, 7
      %p137 = por %p135, %p136
      %p139 = scmp.ne.s32.totalorder %s124, %s138
      %p140 = scmp.eq.s32.totalorder %s28, 0
      %p141 = por %p139, %p140
      %s143 = sadd.s32 %s142, 1
      %p146 = scmp.eq.s32.totalorder %s22, 7
      %p147 = scmp.ne.s32.totalorder %s142, %s144
      %p148 = scmp.eq.s32.totalorder %s22, 0
      %p149 = por %p147, %p148
      %p150 = scmp.ne.s32.totalorder %s142, %s144
      %p151 = scmp.eq.s32.totalorder %s27, 7
      %p152 = por %p150, %p151
      %p153 = scmp.ne.s32.totalorder %s144, %s145
      %p154 = scmp.eq.s32.totalorder %s27, 0
      %p155 = por %p153, %p154
      %p156 = scmp.ne.s32.totalorder %s144, %s145
      %p157 = scmp.eq.s32.totalorder %s28, 7
      %p158 = por %p156, %p157
      %p160 = scmp.ne.s32.totalorder %s145, %s159
      %p161 = scmp.eq.s32.totalorder %s28, 0
      %p162 = por %p160, %p161
      %s164 = sadd.s32 %s163, 1
      %p167 = scmp.eq.s32.totalorder %s22, 7
      %p168 = scmp.ne.s32.totalorder %s163, %s165
      %p169 = scmp.eq.s32.totalorder %s22, 0
      %p170 = por %p168, %p169
      %p171 = scmp.ne.s32.totalorder %s163, %s165
      %p172 = scmp.eq.s32.totalorder %s27, 7
      %p173 = por %p171, %p172
      %p174 = scmp.ne.s32.totalorder %s165, %s166
      %p175 = scmp.eq.s32.totalorder %s27, 0
      %p176 = por %p174, %p175
      %p177 = scmp.ne.s32.totalorder %s165, %s166
      %p178 = scmp.eq.s32.totalorder %s28, 7
      %p179 = por %p177, %p178
      %p181 = scmp.ne.s32.totalorder %s166, %s180
      %p182 = scmp.eq.s32.totalorder %s28, 0
      %p183 = por %p181, %p182
      %s184 = ssub.s32 %s29, %s41
      %s185 = ssub.s32 %s30, %s37
      %s186 = sor.u32 %s184, %s185
      %p187 = scmp.eq.s32.totalorder %s186, 0
      %s189 = sadd.s32 %s188, 1
      %s190 = scalar_select %p187, %s188, %s189
      %p193 = pneg %p187
      %p194 = scmp.eq.s32.totalorder %s22, 7
      %p195 = por %p193, %p194
      %p196 = scmp.ne.s32.totalorder %s188, %s191
      %p197 = scmp.eq.s32.totalorder %s22, 0
      %p198 = por %p196, %p197
      %p199 = scmp.ne.s32.totalorder %s188, %s191
      %p200 = scmp.eq.s32.totalorder %s27, 7
      %p201 = por %p199, %p200
      %p202 = scmp.ne.s32.totalorder %s191, %s192
      %p203 = scmp.eq.s32.totalorder %s27, 0
      %p204 = por %p202, %p203
      %p205 = scmp.ne.s32.totalorder %s191, %s192
      %p206 = scmp.eq.s32.totalorder %s28, 7
      %p207 = por %p205, %p206
      %p209 = scmp.ne.s32.totalorder %s192, %s208
      %p210 = scmp.eq.s32.totalorder %s28, 0
      %p211 = por %p209, %p210
      %p212 = scmp.le.s32.totalorder 1, %s22
      %p213 = scmp.lt.s32.totalorder %s22, 9
      %p214 = pnand %p212, %p213
      %p215 = pneg %p214
      // Predicated region
      $region9: #{tpu_custom_call.1} parent=5 // pred_check
        _
      $region10: #{tpu_custom_call.1} parent=5 // pred_check_branch
        %217 = sbr.rel (%p214) target = $region12
      $region11: #{tpu_custom_call.1} parent=5 // pred_region
        %s218 = ssub.s32 %s22, 1
        // Predicated region
        $region13: #{tpu_custom_call.1} parent=11 // pred_check
          %p219 = pneg %p113
        $region14: #{tpu_custom_call.1} parent=11 // pred_check_branch
          %221 = sbr.rel (%p219) target = $region16
        $region15: #{tpu_custom_call.1} parent=11 // pred_region
          %s223 = ssub.s32 9216, 9216
          %224 = vsyncadd [#allocation6], %s223
          %s225 = sshll.u32 [#allocation7], 4
          %s226 = int_to_ptr.vmem [resolvable:$true] %s225
          %231 = dma.hbm_to_vmem [thread:$0]  %s2, 9216, %s226, [#allocation6], 64, 64, 4
        $region16: #{tpu_custom_call.1} parent=11 // pred_fallthru
          _
        // Predicated region
        $region17: #{tpu_custom_call.1} parent=11 // pred_check
          %p232 = pneg %p134
        $region18: #{tpu_custom_call.1} parent=11 // pred_check_branch
          %234 = sbr.rel (%p232) target = $region20
        $region19: #{tpu_custom_call.1} parent=11 // pred_region
          _
        $region20: #{tpu_custom_call.1} parent=11 // pred_fallthru
          _
        // Predicated region
        $region21: #{tpu_custom_call.1} parent=11 // pred_check
          %p235 = pneg %p155
        $region22: #{tpu_custom_call.1} parent=11 // pred_check_branch
          %237 = sbr.rel (%p235) target = $region24
        $region23: #{tpu_custom_call.1} parent=11 // pred_region
          %s239 = ssub.s32 9216, 9216
          %240 = vsyncadd [#allocation9], %s239
          %s241 = sshll.u32 [#allocation8], 4
          %s242 = int_to_ptr.vmem [resolvable:$true] %s241
          %247 = dma.hbm_to_vmem [thread:$0]  %s4, 9216, %s242, [#allocation9], 64, 64, 4
        $region24: #{tpu_custom_call.1} parent=11 // pred_fallthru
          _
        // Predicated region
        $region25: #{tpu_custom_call.1} parent=11 // pred_check
          %p248 = pneg %p176
        $region26: #{tpu_custom_call.1} parent=11 // pred_check_branch
          %250 = sbr.rel (%p248) target = $region28
        $region27: #{tpu_custom_call.1} parent=11 // pred_region
          _
        $region28: #{tpu_custom_call.1} parent=11 // pred_fallthru
          _
      $region12: #{tpu_custom_call.1} parent=5 // pred_fallthru
        _
      %p251 = scmp.lt.s32.totalorder %s22, 8
      // Predicated region
      $region29: #{tpu_custom_call.1} parent=5 // pred_check
        %p252 = pneg %p251
      $region30: #{tpu_custom_call.1} parent=5 // pred_check_branch
        %254 = sbr.rel (%p252) target = $region32
      $region31: #{tpu_custom_call.1} parent=5 // pred_region
        // Predicated region
        $region33: #{tpu_custom_call.1} parent=31 // pred_check
          %p255 = pneg %p56
        $region34: #{tpu_custom_call.1} parent=31 // pred_check_branch
          %257 = sbr.rel (%p255) target = $region36
        $region35: #{tpu_custom_call.1} parent=31 // pred_region
          %s258 = sand.u32 %s46, 1
          %s259 = scalar_lea.sflag [#allocation3], %s258
          %s260 = sand.u32 %s46, 1
          %s261 = smul.addr %s260, 128
          %s262 = scalar_lea.vmem [#allocation2], %s261
          %s263 = smul.u32 4, %s30
          %s265 = ssub.s32 2048, 2048
          %266 = vsyncadd %s259, %s265
          %s267 = smul.addr %s263, 4
          %s268 = smul.addr %s29, 80
          %s269 = sadd.s32 %s267, %s268
          %s270 = smul.addr %s269, 128
          %s271 = scalar_lea.hbm %s0, %s270
          %s272 = sshll.u32 %s262, 4
          %s273 = int_to_ptr.vmem [resolvable:$true] %s272
          %278 = dma.hbm_to_vmem [thread:$0]  %s271, 2048, %s273, %s259, 128, 128, 8
        $region36: #{tpu_custom_call.1} parent=31 // pred_fallthru
          _
        // Predicated region
        $region37: #{tpu_custom_call.1} parent=31 // pred_check
          %p279 = pneg %p86
        $region38: #{tpu_custom_call.1} parent=31 // pred_check_branch
          %281 = sbr.rel (%p279) target = $region40
        $region39: #{tpu_custom_call.1} parent=31 // pred_region
          %s282 = sand.u32 %s22, 1
          %s283 = scalar_lea.sflag [#allocation6], %s282
          %s284 = sand.u32 %s76, 1
          %s285 = smul.addr %s284, 128
          %s286 = scalar_lea.vmem [#allocation5], %s285
          %s287 = sadd.s32 %s30, 1
          %s288 = smul.u32 4, %s287
          %s290 = ssub.s32 2048, 2048
          %291 = vsyncadd %s283, %s290
          %s292 = smul.addr %s288, 4
          %s293 = smul.addr %s29, 80
          %s294 = sadd.s32 %s292, %s293
          %s295 = smul.addr %s294, 128
          %s296 = scalar_lea.hbm %s1, %s295
          %s297 = sshll.u32 %s286, 4
          %s298 = int_to_ptr.vmem [resolvable:$true] %s297
          %303 = dma.hbm_to_vmem [thread:$0]  %s296, 2048, %s298, %s283, 128, 128, 8
        $region40: #{tpu_custom_call.1} parent=31 // pred_fallthru
          _
      $region32: #{tpu_custom_call.1} parent=5 // pred_fallthru
        _
      %p304 = scmp.le.s32.totalorder 1, %s22
      %p305 = scmp.lt.s32.totalorder %s22, 9
      %p306 = pnand %p304, %p305
      %p307 = pneg %p306
      // Predicated region
      $region41: #{tpu_custom_call.1} parent=5 // pred_check
        _
      $region42: #{tpu_custom_call.1} parent=5 // pred_check_branch
        %309 = sbr.rel (%p306) target = $region44
      $region43: #{tpu_custom_call.1} parent=5 // pred_region
        %s310 = ssub.s32 %s22, 1
        %s311 = sand.u32 %s49, 1
        %s312 = scalar_lea.sflag [#allocation3], %s311
        %s313 = sand.u32 %s49, 1
        %s314 = smul.addr %s313, 128
        %s315 = scalar_lea.vmem [#allocation2], %s314
        // Predicated region
        $region45: #{tpu_custom_call.1} parent=43 // pred_check
          %p316 = pneg %p62
        $region46: #{tpu_custom_call.1} parent=43 // pred_check_branch
          %318 = sbr.rel (%p316) target = $region48
        $region47: #{tpu_custom_call.1} parent=43 // pred_region
          %319 = dma.done %s312, 2048
        $region48: #{tpu_custom_call.1} parent=43 // pred_fallthru
          _
        %s320 = sand.u32 %s27, 1
        %s321 = scalar_lea.sflag [#allocation6], %s320
        %s322 = sand.u32 %s79, 1
        %s323 = smul.addr %s322, 128
        %s324 = scalar_lea.vmem [#allocation5], %s323
        // Predicated region
        $region49: #{tpu_custom_call.1} parent=43 // pred_check
          %p325 = pneg %p92
        $region50: #{tpu_custom_call.1} parent=43 // pred_check_branch
          %327 = sbr.rel (%p325) target = $region52
        $region51: #{tpu_custom_call.1} parent=43 // pred_region
          %328 = dma.done %s321, 2048
        $region52: #{tpu_custom_call.1} parent=43 // pred_fallthru
          _
        // Predicated region
        $region53: #{tpu_custom_call.1} parent=43 // pred_check
          %p329 = pneg %p113
        $region54: #{tpu_custom_call.1} parent=43 // pred_check_branch
          %331 = sbr.rel (%p329) target = $region56
        $region55: #{tpu_custom_call.1} parent=43 // pred_region
          %332 = dma.done [#allocation6], 9216
        $region56: #{tpu_custom_call.1} parent=43 // pred_fallthru
          _
        // Predicated region
        $region57: #{tpu_custom_call.1} parent=43 // pred_check
          %p333 = pneg %p155
        $region58: #{tpu_custom_call.1} parent=43 // pred_check_branch
          %335 = sbr.rel (%p333) target = $region60
        $region59: #{tpu_custom_call.1} parent=43 // pred_region
          %336 = dma.done [#allocation9], 9216
        $region60: #{tpu_custom_call.1} parent=43 // pred_fallthru
          _
        %s337 = sand.u32 %s49, 1
        %s338 = scalar_lea.sflag [#allocation3], %s337
        %s339 = sand.u32 %s49, 1
        %s340 = smul.addr %s339, 128
        %s341 = scalar_lea.vmem [#allocation2], %s340
        %p342 = pneg %p62
        %p343 = pneg %p59
        %s344 = sand.u32 %s27, 1
        %s345 = scalar_lea.sflag [#allocation6], %s344
        %s346 = sand.u32 %s79, 1
        %s347 = smul.addr %s346, 128
        %s348 = scalar_lea.vmem [#allocation5], %s347
        %p349 = pneg %p92
        %p350 = pneg %p89
        %p351 = pneg %p113
        %p352 = pneg %p110
        %p353 = pneg %p134
        %p354 = pneg %p131
        %p355 = pneg %p155
        %p356 = pneg %p152
        %p357 = pneg %p176
        %p358 = pneg %p173
        %p359 = pneg %p204
        %p360 = pneg %p201
        %s361 = sand.u32 %s191, 1
        %s362 = scalar_lea.sflag [#allocation4], %s361
        %s363 = sand.u32 %s191, 1
        %s364 = smul.addr %s363, 64
        %s365 = scalar_lea.vmem [#allocation10], %s364
        %s366 = smul.u32 4, %s32
        %s367 = sadd.s32 %s32, 1
        %s368 = smul.u32 4, %s367
        %s369 = smul.u32 4, %s32
        %v371 = vld [vmem:[%s315] sm:$0xff]
        %v372 = vld [vmem:[%s315 + $0x8] sm:$0xff]
        %v373 = vld [vmem:[%s315 + $0x10] sm:$0xff]
        %v374 = vld [vmem:[%s315 + $0x18] sm:$0xff]
        %v375 = vld [vmem:[%s315 + $0x20] sm:$0xff]
        %v376 = vld [vmem:[%s315 + $0x28] sm:$0xff]
        %v377 = vld [vmem:[%s315 + $0x30] sm:$0xff]
        %v378 = vld [vmem:[%s315 + $0x38] sm:$0xff]
        %v379 = vld [vmem:[%s315 + $0x40] sm:$0xff]
        %v380 = vld [vmem:[%s315 + $0x48] sm:$0xff]
        %v381 = vld [vmem:[%s315 + $0x50] sm:$0xff]
        %v382 = vld [vmem:[%s315 + $0x58] sm:$0xff]
        %v383 = vld [vmem:[%s315 + $0x60] sm:$0xff]
        %v384 = vld [vmem:[%s315 + $0x68] sm:$0xff]
        %v385 = vld [vmem:[%s315 + $0x70] sm:$0xff]
        %v386 = vld [vmem:[%s315 + $0x78] sm:$0xff]
        %v387 = vld [vmem:[%s324] sm:$0xff]
        %v388 = vld [vmem:[%s324 + $0x8] sm:$0xff]
        %v389 = vld [vmem:[%s324 + $0x10] sm:$0xff]
        %v390 = vld [vmem:[%s324 + $0x18] sm:$0xff]
        %v391 = vld [vmem:[%s324 + $0x20] sm:$0xff]
        %v392 = vld [vmem:[%s324 + $0x28] sm:$0xff]
        %v393 = vld [vmem:[%s324 + $0x30] sm:$0xff]
        %v394 = vld [vmem:[%s324 + $0x38] sm:$0xff]
        %v395 = vld [vmem:[%s324 + $0x40] sm:$0xff]
        %v396 = vld [vmem:[%s324 + $0x48] sm:$0xff]
        %v397 = vld [vmem:[%s324 + $0x50] sm:$0xff]
        %v398 = vld [vmem:[%s324 + $0x58] sm:$0xff]
        %v399 = vld [vmem:[%s324 + $0x60] sm:$0xff]
        %v400 = vld [vmem:[%s324 + $0x68] sm:$0xff]
        %v401 = vld [vmem:[%s324 + $0x70] sm:$0xff]
        %v402 = vld [vmem:[%s324 + $0x78] sm:$0xff]
        %v403 = vpack.c.bf16 %v372, %v371
        %v404 = vpack.c.bf16 %v374, %v373
        %v405 = vpack.c.bf16 %v376, %v375
        %v406 = vpack.c.bf16 %v378, %v377
        %v407 = vpack.c.bf16 %v380, %v379
        %v408 = vpack.c.bf16 %v382, %v381
        %v409 = vpack.c.bf16 %v384, %v383
        %v410 = vpack.c.bf16 %v386, %v385
        %v411 = vpack.c.bf16 %v388, %v387
        %v412 = vpack.c.bf16 %v390, %v389
        %v413 = vpack.c.bf16 %v392, %v391
        %v414 = vpack.c.bf16 %v394, %v393
        %v415 = vpack.c.bf16 %v396, %v395
        %v416 = vpack.c.bf16 %v398, %v397
        %v417 = vpack.c.bf16 %v400, %v399
        %v418 = vpack.c.bf16 %v402, %v401
        %vm419 = vsmask.f32 7424
        %v421 = vshrl.u32 %v403, 16
        %v423 = vshll.u32 %v403, 16
        %v425 = vrot.slane %v423, 1
        %v426 = vor.u32 %v421, %v425
        %v428 = vshll.u32 %v404, 16
        %v430 = vrot.slane %v428, 1
        %v431 = vsel %vm419, %v426, %v430
        %v432 = vshrl.u32 %v404, 16
        %v434 = vor.u32 %v432, %v430
        %v436 = vshrl.u32 %v405, 16
        %v438 = vshll.u32 %v405, 16
        %v440 = vrot.slane %v438, 1
        %v441 = vor.u32 %v436, %v440
        %v443 = vshll.u32 %v406, 16
        %v445 = vrot.slane %v443, 1
        %v446 = vsel %vm419, %v441, %v445
        %v447 = vshrl.u32 %v406, 16
        %v449 = vor.u32 %v447, %v445
        %v451 = vshrl.u32 %v407, 16
        %v453 = vshll.u32 %v407, 16
        %v455 = vrot.slane %v453, 1
        %v456 = vor.u32 %v451, %v455
        %v458 = vshll.u32 %v408, 16
        %v460 = vrot.slane %v458, 1
        %v461 = vsel %vm419, %v456, %v460
        %v462 = vshrl.u32 %v408, 16
        %v464 = vor.u32 %v462, %v460
        %v466 = vshrl.u32 %v409, 16
        %v468 = vshll.u32 %v409, 16
        %v470 = vrot.slane %v468, 1
        %v471 = vor.u32 %v466, %v470
        %v473 = vshll.u32 %v410, 16
        %v475 = vrot.slane %v473, 1
        %v476 = vsel %vm419, %v471, %v475
        %v477 = vshrl.u32 %v410, 16
        %v479 = vor.u32 %v477, %v475
        %v481 = vshrl.u32 %v411, 16
        %v483 = vshll.u32 %v411, 16
        %v485 = vrot.slane %v483, 1
        %v486 = vor.u32 %v481, %v485
        %v488 = vshll.u32 %v412, 16
        %v490 = vrot.slane %v488, 1
        %v491 = vsel %vm419, %v486, %v490
        %v492 = vshrl.u32 %v412, 16
        %v494 = vor.u32 %v492, %v490
        %v496 = vshrl.u32 %v413, 16
        %v498 = vshll.u32 %v413, 16
        %v500 = vrot.slane %v498, 1
        %v501 = vor.u32 %v496, %v500
        %v503 = vshll.u32 %v414, 16
        %v505 = vrot.slane %v503, 1
        %v506 = vsel %vm419, %v501, %v505
        %v507 = vshrl.u32 %v414, 16
        %v509 = vor.u32 %v507, %v505
        %v511 = vshrl.u32 %v415, 16
        %v513 = vshll.u32 %v415, 16
        %v515 = vrot.slane %v513, 1
        %v516 = vor.u32 %v511, %v515
        %v518 = vshll.u32 %v416, 16
        %v520 = vrot.slane %v518, 1
        %v521 = vsel %vm419, %v516, %v520
        %v522 = vshrl.u32 %v416, 16
        %v524 = vor.u32 %v522, %v520
        %v526 = vshrl.u32 %v417, 16
        %v528 = vshll.u32 %v417, 16
        %v530 = vrot.slane %v528, 1
        %v531 = vor.u32 %v526, %v530
        %v533 = vshll.u32 %v418, 16
        %v535 = vrot.slane %v533, 1
        %v536 = vsel %vm419, %v531, %v535
        %v537 = vshrl.u32 %v418, 16
        %v539 = vor.u32 %v537, %v535
        %vm556 = vcmask 1046528
        %v557 = vrot.slane %v403, 1
        %v558 = vrot.slane %v404, 1
        %v559 = vsel %vm556, %v557, %v558
        %v560 = vrot.slane %v405, 1
        %v561 = vrot.slane %v406, 1
        %v562 = vsel %vm556, %v560, %v561
        %v563 = vrot.slane %v407, 1
        %v564 = vrot.slane %v408, 1
        %v565 = vsel %vm556, %v563, %v564
        %v566 = vrot.slane %v409, 1
        %v567 = vrot.slane %v410, 1
        %v568 = vsel %vm556, %v566, %v567
        %v569 = vrot.slane %v411, 1
        %v570 = vrot.slane %v412, 1
        %v571 = vsel %vm556, %v569, %v570
        %v572 = vrot.slane %v413, 1
        %v573 = vrot.slane %v414, 1
        %v574 = vsel %vm556, %v572, %v573
        %v575 = vrot.slane %v415, 1
        %v576 = vrot.slane %v416, 1
        %v577 = vsel %vm556, %v575, %v576
        %v578 = vrot.slane %v417, 1
        %v579 = vrot.slane %v418, 1
        %v580 = vsel %vm556, %v578, %v579
        %v581 = vunpack.c.l.b16 %v403
        %v582 = vunpack.c.l.b16 %v431
        %v583 = vunpack.c.l.b16 %v559
        %v584 = vunpack.c.h.b16 %v403
        %v585 = vunpack.c.h.b16 %v431
        %v586 = vunpack.c.h.b16 %v559
        %v587 = vunpack.c.l.b16 %v404
        %v588 = vunpack.c.l.b16 %v434
        %v589 = vunpack.c.l.b16 %v558
        %v590 = vunpack.c.h.b16 %v404
        %v591 = vunpack.c.h.b16 %v434
        %v592 = vunpack.c.h.b16 %v558
        %v593 = vunpack.c.l.b16 %v405
        %v594 = vunpack.c.l.b16 %v446
        %v595 = vunpack.c.l.b16 %v562
        %v596 = vunpack.c.h.b16 %v405
        %v597 = vunpack.c.h.b16 %v446
        %v598 = vunpack.c.h.b16 %v562
        %v599 = vunpack.c.l.b16 %v406
        %v600 = vunpack.c.l.b16 %v449
        %v601 = vunpack.c.l.b16 %v561
        %v602 = vunpack.c.h.b16 %v406
        %v603 = vunpack.c.h.b16 %v449
        %v604 = vunpack.c.h.b16 %v561
        %v605 = vunpack.c.l.b16 %v407
        %v606 = vunpack.c.l.b16 %v461
        %v607 = vunpack.c.l.b16 %v565
        %v608 = vunpack.c.h.b16 %v407
        %v609 = vunpack.c.h.b16 %v461
        %v610 = vunpack.c.h.b16 %v565
        %v611 = vunpack.c.l.b16 %v408
        %v612 = vunpack.c.l.b16 %v464
        %v613 = vunpack.c.l.b16 %v564
        %v614 = vunpack.c.h.b16 %v408
        %v615 = vunpack.c.h.b16 %v464
        %v616 = vunpack.c.h.b16 %v564
        %v617 = vunpack.c.l.b16 %v409
        %v618 = vunpack.c.l.b16 %v476
        %v619 = vunpack.c.l.b16 %v568
        %v620 = vunpack.c.h.b16 %v409
        %v621 = vunpack.c.h.b16 %v476
        %v622 = vunpack.c.h.b16 %v568
        %v623 = vunpack.c.l.b16 %v410
        %v624 = vunpack.c.l.b16 %v479
        %v625 = vunpack.c.l.b16 %v567
        %v626 = vunpack.c.h.b16 %v410
        %v627 = vunpack.c.h.b16 %v479
        %v628 = vunpack.c.h.b16 %v567
        %v629 = vunpack.c.l.b16 %v411
        %v630 = vunpack.c.l.b16 %v491
        %v631 = vunpack.c.l.b16 %v571
        %v632 = vunpack.c.h.b16 %v411
        %v633 = vunpack.c.h.b16 %v491
        %v634 = vunpack.c.h.b16 %v571
        %v635 = vunpack.c.l.b16 %v412
        %v636 = vunpack.c.l.b16 %v494
        %v637 = vunpack.c.l.b16 %v570
        %v638 = vunpack.c.h.b16 %v412
        %v639 = vunpack.c.h.b16 %v494
        %v640 = vunpack.c.h.b16 %v570
        %v641 = vunpack.c.l.b16 %v413
        %v642 = vunpack.c.l.b16 %v506
        %v643 = vunpack.c.l.b16 %v574
        %v644 = vunpack.c.h.b16 %v413
        %v645 = vunpack.c.h.b16 %v506
        %v646 = vunpack.c.h.b16 %v574
        %v647 = vunpack.c.l.b16 %v414
        %v648 = vunpack.c.l.b16 %v509
        %v649 = vunpack.c.l.b16 %v573
        %v650 = vunpack.c.h.b16 %v414
        %v651 = vunpack.c.h.b16 %v509
        %v652 = vunpack.c.h.b16 %v573
        %v653 = vpack.c.b16 %v582, %v581
        %v654 = vpack.c.b16 %v583, %v583
        %v655 = vpack.c.b16 %v585, %v584
        %v656 = vpack.c.b16 %v586, %v586
        %v657 = vpack.c.b16 %v588, %v587
        %v658 = vpack.c.b16 %v589, %v589
        %v659 = vpack.c.b16 %v591, %v590
        %v660 = vpack.c.b16 %v592, %v592
        %v661 = vpack.c.b16 %v594, %v593
        %v662 = vpack.c.b16 %v595, %v595
        %v663 = vpack.c.b16 %v597, %v596
        %v664 = vpack.c.b16 %v598, %v598
        %v665 = vpack.c.b16 %v600, %v599
        %v666 = vpack.c.b16 %v601, %v601
        %v667 = vpack.c.b16 %v603, %v602
        %v668 = vpack.c.b16 %v604, %v604
        %v669 = vpack.c.b16 %v606, %v605
        %v670 = vpack.c.b16 %v607, %v607
        %v671 = vpack.c.b16 %v609, %v608
        %v672 = vpack.c.b16 %v610, %v610
        %v673 = vpack.c.b16 %v612, %v611
        %v674 = vpack.c.b16 %v613, %v613
        %v675 = vpack.c.b16 %v615, %v614
        %v676 = vpack.c.b16 %v616, %v616
        %v677 = vpack.c.b16 %v618, %v617
        %v678 = vpack.c.b16 %v619, %v619
        %v679 = vpack.c.b16 %v621, %v620
        %v680 = vpack.c.b16 %v622, %v622
        %v681 = vpack.c.b16 %v624, %v623
        %v682 = vpack.c.b16 %v625, %v625
        %v683 = vpack.c.b16 %v627, %v626
        %v684 = vpack.c.b16 %v628, %v628
        %v685 = vpack.c.b16 %v630, %v629
        %v686 = vpack.c.b16 %v631, %v631
        %v687 = vpack.c.b16 %v633, %v632
        %v688 = vpack.c.b16 %v634, %v634
        %v689 = vpack.c.b16 %v636, %v635
        %v690 = vpack.c.b16 %v637, %v637
        %v691 = vpack.c.b16 %v639, %v638
        %v692 = vpack.c.b16 %v640, %v640
        %v693 = vpack.c.b16 %v642, %v641
        %v694 = vpack.c.b16 %v643, %v643
        %v695 = vpack.c.b16 %v645, %v644
        %v696 = vpack.c.b16 %v646, %v646
        %v697 = vpack.c.b16 %v648, %v647
        %v698 = vpack.c.b16 %v649, %v649
        %v699 = vpack.c.b16 %v651, %v650
        %v700 = vpack.c.b16 %v652, %v652
        %vm701 = vcmask 1040384
        %vm702 = vcmask 1044484
        %vm703 = vmor %vm701, %vm702
        %v704 = vrot.slane %v653, 7
        %v705 = vrot.slane %v704, 4
        %v706 = vrot.slane %v655, 7
        %v707 = vsel %vm703, %v705, %v706
        %v708 = vrot.slane %v654, 7
        %v709 = vrot.slane %v708, 4
        %v710 = vrot.slane %v656, 7
        %v711 = vsel %vm703, %v709, %v710
        %v712 = vrot.slane %v706, 4
        %v713 = vrot.slane %v657, 7
        %v714 = vsel %vm703, %v712, %v713
        %v715 = vrot.slane %v710, 4
        %v716 = vrot.slane %v658, 7
        %v717 = vsel %vm703, %v715, %v716
        %v718 = vrot.slane %v713, 4
        %v719 = vrot.slane %v659, 7
        %v720 = vsel %vm703, %v718, %v719
        %v721 = vrot.slane %v716, 4
        %v722 = vrot.slane %v660, 7
        %v723 = vsel %vm703, %v721, %v722
        %v724 = vrot.slane %v661, 7
        %v725 = vrot.slane %v724, 4
        %v726 = vrot.slane %v663, 7
        %v727 = vsel %vm703, %v725, %v726
        %v728 = vrot.slane %v662, 7
        %v729 = vrot.slane %v728, 4
        %v730 = vrot.slane %v664, 7
        %v731 = vsel %vm703, %v729, %v730
        %v732 = vrot.slane %v726, 4
        %v733 = vrot.slane %v665, 7
        %v734 = vsel %vm703, %v732, %v733
        %v735 = vrot.slane %v730, 4
        %v736 = vrot.slane %v666, 7
        %v737 = vsel %vm703, %v735, %v736
        %v738 = vrot.slane %v733, 4
        %v739 = vrot.slane %v667, 7
        %v740 = vsel %vm703, %v738, %v739
        %v741 = vrot.slane %v736, 4
        %v742 = vrot.slane %v668, 7
        %v743 = vsel %vm703, %v741, %v742
        %v744 = vrot.slane %v669, 7
        %v745 = vrot.slane %v744, 4
        %v746 = vrot.slane %v671, 7
        %v747 = vsel %vm703, %v745, %v746
        %v748 = vrot.slane %v670, 7
        %v749 = vrot.slane %v748, 4
        %v750 = vrot.slane %v672, 7
        %v751 = vsel %vm703, %v749, %v750
        %v752 = vrot.slane %v746, 4
        %v753 = vrot.slane %v673, 7
        %v754 = vsel %vm703, %v752, %v753
        %v755 = vrot.slane %v750, 4
        %v756 = vrot.slane %v674, 7
        %v757 = vsel %vm703, %v755, %v756
        %v758 = vrot.slane %v753, 4
        %v759 = vrot.slane %v675, 7
        %v760 = vsel %vm703, %v758, %v759
        %v761 = vrot.slane %v756, 4
        %v762 = vrot.slane %v676, 7
        %v763 = vsel %vm703, %v761, %v762
        %v764 = vrot.slane %v677, 7
        %v765 = vrot.slane %v764, 4
        %v766 = vrot.slane %v679, 7
        %v767 = vsel %vm703, %v765, %v766
        %v768 = vrot.slane %v678, 7
        %v769 = vrot.slane %v768, 4
        %v770 = vrot.slane %v680, 7
        %v771 = vsel %vm703, %v769, %v770
        %v772 = vrot.slane %v766, 4
        %v773 = vrot.slane %v681, 7
        %v774 = vsel %vm703, %v772, %v773
        %v775 = vrot.slane %v770, 4
        %v776 = vrot.slane %v682, 7
        %v777 = vsel %vm703, %v775, %v776
        %v778 = vrot.slane %v773, 4
        %v779 = vrot.slane %v683, 7
        %v780 = vsel %vm703, %v778, %v779
        %v781 = vrot.slane %v776, 4
        %v782 = vrot.slane %v684, 7
        %v783 = vsel %vm703, %v781, %v782
        %v784 = vrot.slane %v685, 7
        %v785 = vrot.slane %v784, 4
        %v786 = vrot.slane %v687, 7
        %v787 = vsel %vm703, %v785, %v786
        %v788 = vrot.slane %v686, 7
        %v789 = vrot.slane %v788, 4
        %v790 = vrot.slane %v688, 7
        %v791 = vsel %vm703, %v789, %v790
        %v792 = vrot.slane %v786, 4
        %v793 = vrot.slane %v689, 7
        %v794 = vsel %vm703, %v792, %v793
        %v795 = vrot.slane %v790, 4
        %v796 = vrot.slane %v690, 7
        %v797 = vsel %vm703, %v795, %v796
        %v798 = vrot.slane %v793, 4
        %v799 = vrot.slane %v691, 7
        %v800 = vsel %vm703, %v798, %v799
        %v801 = vrot.slane %v796, 4
        %v802 = vrot.slane %v692, 7
        %v803 = vsel %vm703, %v801, %v802
        %v804 = vrot.slane %v693, 7
        %v805 = vrot.slane %v804, 4
        %v806 = vrot.slane %v695, 7
        %v807 = vsel %vm703, %v805, %v806
        %v808 = vrot.slane %v694, 7
        %v809 = vrot.slane %v808, 4
        %v810 = vrot.slane %v696, 7
        %v811 = vsel %vm703, %v809, %v810
        %v812 = vrot.slane %v806, 4
        %v813 = vrot.slane %v697, 7
        %v814 = vsel %vm703, %v812, %v813
        %v815 = vrot.slane %v810, 4
        %v816 = vrot.slane %v698, 7
        %v817 = vsel %vm703, %v815, %v816
        %v818 = vrot.slane %v813, 4
        %v819 = vrot.slane %v699, 7
        %v820 = vsel %vm703, %v818, %v819
        %v821 = vrot.slane %v816, 4
        %v822 = vrot.slane %v700, 7
        %v823 = vsel %vm703, %v821, %v822
        %v824 = vld [vmem:[#allocation7] sm:$0xf]
        %v825 = vld [vmem:[#allocation7 + $0x4] sm:$0xf]
        %v826 = vld [vmem:[#allocation7 + $0x8] sm:$0xf]
        %v827 = vld [vmem:[#allocation7 + $0xc] sm:$0xf]
        %v828 = vld [vmem:[#allocation7 + $0x10] sm:$0xf]
        %v829 = vld [vmem:[#allocation7 + $0x14] sm:$0xf]
        %v830 = vld [vmem:[#allocation7 + $0x18] sm:$0xf]
        %v831 = vld [vmem:[#allocation7 + $0x1c] sm:$0xf]
        %v832 = vld [vmem:[#allocation7 + $0x20] sm:$0xf]
        %v833 = vld [vmem:[#allocation7 + $0x24] sm:$0xf]
        %v834 = vld [vmem:[#allocation7 + $0x28] sm:$0xf]
        %v835 = vld [vmem:[#allocation7 + $0x2c] sm:$0xf]
        %v836 = vld [vmem:[#allocation7 + $0x30] sm:$0xf]
        %v837 = vld [vmem:[#allocation7 + $0x34] sm:$0xf]
        %v838 = vld [vmem:[#allocation7 + $0x38] sm:$0xf]
        %v839 = vld [vmem:[#allocation7 + $0x3c] sm:$0xf]
        %v840 = vld [vmem:[#allocation7 + $0x40] sm:$0xf]
        %v841 = vld [vmem:[#allocation7 + $0x44] sm:$0xf]
        %v842 = vld [vmem:[#allocation7 + $0x48] sm:$0xf]
        %v843 = vld [vmem:[#allocation7 + $0x4c] sm:$0xf]
        %v844 = vld [vmem:[#allocation7 + $0x50] sm:$0xf]
        %v845 = vld [vmem:[#allocation7 + $0x54] sm:$0xf]
        %v846 = vld [vmem:[#allocation7 + $0x58] sm:$0xf]
        %v847 = vld [vmem:[#allocation7 + $0x5c] sm:$0xf]
        %v848 = vld [vmem:[#allocation7 + $0x60] sm:$0xf]
        %v849 = vld [vmem:[#allocation7 + $0x64] sm:$0xf]
        %v850 = vld [vmem:[#allocation7 + $0x68] sm:$0xf]
        %v851 = vld [vmem:[#allocation7 + $0x6c] sm:$0xf]
        %v852 = vld [vmem:[#allocation7 + $0x70] sm:$0xf]
        %v853 = vld [vmem:[#allocation7 + $0x74] sm:$0xf]
        %v854 = vld [vmem:[#allocation7 + $0x78] sm:$0xf]
        %v855 = vld [vmem:[#allocation7 + $0x7c] sm:$0xf]
        %v856 = vld [vmem:[#allocation7 + $0x80] sm:$0xf]
        %v857 = vld [vmem:[#allocation7 + $0x84] sm:$0xf]
        %v858 = vld [vmem:[#allocation7 + $0x88] sm:$0xf]
        %v859 = vld [vmem:[#allocation7 + $0x8c] sm:$0xf]
        %v860 = vld [vmem:[#allocation7 + $0x90] sm:$0xf]
        %v861 = vld [vmem:[#allocation7 + $0x94] sm:$0xf]
        %v862 = vld [vmem:[#allocation7 + $0x98] sm:$0xf]
        %v863 = vld [vmem:[#allocation7 + $0x9c] sm:$0xf]
        %v864 = vld [vmem:[#allocation7 + $0xa0] sm:$0xf]
        %v865 = vld [vmem:[#allocation7 + $0xa4] sm:$0xf]
        %v866 = vld [vmem:[#allocation7 + $0xa8] sm:$0xf]
        %v867 = vld [vmem:[#allocation7 + $0xac] sm:$0xf]
        %v868 = vld [vmem:[#allocation7 + $0xb0] sm:$0xf]
        %v869 = vld [vmem:[#allocation7 + $0xb4] sm:$0xf]
        %v870 = vld [vmem:[#allocation7 + $0xb8] sm:$0xf]
        %v871 = vld [vmem:[#allocation7 + $0xbc] sm:$0xf]
        %v872 = vunpack.c.l.b16 %v415
        %v873 = vunpack.c.l.b16 %v521
        %v874 = vunpack.c.l.b16 %v577
        %v875 = vunpack.c.h.b16 %v415
        %v876 = vunpack.c.h.b16 %v521
        %v877 = vunpack.c.h.b16 %v577
        %v878 = vunpack.c.l.b16 %v416
        %v879 = vunpack.c.l.b16 %v524
        %v880 = vunpack.c.l.b16 %v576
        %v881 = vunpack.c.h.b16 %v416
        %v882 = vunpack.c.h.b16 %v524
        %v883 = vunpack.c.h.b16 %v576
        %v884 = vpack.c.b16 %v873, %v872
        %v885 = vpack.c.b16 %v874, %v874
        %v886 = vpack.c.b16 %v876, %v875
        %v887 = vpack.c.b16 %v877, %v877
        %v888 = vpack.c.b16 %v879, %v878
        %v889 = vpack.c.b16 %v880, %v880
        %v890 = vpack.c.b16 %v882, %v881
        %v891 = vpack.c.b16 %v883, %v883
        %v892 = vrot.slane %v884, 7
        %v893 = vrot.slane %v892, 4
        %v894 = vrot.slane %v886, 7
        %v895 = vsel %vm703, %v893, %v894
        %v896 = vrot.slane %v885, 7
        %v897 = vrot.slane %v896, 4
        %v898 = vrot.slane %v887, 7
        %v899 = vsel %vm703, %v897, %v898
        %v900 = vrot.slane %v894, 4
        %v901 = vrot.slane %v888, 7
        %v902 = vsel %vm703, %v900, %v901
        %v903 = vrot.slane %v898, 4
        %v904 = vrot.slane %v889, 7
        %v905 = vsel %vm703, %v903, %v904
        %v906 = vrot.slane %v901, 4
        %v907 = vrot.slane %v890, 7
        %v908 = vsel %vm703, %v906, %v907
        %v909 = vrot.slane %v904, 4
        %v910 = vrot.slane %v891, 7
        %v911 = vsel %vm703, %v909, %v910
        %s912 = scalar_lea.vmem [#allocation7], 192
        %v913 = vld [vmem:[%s912] sm:$0xf]
        %v914 = vld [vmem:[%s912 + $0x4] sm:$0xf]
        %v915 = vld [vmem:[%s912 + $0x8] sm:$0xf]
        %v916 = vld [vmem:[%s912 + $0xc] sm:$0xf]
        %v917 = vld [vmem:[%s912 + $0x10] sm:$0xf]
        %v918 = vld [vmem:[%s912 + $0x14] sm:$0xf]
        %v919 = vld [vmem:[%s912 + $0x18] sm:$0xf]
        %v920 = vld [vmem:[%s912 + $0x1c] sm:$0xf]
        %v921 = vld [vmem:[%s912 + $0x20] sm:$0xf]
        %v922 = vld [vmem:[%s912 + $0x24] sm:$0xf]
        %v923 = vld [vmem:[%s912 + $0x28] sm:$0xf]
        %v924 = vld [vmem:[%s912 + $0x2c] sm:$0xf]
        %v925 = vld [vmem:[%s912 + $0x30] sm:$0xf]
        %v926 = vld [vmem:[%s912 + $0x34] sm:$0xf]
        %v927 = vld [vmem:[%s912 + $0x38] sm:$0xf]
        %v928 = vld [vmem:[%s912 + $0x3c] sm:$0xf]
        %v929 = vld [vmem:[%s912 + $0x40] sm:$0xf]
        %v930 = vld [vmem:[%s912 + $0x44] sm:$0xf]
        %v931 = vld [vmem:[%s912 + $0x48] sm:$0xf]
        %v932 = vld [vmem:[%s912 + $0x4c] sm:$0xf]
        %v933 = vld [vmem:[%s912 + $0x50] sm:$0xf]
        %v934 = vld [vmem:[%s912 + $0x54] sm:$0xf]
        %v935 = vld [vmem:[%s912 + $0x58] sm:$0xf]
        %v936 = vld [vmem:[%s912 + $0x5c] sm:$0xf]
        %v937 = vld [vmem:[%s912 + $0x60] sm:$0xf]
        %v938 = vld [vmem:[%s912 + $0x64] sm:$0xf]
        %v939 = vld [vmem:[%s912 + $0x68] sm:$0xf]
        %v940 = vld [vmem:[%s912 + $0x6c] sm:$0xf]
        %v941 = vld [vmem:[%s912 + $0x70] sm:$0xf]
        %v942 = vld [vmem:[%s912 + $0x74] sm:$0xf]
        %v943 = vld [vmem:[%s912 + $0x78] sm:$0xf]
        %v944 = vld [vmem:[%s912 + $0x7c] sm:$0xf]
        %v945 = vld [vmem:[%s912 + $0x80] sm:$0xf]
        %v946 = vld [vmem:[%s912 + $0x84] sm:$0xf]
        %v947 = vld [vmem:[%s912 + $0x88] sm:$0xf]
        %v948 = vld [vmem:[%s912 + $0x8c] sm:$0xf]
        %v949 = vld [vmem:[%s912 + $0x90] sm:$0xf]
        %v950 = vld [vmem:[%s912 + $0x94] sm:$0xf]
        %v951 = vld [vmem:[%s912 + $0x98] sm:$0xf]
        %v952 = vld [vmem:[%s912 + $0x9c] sm:$0xf]
        %v953 = vld [vmem:[%s912 + $0xa0] sm:$0xf]
        %v954 = vld [vmem:[%s912 + $0xa4] sm:$0xf]
        %v955 = vld [vmem:[%s912 + $0xa8] sm:$0xf]
        %v956 = vld [vmem:[%s912 + $0xac] sm:$0xf]
        %v957 = vld [vmem:[%s912 + $0xb0] sm:$0xf]
        %v958 = vld [vmem:[%s912 + $0xb4] sm:$0xf]
        %v959 = vld [vmem:[%s912 + $0xb8] sm:$0xf]
        %v960 = vld [vmem:[%s912 + $0xbc] sm:$0xf]
        %v961 = vunpack.c.l.b16 %v727
        %v962 = vunpack.c.h.b16 %v727
        %v963 = vunpack.c.l.b16 %v731
        %v964 = vunpack.c.l.b16 %v734
        %v965 = vunpack.c.h.b16 %v734
        %v966 = vunpack.c.l.b16 %v737
        %v967 = vunpack.c.l.b16 %v740
        %v968 = vunpack.c.h.b16 %v740
        %v969 = vunpack.c.l.b16 %v743
        %v970 = vunpack.c.l.b16 %v747
        %v971 = vunpack.c.h.b16 %v747
        %v972 = vunpack.c.l.b16 %v751
        %v973 = vunpack.c.l.b16 %v754
        %v974 = vunpack.c.h.b16 %v754
        %v975 = vunpack.c.l.b16 %v757
        %v976 = vunpack.c.l.b16 %v760
        %v977 = vunpack.c.h.b16 %v760
        %v978 = vunpack.c.l.b16 %v763
        %v979 = vunpack.c.l.b16 %v767
        %v980 = vunpack.c.h.b16 %v767
        %v981 = vunpack.c.l.b16 %v771
        %v982 = vunpack.c.l.b16 %v774
        %v983 = vunpack.c.h.b16 %v774
        %v984 = vunpack.c.l.b16 %v777
        %v985 = vunpack.c.l.b16 %v780
        %v986 = vunpack.c.h.b16 %v780
        %v987 = vunpack.c.l.b16 %v783
        %v988 = vunpack.c.l.b16 %v787
        %v989 = vunpack.c.h.b16 %v787
        %v990 = vunpack.c.l.b16 %v791
        %v991 = vunpack.c.l.b16 %v794
        %v992 = vunpack.c.h.b16 %v794
        %v993 = vunpack.c.l.b16 %v797
        %v994 = vunpack.c.l.b16 %v800
        %v995 = vunpack.c.h.b16 %v800
        %v996 = vunpack.c.l.b16 %v803
        %v997 = vunpack.c.l.b16 %v807
        %v998 = vunpack.c.h.b16 %v807
        %v999 = vunpack.c.l.b16 %v811
        %v1000 = vunpack.c.l.b16 %v814
        %v1001 = vunpack.c.h.b16 %v814
        %v1002 = vunpack.c.l.b16 %v817
        %v1003 = vunpack.c.l.b16 %v820
        %v1004 = vunpack.c.h.b16 %v820
        %v1005 = vunpack.c.l.b16 %v823
        %v1006 = vunpack.c.l.b16 %v895
        %v1007 = vunpack.c.h.b16 %v895
        %v1008 = vunpack.c.l.b16 %v899
        %v1009 = vunpack.c.l.b16 %v902
        %v1010 = vunpack.c.h.b16 %v902
        %v1011 = vunpack.c.l.b16 %v905
        %v1012 = vunpack.c.l.b16 %v908
        %v1013 = vunpack.c.h.b16 %v908
        %v1014 = vunpack.c.l.b16 %v911
        %v1015 = vpack.c.b16 %v964, %v961
        %v1016 = vpack.c.b16 %v965, %v962
        %v1017 = vpack.c.b16 %v966, %v963
        %v1018 = vpack.c.b16 %v970, %v967
        %v1019 = vpack.c.b16 %v971, %v968
        %v1020 = vpack.c.b16 %v972, %v969
        %v1021 = vpack.c.b16 %v976, %v973
        %v1022 = vpack.c.b16 %v977, %v974
        %v1023 = vpack.c.b16 %v978, %v975
        %v1024 = vpack.c.b16 %v982, %v979
        %v1025 = vpack.c.b16 %v983, %v980
        %v1026 = vpack.c.b16 %v984, %v981
        %v1027 = vpack.c.b16 %v988, %v985
        %v1028 = vpack.c.b16 %v989, %v986
        %v1029 = vpack.c.b16 %v990, %v987
        %v1030 = vpack.c.b16 %v994, %v991
        %v1031 = vpack.c.b16 %v995, %v992
        %v1032 = vpack.c.b16 %v996, %v993
        %v1033 = vpack.c.b16 %v1000, %v997
        %v1034 = vpack.c.b16 %v1001, %v998
        %v1035 = vpack.c.b16 %v1002, %v999
        %v1036 = vpack.c.b16 %v1006, %v1003
        %v1037 = vpack.c.b16 %v1007, %v1004
        %v1038 = vpack.c.b16 %v1008, %v1005
        %v1039 = vpack.c.b16 %v1012, %v1009
        %v1040 = vpack.c.b16 %v1013, %v1010
        %v1041 = vpack.c.b16 %v1014, %v1011
        %v1117 = vunpack.c.l.b16 %v913
        %v1118 = vunpack.c.l.b16 %v914
        %v1119 = vunpack.c.l.b16 %v915
        %v1120 = vunpack.c.l.b16 %v916
        %v1121 = vunpack.c.l.b16 %v917
        %v1122 = vunpack.c.l.b16 %v918
        %v1123 = vunpack.c.l.b16 %v919
        %v1124 = vunpack.c.l.b16 %v920
        %v1125 = vunpack.c.l.b16 %v921
        %v1126 = vunpack.c.l.b16 %v922
        %v1127 = vunpack.c.l.b16 %v923
        %v1128 = vunpack.c.l.b16 %v924
        %v1129 = vunpack.c.l.b16 %v925
        %v1130 = vunpack.c.l.b16 %v926
        %v1131 = vunpack.c.l.b16 %v927
        %v1132 = vunpack.c.l.b16 %v928
        %v1133 = vunpack.c.l.b16 %v929
        %v1134 = vunpack.c.l.b16 %v930
        %v1135 = vunpack.c.l.b16 %v931
        %v1136 = vunpack.c.l.b16 %v932
        %v1137 = vunpack.c.l.b16 %v933
        %v1138 = vunpack.c.l.b16 %v934
        %v1139 = vunpack.c.l.b16 %v935
        %v1140 = vunpack.c.l.b16 %v936
        %v1141 = vunpack.c.l.b16 %v937
        %v1142 = vunpack.c.l.b16 %v938
        %v1143 = vunpack.c.l.b16 %v939
        %v1144 = vunpack.c.l.b16 %v940
        %v1145 = vunpack.c.l.b16 %v941
        %v1146 = vunpack.c.l.b16 %v942
        %v1147 = vunpack.c.l.b16 %v943
        %v1148 = vunpack.c.l.b16 %v944
        %v1149 = vunpack.c.l.b16 %v945
        %v1150 = vunpack.c.l.b16 %v946
        %v1151 = vunpack.c.l.b16 %v947
        %v1152 = vunpack.c.l.b16 %v948
        %v1153 = vunpack.c.l.b16 %v949
        %v1154 = vunpack.c.l.b16 %v950
        %v1155 = vunpack.c.l.b16 %v951
        %v1156 = vunpack.c.l.b16 %v952
        %v1157 = vunpack.c.l.b16 %v953
        %v1158 = vunpack.c.l.b16 %v954
        %v1159 = vunpack.c.l.b16 %v955
        %v1160 = vunpack.c.l.b16 %v956
        %v1161 = vunpack.c.l.b16 %v957
        %v1162 = vunpack.c.l.b16 %v958
        %v1163 = vunpack.c.l.b16 %v959
        %v1164 = vunpack.c.l.b16 %v960
        %v1165 = vpack.c.b16 %v1118, %v1117
        %v1166 = vpack.c.b16 %v1120, %v1119
        %v1167 = vpack.c.b16 %v1122, %v1121
        %v1168 = vpack.c.b16 %v1124, %v1123
        %v1169 = vpack.c.b16 %v1126, %v1125
        %v1170 = vpack.c.b16 %v1128, %v1127
        %v1171 = vpack.c.b16 %v1130, %v1129
        %v1172 = vpack.c.b16 %v1132, %v1131
        %v1173 = vpack.c.b16 %v1134, %v1133
        %v1174 = vpack.c.b16 %v1136, %v1135
        %v1175 = vpack.c.b16 %v1138, %v1137
        %v1176 = vpack.c.b16 %v1140, %v1139
        %v1177 = vpack.c.b16 %v1142, %v1141
        %v1178 = vpack.c.b16 %v1144, %v1143
        %v1179 = vpack.c.b16 %v1146, %v1145
        %v1180 = vpack.c.b16 %v1148, %v1147
        %v1181 = vpack.c.b16 %v1150, %v1149
        %v1182 = vpack.c.b16 %v1152, %v1151
        %v1183 = vpack.c.b16 %v1154, %v1153
        %v1184 = vpack.c.b16 %v1156, %v1155
        %v1185 = vpack.c.b16 %v1158, %v1157
        %v1186 = vpack.c.b16 %v1160, %v1159
        %v1187 = vpack.c.b16 %v1162, %v1161
        %v1188 = vpack.c.b16 %v1164, %v1163
        %1213 = vmatprep.subr.bf16.mxu0 0
        %1214 = vmatpush1.bf16.msra.mxu0 %v1172
        %1215 = vmatprep.subr.bf16.mxu0 0
        %1216 = vmatpush1.bf16.msra.mxu0 %v1171
        %1217 = vmatprep.subr.bf16.mxu0 0
        %1218 = vmatpush1.bf16.msra.mxu0 %v1170
        %1219 = vmatprep.subr.bf16.mxu0 0
        %1220 = vmatpush1.bf16.msra.mxu0 %v1169
        %1221 = vmatprep.subr.bf16.mxu0 0
        %1222 = vmatpush1.bf16.msra.mxu0 %v1168
        %1223 = vmatprep.subr.bf16.mxu0 0
        %1224 = vmatpush1.bf16.msra.mxu0 %v1167
        %1225 = vmatprep.subr.bf16.mxu0 0
        %1226 = vmatpush1.bf16.msra.mxu0 %v1166
        %1227 = vmatprep.subr.bf16.mxu0 0
        %1228 = vmatpush1.bf16.msra.mxu0 %v1165
        %1229 = vmatprep.subr.bf16.mxu0 0
        %1230 = vmatpush2.bf16.msra.mxu0 %v1180
        %1231 = vmatprep.subr.bf16.mxu0 0
        %1232 = vmatpush2.bf16.msra.mxu0 %v1179
        %1233 = vmatprep.subr.bf16.mxu0 0
        %1234 = vmatpush2.bf16.msra.mxu0 %v1178
        %1235 = vmatprep.subr.bf16.mxu0 0
        %1236 = vmatpush2.bf16.msra.mxu0 %v1177
        %1237 = vmatprep.subr.bf16.mxu0 0
        %1238 = vmatpush2.bf16.msra.mxu0 %v1176
        %1239 = vmatprep.subr.bf16.mxu0 0
        %1240 = vmatpush2.bf16.msra.mxu0 %v1175
        %1241 = vmatprep.subr.bf16.mxu0 0
        %1242 = vmatpush2.bf16.msra.mxu0 %v1174
        %1243 = vmatprep.subr.bf16.mxu0 0
        %1244 = vmatpush2.bf16.msra.mxu0 %v1173
        %1245 = vmatprep.mubr.bf16.mxu0 %v1016
        %1246 = vmatmul.mubr.bf16.gmra.mxu0 %v1015
        %v1247 = vpop.f32.mrf.mxu0
        %v1248 = vadd.f32 0.0, %v1247
        %v1249 = vpop.f32.mrf.mxu0
        %v1250 = vpop.f32.mrf.mxu0
        %v1251 = vadd.f32 0.0, %v1250
        %v1252 = vpop.f32.mrf.mxu0
        %1253 = vmatprep.mubr.bf16.mxu0 %v1019
        %1254 = vmatmul.mubr.bf16.gmra.mxu0 %v1018
        %v1255 = vpop.f32.mrf.mxu0
        %v1256 = vadd.f32 0.0, %v1255
        %v1257 = vpop.f32.mrf.mxu0
        %v1258 = vpop.f32.mrf.mxu0
        %v1259 = vadd.f32 0.0, %v1258
        %v1260 = vpop.f32.mrf.mxu0
        %1261 = vmatprep.mubr.bf16.mxu0 %v1022
        %1262 = vmatmul.mubr.bf16.gmra.mxu0 %v1021
        %v1263 = vpop.f32.mrf.mxu0
        %v1264 = vadd.f32 0.0, %v1263
        %v1265 = vpop.f32.mrf.mxu0
        %v1266 = vpop.f32.mrf.mxu0
        %v1267 = vadd.f32 0.0, %v1266
        %v1268 = vpop.f32.mrf.mxu0
        %1269 = vmatprep.mubr.bf16.mxu0 %v1025
        %1270 = vmatmul.mubr.bf16.gmra.mxu0 %v1024
        %v1271 = vpop.f32.mrf.mxu0
        %v1272 = vadd.f32 0.0, %v1271
        %v1273 = vpop.f32.mrf.mxu0
        %v1274 = vpop.f32.mrf.mxu0
        %v1275 = vadd.f32 0.0, %v1274
        %v1276 = vpop.f32.mrf.mxu0
        %1277 = vmatprep.mubr.bf16.mxu0 %v1028
        %1278 = vmatmul.mubr.bf16.gmra.mxu0 %v1027
        %v1279 = vpop.f32.mrf.mxu0
        %v1280 = vadd.f32 0.0, %v1279
        %v1281 = vpop.f32.mrf.mxu0
        %v1282 = vpop.f32.mrf.mxu0
        %v1283 = vadd.f32 0.0, %v1282
        %v1284 = vpop.f32.mrf.mxu0
        %1285 = vmatprep.mubr.bf16.mxu0 %v1031
        %1286 = vmatmul.mubr.bf16.gmra.mxu0 %v1030
        %v1287 = vpop.f32.mrf.mxu0
        %v1288 = vadd.f32 0.0, %v1287
        %v1289 = vpop.f32.mrf.mxu0
        %v1290 = vpop.f32.mrf.mxu0
        %v1291 = vadd.f32 0.0, %v1290
        %v1292 = vpop.f32.mrf.mxu0
        %1293 = vmatprep.mubr.bf16.mxu0 %v1034
        %1294 = vmatmul.mubr.bf16.gmra.mxu0 %v1033
        %v1295 = vpop.f32.mrf.mxu0
        %v1296 = vadd.f32 0.0, %v1295
        %v1297 = vpop.f32.mrf.mxu0
        %v1298 = vpop.f32.mrf.mxu0
        %v1299 = vadd.f32 0.0, %v1298
        %v1300 = vpop.f32.mrf.mxu0
        %1301 = vmatprep.mubr.bf16.mxu0 %v1037
        %1302 = vmatmul.mubr.bf16.gmra.mxu0 %v1036
        %v1303 = vpop.f32.mrf.mxu0
        %v1304 = vadd.f32 0.0, %v1303
        %v1305 = vpop.f32.mrf.mxu0
        %v1306 = vpop.f32.mrf.mxu0
        %v1307 = vadd.f32 0.0, %v1306
        %v1308 = vpop.f32.mrf.mxu0
        %1309 = vmatprep.mubr.bf16.mxu0 %v1040
        %1310 = vmatmul.mubr.bf16.gmra.mxu0 %v1039
        %v1311 = vpop.f32.mrf.mxu0
        %v1312 = vadd.f32 0.0, %v1311
        %v1313 = vpop.f32.mrf.mxu0
        %v1314 = vpop.f32.mrf.mxu0
        %v1315 = vadd.f32 0.0, %v1314
        %v1316 = vpop.f32.mrf.mxu0
        %1317 = vdwg.mxu0
        %1318 = vmatprep.subr.bf16.mxu0 0
        %1319 = vmatpush1.bf16.msra.mxu0 %v1188
        %1320 = vmatprep.subr.bf16.mxu0 0
        %1321 = vmatpush1.bf16.msra.mxu0 %v1187
        %1322 = vmatprep.subr.bf16.mxu0 0
        %1323 = vmatpush1.bf16.msra.mxu0 %v1186
        %1324 = vmatprep.subr.bf16.mxu0 0
        %1325 = vmatpush1.bf16.msra.mxu0 %v1185
        %1326 = vmatprep.subr.bf16.mxu0 0
        %1327 = vmatpush1.bf16.msra.mxu0 %v1184
        %1328 = vmatprep.subr.bf16.mxu0 0
        %1329 = vmatpush1.bf16.msra.mxu0 %v1183
        %1330 = vmatprep.subr.bf16.mxu0 0
        %1331 = vmatpush1.bf16.msra.mxu0 %v1182
        %1332 = vmatprep.subr.bf16.mxu0 0
        %1333 = vmatpush1.bf16.msra.mxu0 %v1181
        %1334 = vmatprep.subr.bf16.mxu0 0
        %1335 = vmatpush2.bf16.msra.mxu0 0
        %1336 = vmatprep.subr.bf16.mxu0 0
        %1337 = vmatpush2.bf16.msra.mxu0 0
        %1338 = vmatprep.subr.bf16.mxu0 0
        %1339 = vmatpush2.bf16.msra.mxu0 0
        %1340 = vmatprep.subr.bf16.mxu0 0
        %1341 = vmatpush2.bf16.msra.mxu0 0
        %1342 = vmatprep.subr.bf16.mxu0 0
        %1343 = vmatpush2.bf16.msra.mxu0 0
        %1344 = vmatprep.subr.bf16.mxu0 0
        %1345 = vmatpush2.bf16.msra.mxu0 0
        %1346 = vmatprep.subr.bf16.mxu0 0
        %1347 = vmatpush2.bf16.msra.mxu0 0
        %1348 = vmatprep.subr.bf16.mxu0 0
        %1349 = vmatpush2.bf16.msra.mxu0 0
        %1350 = vmatprep.mubr.bf16.mxu0 0
        %1351 = vmatmul.mubr.bf16.gmra.mxu0 %v1017
        %v1352 = vpop.f32.mrf.mxu0
        %v1353 = vadd.f32 %v1248, %v1352
        %v1354 = vpop.f32.mrf.mxu0
        %v1355 = vpop.f32.mrf.mxu0
        %v1356 = vadd.f32 %v1251, %v1355
        %v1357 = vpop.f32.mrf.mxu0
        %1358 = vmatprep.mubr.bf16.mxu0 0
        %1359 = vmatmul.mubr.bf16.gmra.mxu0 %v1020
        %v1360 = vpop.f32.mrf.mxu0
        %v1361 = vadd.f32 %v1256, %v1360
        %v1362 = vpop.f32.mrf.mxu0
        %v1363 = vpop.f32.mrf.mxu0
        %v1364 = vadd.f32 %v1259, %v1363
        %v1365 = vpop.f32.mrf.mxu0
        %1366 = vmatprep.mubr.bf16.mxu0 0
        %1367 = vmatmul.mubr.bf16.gmra.mxu0 %v1023
        %v1368 = vpop.f32.mrf.mxu0
        %v1369 = vadd.f32 %v1264, %v1368
        %v1370 = vpop.f32.mrf.mxu0
        %v1371 = vpop.f32.mrf.mxu0
        %v1372 = vadd.f32 %v1267, %v1371
        %v1373 = vpop.f32.mrf.mxu0
        %1374 = vmatprep.mubr.bf16.mxu0 0
        %1375 = vmatmul.mubr.bf16.gmra.mxu0 %v1026
        %v1376 = vpop.f32.mrf.mxu0
        %v1377 = vadd.f32 %v1272, %v1376
        %v1378 = vpop.f32.mrf.mxu0
        %v1379 = vpop.f32.mrf.mxu0
        %v1380 = vadd.f32 %v1275, %v1379
        %v1381 = vpop.f32.mrf.mxu0
        %1382 = vmatprep.mubr.bf16.mxu0 0
        %1383 = vmatmul.mubr.bf16.gmra.mxu0 %v1029
        %v1384 = vpop.f32.mrf.mxu0
        %v1385 = vadd.f32 %v1280, %v1384
        %v1386 = vpop.f32.mrf.mxu0
        %v1387 = vpop.f32.mrf.mxu0
        %v1388 = vadd.f32 %v1283, %v1387
        %v1389 = vpop.f32.mrf.mxu0
        %1390 = vmatprep.mubr.bf16.mxu0 0
        %1391 = vmatmul.mubr.bf16.gmra.mxu0 %v1032
        %v1392 = vpop.f32.mrf.mxu0
        %v1393 = vadd.f32 %v1288, %v1392
        %v1394 = vpop.f32.mrf.mxu0
        %v1395 = vpop.f32.mrf.mxu0
        %v1396 = vadd.f32 %v1291, %v1395
        %v1397 = vpop.f32.mrf.mxu0
        %1398 = vmatprep.mubr.bf16.mxu0 0
        %1399 = vmatmul.mubr.bf16.gmra.mxu0 %v1035
        %v1400 = vpop.f32.mrf.mxu0
        %v1401 = vadd.f32 %v1296, %v1400
        %v1402 = vpop.f32.mrf.mxu0
        %v1403 = vpop.f32.mrf.mxu0
        %v1404 = vadd.f32 %v1299, %v1403
        %v1405 = vpop.f32.mrf.mxu0
        %1406 = vmatprep.mubr.bf16.mxu0 0
        %1407 = vmatmul.mubr.bf16.gmra.mxu0 %v1038
        %v1408 = vpop.f32.mrf.mxu0
        %v1409 = vadd.f32 %v1304, %v1408
        %v1410 = vpop.f32.mrf.mxu0
        %v1411 = vpop.f32.mrf.mxu0
        %v1412 = vadd.f32 %v1307, %v1411
        %v1413 = vpop.f32.mrf.mxu0
        %1414 = vmatprep.mubr.bf16.mxu0 0
        %1415 = vmatmul.mubr.bf16.gmra.mxu0 %v1041
        %v1416 = vpop.f32.mrf.mxu0
        %v1417 = vadd.f32 %v1312, %v1416
        %v1418 = vpop.f32.mrf.mxu0
        %v1419 = vpop.f32.mrf.mxu0
        %v1420 = vadd.f32 %v1315, %v1419
        %v1421 = vpop.f32.mrf.mxu0
        %1422 = vdwg.mxu0
        %v1423 = vunpack.c.l.b16 %v707
        %v1424 = vunpack.c.h.b16 %v707
        %v1425 = vunpack.c.l.b16 %v711
        %v1426 = vunpack.c.l.b16 %v714
        %v1427 = vunpack.c.h.b16 %v714
        %v1428 = vunpack.c.l.b16 %v717
        %v1429 = vunpack.c.l.b16 %v720
        %v1430 = vunpack.c.h.b16 %v720
        %v1431 = vunpack.c.l.b16 %v723
        %v1432 = vpack.c.b16 %v1426, %v1423
        %v1433 = vpack.c.b16 %v1427, %v1424
        %v1434 = vpack.c.b16 %v1428, %v1425
        %v1435 = vpack.c.b16 %v961, %v1429
        %v1436 = vpack.c.b16 %v962, %v1430
        %v1437 = vpack.c.b16 %v963, %v1431
        %v1438 = vpack.c.b16 %v967, %v964
        %v1439 = vpack.c.b16 %v968, %v965
        %v1440 = vpack.c.b16 %v969, %v966
        %v1441 = vpack.c.b16 %v973, %v970
        %v1442 = vpack.c.b16 %v974, %v971
        %v1443 = vpack.c.b16 %v975, %v972
        %v1444 = vpack.c.b16 %v979, %v976
        %v1445 = vpack.c.b16 %v980, %v977
        %v1446 = vpack.c.b16 %v981, %v978
        %v1447 = vpack.c.b16 %v985, %v982
        %v1448 = vpack.c.b16 %v986, %v983
        %v1449 = vpack.c.b16 %v987, %v984
        %v1450 = vpack.c.b16 %v991, %v988
        %v1451 = vpack.c.b16 %v992, %v989
        %v1452 = vpack.c.b16 %v993, %v990
        %v1453 = vpack.c.b16 %v997, %v994
        %v1454 = vpack.c.b16 %v998, %v995
        %v1455 = vpack.c.b16 %v999, %v996
        %v1456 = vpack.c.b16 %v1003, %v1000
        %v1457 = vpack.c.b16 %v1004, %v1001
        %v1458 = vpack.c.b16 %v1005, %v1002
        %v1534 = vunpack.c.l.b16 %v824
        %v1535 = vunpack.c.l.b16 %v825
        %v1536 = vunpack.c.l.b16 %v826
        %v1537 = vunpack.c.l.b16 %v827
        %v1538 = vunpack.c.l.b16 %v828
        %v1539 = vunpack.c.l.b16 %v829
        %v1540 = vunpack.c.l.b16 %v830
        %v1541 = vunpack.c.l.b16 %v831
        %v1542 = vunpack.c.l.b16 %v832
        %v1543 = vunpack.c.l.b16 %v833
        %v1544 = vunpack.c.l.b16 %v834
        %v1545 = vunpack.c.l.b16 %v835
        %v1546 = vunpack.c.l.b16 %v836
        %v1547 = vunpack.c.l.b16 %v837
        %v1548 = vunpack.c.l.b16 %v838
        %v1549 = vunpack.c.l.b16 %v839
        %v1550 = vunpack.c.l.b16 %v840
        %v1551 = vunpack.c.l.b16 %v841
        %v1552 = vunpack.c.l.b16 %v842
        %v1553 = vunpack.c.l.b16 %v843
        %v1554 = vunpack.c.l.b16 %v844
        %v1555 = vunpack.c.l.b16 %v845
        %v1556 = vunpack.c.l.b16 %v846
        %v1557 = vunpack.c.l.b16 %v847
        %v1558 = vunpack.c.l.b16 %v848
        %v1559 = vunpack.c.l.b16 %v849
        %v1560 = vunpack.c.l.b16 %v850
        %v1561 = vunpack.c.l.b16 %v851
        %v1562 = vunpack.c.l.b16 %v852
        %v1563 = vunpack.c.l.b16 %v853
        %v1564 = vunpack.c.l.b16 %v854
        %v1565 = vunpack.c.l.b16 %v855
        %v1566 = vunpack.c.l.b16 %v856
        %v1567 = vunpack.c.l.b16 %v857
        %v1568 = vunpack.c.l.b16 %v858
        %v1569 = vunpack.c.l.b16 %v859
        %v1570 = vunpack.c.l.b16 %v860
        %v1571 = vunpack.c.l.b16 %v861
        %v1572 = vunpack.c.l.b16 %v862
        %v1573 = vunpack.c.l.b16 %v863
        %v1574 = vunpack.c.l.b16 %v864
        %v1575 = vunpack.c.l.b16 %v865
        %v1576 = vunpack.c.l.b16 %v866
        %v1577 = vunpack.c.l.b16 %v867
        %v1578 = vunpack.c.l.b16 %v868
        %v1579 = vunpack.c.l.b16 %v869
        %v1580 = vunpack.c.l.b16 %v870
        %v1581 = vunpack.c.l.b16 %v871
        %v1582 = vpack.c.b16 %v1535, %v1534
        %v1583 = vpack.c.b16 %v1537, %v1536
        %v1584 = vpack.c.b16 %v1539, %v1538
        %v1585 = vpack.c.b16 %v1541, %v1540
        %v1586 = vpack.c.b16 %v1543, %v1542
        %v1587 = vpack.c.b16 %v1545, %v1544
        %v1588 = vpack.c.b16 %v1547, %v1546
        %v1589 = vpack.c.b16 %v1549, %v1548
        %v1590 = vpack.c.b16 %v1551, %v1550
        %v1591 = vpack.c.b16 %v1553, %v1552
        %v1592 = vpack.c.b16 %v1555, %v1554
        %v1593 = vpack.c.b16 %v1557, %v1556
        %v1594 = vpack.c.b16 %v1559, %v1558
        %v1595 = vpack.c.b16 %v1561, %v1560
        %v1596 = vpack.c.b16 %v1563, %v1562
        %v1597 = vpack.c.b16 %v1565, %v1564
        %v1598 = vpack.c.b16 %v1567, %v1566
        %v1599 = vpack.c.b16 %v1569, %v1568
        %v1600 = vpack.c.b16 %v1571, %v1570
        %v1601 = vpack.c.b16 %v1573, %v1572
        %v1602 = vpack.c.b16 %v1575, %v1574
        %v1603 = vpack.c.b16 %v1577, %v1576
        %v1604 = vpack.c.b16 %v1579, %v1578
        %v1605 = vpack.c.b16 %v1581, %v1580
        %1630 = vmatprep.subr.bf16.mxu0 0
        %1631 = vmatpush1.bf16.msra.mxu0 %v1589
        %1632 = vmatprep.subr.bf16.mxu0 0
        %1633 = vmatpush1.bf16.msra.mxu0 %v1588
        %1634 = vmatprep.subr.bf16.mxu0 0
        %1635 = vmatpush1.bf16.msra.mxu0 %v1587
        %1636 = vmatprep.subr.bf16.mxu0 0
        %1637 = vmatpush1.bf16.msra.mxu0 %v1586
        %1638 = vmatprep.subr.bf16.mxu0 0
        %1639 = vmatpush1.bf16.msra.mxu0 %v1585
        %1640 = vmatprep.subr.bf16.mxu0 0
        %1641 = vmatpush1.bf16.msra.mxu0 %v1584
        %1642 = vmatprep.subr.bf16.mxu0 0
        %1643 = vmatpush1.bf16.msra.mxu0 %v1583
        %1644 = vmatprep.subr.bf16.mxu0 0
        %1645 = vmatpush1.bf16.msra.mxu0 %v1582
        %1646 = vmatprep.subr.bf16.mxu0 0
        %1647 = vmatpush2.bf16.msra.mxu0 %v1597
        %1648 = vmatprep.subr.bf16.mxu0 0
        %1649 = vmatpush2.bf16.msra.mxu0 %v1596
        %1650 = vmatprep.subr.bf16.mxu0 0
        %1651 = vmatpush2.bf16.msra.mxu0 %v1595
        %1652 = vmatprep.subr.bf16.mxu0 0
        %1653 = vmatpush2.bf16.msra.mxu0 %v1594
        %1654 = vmatprep.subr.bf16.mxu0 0
        %1655 = vmatpush2.bf16.msra.mxu0 %v1593
        %1656 = vmatprep.subr.bf16.mxu0 0
        %1657 = vmatpush2.bf16.msra.mxu0 %v1592
        %1658 = vmatprep.subr.bf16.mxu0 0
        %1659 = vmatpush2.bf16.msra.mxu0 %v1591
        %1660 = vmatprep.subr.bf16.mxu0 0
        %1661 = vmatpush2.bf16.msra.mxu0 %v1590
        %1662 = vmatprep.mubr.bf16.mxu0 %v1433
        %1663 = vmatmul.mubr.bf16.gmra.mxu0 %v1432
        %v1664 = vpop.f32.mrf.mxu0
        %v1665 = vadd.f32 %v1353, %v1664
        %v1666 = vpop.f32.mrf.mxu0
        %v1667 = vpop.f32.mrf.mxu0
        %v1668 = vadd.f32 %v1356, %v1667
        %v1669 = vpop.f32.mrf.mxu0
        %1670 = vmatprep.mubr.bf16.mxu0 %v1436
        %1671 = vmatmul.mubr.bf16.gmra.mxu0 %v1435
        %v1672 = vpop.f32.mrf.mxu0
        %v1673 = vadd.f32 %v1361, %v1672
        %v1674 = vpop.f32.mrf.mxu0
        %v1675 = vpop.f32.mrf.mxu0
        %v1676 = vadd.f32 %v1364, %v1675
        %v1677 = vpop.f32.mrf.mxu0
        %1678 = vmatprep.mubr.bf16.mxu0 %v1439
        %1679 = vmatmul.mubr.bf16.gmra.mxu0 %v1438
        %v1680 = vpop.f32.mrf.mxu0
        %v1681 = vadd.f32 %v1369, %v1680
        %v1682 = vpop.f32.mrf.mxu0
        %v1683 = vpop.f32.mrf.mxu0
        %v1684 = vadd.f32 %v1372, %v1683
        %v1685 = vpop.f32.mrf.mxu0
        %1686 = vmatprep.mubr.bf16.mxu0 %v1442
        %1687 = vmatmul.mubr.bf16.gmra.mxu0 %v1441
        %v1688 = vpop.f32.mrf.mxu0
        %v1689 = vadd.f32 %v1377, %v1688
        %v1690 = vpop.f32.mrf.mxu0
        %v1691 = vpop.f32.mrf.mxu0
        %v1692 = vadd.f32 %v1380, %v1691
        %v1693 = vpop.f32.mrf.mxu0
        %1694 = vmatprep.mubr.bf16.mxu0 %v1445
        %1695 = vmatmul.mubr.bf16.gmra.mxu0 %v1444
        %v1696 = vpop.f32.mrf.mxu0
        %v1697 = vadd.f32 %v1385, %v1696
        %v1698 = vpop.f32.mrf.mxu0
        %v1699 = vpop.f32.mrf.mxu0
        %v1700 = vadd.f32 %v1388, %v1699
        %v1701 = vpop.f32.mrf.mxu0
        %1702 = vmatprep.mubr.bf16.mxu0 %v1448
        %1703 = vmatmul.mubr.bf16.gmra.mxu0 %v1447
        %v1704 = vpop.f32.mrf.mxu0
        %v1705 = vadd.f32 %v1393, %v1704
        %v1706 = vpop.f32.mrf.mxu0
        %v1707 = vpop.f32.mrf.mxu0
        %v1708 = vadd.f32 %v1396, %v1707
        %v1709 = vpop.f32.mrf.mxu0
        %1710 = vmatprep.mubr.bf16.mxu0 %v1451
        %1711 = vmatmul.mubr.bf16.gmra.mxu0 %v1450
        %v1712 = vpop.f32.mrf.mxu0
        %v1713 = vadd.f32 %v1401, %v1712
        %v1714 = vpop.f32.mrf.mxu0
        %v1715 = vpop.f32.mrf.mxu0
        %v1716 = vadd.f32 %v1404, %v1715
        %v1717 = vpop.f32.mrf.mxu0
        %1718 = vmatprep.mubr.bf16.mxu0 %v1454
        %1719 = vmatmul.mubr.bf16.gmra.mxu0 %v1453
        %v1720 = vpop.f32.mrf.mxu0
        %v1721 = vadd.f32 %v1409, %v1720
        %v1722 = vpop.f32.mrf.mxu0
        %v1723 = vpop.f32.mrf.mxu0
        %v1724 = vadd.f32 %v1412, %v1723
        %v1725 = vpop.f32.mrf.mxu0
        %1726 = vmatprep.mubr.bf16.mxu0 %v1457
        %1727 = vmatmul.mubr.bf16.gmra.mxu0 %v1456
        %v1728 = vpop.f32.mrf.mxu0
        %v1729 = vadd.f32 %v1417, %v1728
        %v1730 = vpop.f32.mrf.mxu0
        %v1731 = vpop.f32.mrf.mxu0
        %v1732 = vadd.f32 %v1420, %v1731
        %v1733 = vpop.f32.mrf.mxu0
        %1734 = vdwg.mxu0
        %1735 = vmatprep.subr.bf16.mxu0 0
        %1736 = vmatpush1.bf16.msra.mxu0 %v1605
        %1737 = vmatprep.subr.bf16.mxu0 0
        %1738 = vmatpush1.bf16.msra.mxu0 %v1604
        %1739 = vmatprep.subr.bf16.mxu0 0
        %1740 = vmatpush1.bf16.msra.mxu0 %v1603
        %1741 = vmatprep.subr.bf16.mxu0 0
        %1742 = vmatpush1.bf16.msra.mxu0 %v1602
        %1743 = vmatprep.subr.bf16.mxu0 0
        %1744 = vmatpush1.bf16.msra.mxu0 %v1601
        %1745 = vmatprep.subr.bf16.mxu0 0
        %1746 = vmatpush1.bf16.msra.mxu0 %v1600
        %1747 = vmatprep.subr.bf16.mxu0 0
        %1748 = vmatpush1.bf16.msra.mxu0 %v1599
        %1749 = vmatprep.subr.bf16.mxu0 0
        %1750 = vmatpush1.bf16.msra.mxu0 %v1598
        %1751 = vmatprep.subr.bf16.mxu0 0
        %1752 = vmatpush2.bf16.msra.mxu0 0
        %1753 = vmatprep.subr.bf16.mxu0 0
        %1754 = vmatpush2.bf16.msra.mxu0 0
        %1755 = vmatprep.subr.bf16.mxu0 0
        %1756 = vmatpush2.bf16.msra.mxu0 0
        %1757 = vmatprep.subr.bf16.mxu0 0
        %1758 = vmatpush2.bf16.msra.mxu0 0
        %1759 = vmatprep.subr.bf16.mxu0 0
        %1760 = vmatpush2.bf16.msra.mxu0 0
        %1761 = vmatprep.subr.bf16.mxu0 0
        %1762 = vmatpush2.bf16.msra.mxu0 0
        %1763 = vmatprep.subr.bf16.mxu0 0
        %1764 = vmatpush2.bf16.msra.mxu0 0
        %1765 = vmatprep.subr.bf16.mxu0 0
        %1766 = vmatpush2.bf16.msra.mxu0 0
        %1767 = vmatprep.mubr.bf16.mxu0 0
        %1768 = vmatmul.mubr.bf16.gmra.mxu0 %v1434
        %v1769 = vpop.f32.mrf.mxu0
        %v1770 = vadd.f32 %v1665, %v1769
        %v1771 = vpop.f32.mrf.mxu0
        %v1772 = vpop.f32.mrf.mxu0
        %v1773 = vadd.f32 %v1668, %v1772
        %v1774 = vpop.f32.mrf.mxu0
        %1775 = vmatprep.mubr.bf16.mxu0 0
        %1776 = vmatmul.mubr.bf16.gmra.mxu0 %v1437
        %v1777 = vpop.f32.mrf.mxu0
        %v1778 = vadd.f32 %v1673, %v1777
        %v1779 = vpop.f32.mrf.mxu0
        %v1780 = vpop.f32.mrf.mxu0
        %v1781 = vadd.f32 %v1676, %v1780
        %v1782 = vpop.f32.mrf.mxu0
        %1783 = vmatprep.mubr.bf16.mxu0 0
        %1784 = vmatmul.mubr.bf16.gmra.mxu0 %v1440
        %v1785 = vpop.f32.mrf.mxu0
        %v1786 = vadd.f32 %v1681, %v1785
        %v1787 = vpop.f32.mrf.mxu0
        %v1788 = vpop.f32.mrf.mxu0
        %v1789 = vadd.f32 %v1684, %v1788
        %v1790 = vpop.f32.mrf.mxu0
        %1791 = vmatprep.mubr.bf16.mxu0 0
        %1792 = vmatmul.mubr.bf16.gmra.mxu0 %v1443
        %v1793 = vpop.f32.mrf.mxu0
        %v1794 = vadd.f32 %v1689, %v1793
        %v1795 = vpop.f32.mrf.mxu0
        %v1796 = vpop.f32.mrf.mxu0
        %v1797 = vadd.f32 %v1692, %v1796
        %v1798 = vpop.f32.mrf.mxu0
        %1799 = vmatprep.mubr.bf16.mxu0 0
        %1800 = vmatmul.mubr.bf16.gmra.mxu0 %v1446
        %v1801 = vpop.f32.mrf.mxu0
        %v1802 = vadd.f32 %v1697, %v1801
        %v1803 = vpop.f32.mrf.mxu0
        %v1804 = vpop.f32.mrf.mxu0
        %v1805 = vadd.f32 %v1700, %v1804
        %v1806 = vpop.f32.mrf.mxu0
        %1807 = vmatprep.mubr.bf16.mxu0 0
        %1808 = vmatmul.mubr.bf16.gmra.mxu0 %v1449
        %v1809 = vpop.f32.mrf.mxu0
        %v1810 = vadd.f32 %v1705, %v1809
        %v1811 = vpop.f32.mrf.mxu0
        %v1812 = vpop.f32.mrf.mxu0
        %v1813 = vadd.f32 %v1708, %v1812
        %v1814 = vpop.f32.mrf.mxu0
        %1815 = vmatprep.mubr.bf16.mxu0 0
        %1816 = vmatmul.mubr.bf16.gmra.mxu0 %v1452
        %v1817 = vpop.f32.mrf.mxu0
        %v1818 = vadd.f32 %v1713, %v1817
        %v1819 = vpop.f32.mrf.mxu0
        %v1820 = vpop.f32.mrf.mxu0
        %v1821 = vadd.f32 %v1716, %v1820
        %v1822 = vpop.f32.mrf.mxu0
        %1823 = vmatprep.mubr.bf16.mxu0 0
        %1824 = vmatmul.mubr.bf16.gmra.mxu0 %v1455
        %v1825 = vpop.f32.mrf.mxu0
        %v1826 = vadd.f32 %v1721, %v1825
        %v1827 = vpop.f32.mrf.mxu0
        %v1828 = vpop.f32.mrf.mxu0
        %v1829 = vadd.f32 %v1724, %v1828
        %v1830 = vpop.f32.mrf.mxu0
        %1831 = vmatprep.mubr.bf16.mxu0 0
        %1832 = vmatmul.mubr.bf16.gmra.mxu0 %v1458
        %v1833 = vpop.f32.mrf.mxu0
        %v1834 = vadd.f32 %v1729, %v1833
        %v1835 = vpop.f32.mrf.mxu0
        %v1836 = vpop.f32.mrf.mxu0
        %v1837 = vadd.f32 %v1732, %v1836
        %v1838 = vpop.f32.mrf.mxu0
        %1839 = vdwg.mxu0
        %v1840 = vunpack.c.l.b16 %v417
        %v1841 = vunpack.c.l.b16 %v536
        %v1842 = vunpack.c.l.b16 %v580
        %v1843 = vunpack.c.h.b16 %v417
        %v1844 = vunpack.c.h.b16 %v536
        %v1845 = vunpack.c.h.b16 %v580
        %v1846 = vunpack.c.l.b16 %v418
        %v1847 = vunpack.c.l.b16 %v539
        %v1848 = vunpack.c.l.b16 %v579
        %v1849 = vunpack.c.h.b16 %v418
        %v1850 = vunpack.c.h.b16 %v539
        %v1851 = vunpack.c.h.b16 %v579
        %v1852 = vpack.c.b16 %v1841, %v1840
        %v1853 = vpack.c.b16 %v1842, %v1842
        %v1854 = vpack.c.b16 %v1844, %v1843
        %v1855 = vpack.c.b16 %v1845, %v1845
        %v1856 = vpack.c.b16 %v1847, %v1846
        %v1857 = vpack.c.b16 %v1848, %v1848
        %v1858 = vpack.c.b16 %v1850, %v1849
        %v1859 = vpack.c.b16 %v1851, %v1851
        %v1860 = vrot.slane %v1852, 7
        %v1861 = vrot.slane %v1860, 4
        %v1862 = vrot.slane %v1854, 7
        %v1863 = vsel %vm703, %v1861, %v1862
        %v1864 = vrot.slane %v1853, 7
        %v1865 = vrot.slane %v1864, 4
        %v1866 = vrot.slane %v1855, 7
        %v1867 = vsel %vm703, %v1865, %v1866
        %v1868 = vrot.slane %v1862, 4
        %v1869 = vrot.slane %v1856, 7
        %v1870 = vsel %vm703, %v1868, %v1869
        %v1871 = vrot.slane %v1866, 4
        %v1872 = vrot.slane %v1857, 7
        %v1873 = vsel %vm703, %v1871, %v1872
        %v1874 = vrot.slane %v1869, 4
        %v1875 = vrot.slane %v1858, 7
        %v1876 = vsel %vm703, %v1874, %v1875
        %v1877 = vrot.slane %v1872, 4
        %v1878 = vrot.slane %v1859, 7
        %v1879 = vsel %vm703, %v1877, %v1878
        %s1880 = scalar_lea.vmem [#allocation7], 384
        %v1881 = vld [vmem:[%s1880] sm:$0xf]
        %v1882 = vld [vmem:[%s1880 + $0x4] sm:$0xf]
        %v1883 = vld [vmem:[%s1880 + $0x8] sm:$0xf]
        %v1884 = vld [vmem:[%s1880 + $0xc] sm:$0xf]
        %v1885 = vld [vmem:[%s1880 + $0x10] sm:$0xf]
        %v1886 = vld [vmem:[%s1880 + $0x14] sm:$0xf]
        %v1887 = vld [vmem:[%s1880 + $0x18] sm:$0xf]
        %v1888 = vld [vmem:[%s1880 + $0x1c] sm:$0xf]
        %v1889 = vld [vmem:[%s1880 + $0x20] sm:$0xf]
        %v1890 = vld [vmem:[%s1880 + $0x24] sm:$0xf]
        %v1891 = vld [vmem:[%s1880 + $0x28] sm:$0xf]
        %v1892 = vld [vmem:[%s1880 + $0x2c] sm:$0xf]
        %v1893 = vld [vmem:[%s1880 + $0x30] sm:$0xf]
        %v1894 = vld [vmem:[%s1880 + $0x34] sm:$0xf]
        %v1895 = vld [vmem:[%s1880 + $0x38] sm:$0xf]
        %v1896 = vld [vmem:[%s1880 + $0x3c] sm:$0xf]
        %v1897 = vld [vmem:[%s1880 + $0x40] sm:$0xf]
        %v1898 = vld [vmem:[%s1880 + $0x44] sm:$0xf]
        %v1899 = vld [vmem:[%s1880 + $0x48] sm:$0xf]
        %v1900 = vld [vmem:[%s1880 + $0x4c] sm:$0xf]
        %v1901 = vld [vmem:[%s1880 + $0x50] sm:$0xf]
        %v1902 = vld [vmem:[%s1880 + $0x54] sm:$0xf]
        %v1903 = vld [vmem:[%s1880 + $0x58] sm:$0xf]
        %v1904 = vld [vmem:[%s1880 + $0x5c] sm:$0xf]
        %v1905 = vld [vmem:[%s1880 + $0x60] sm:$0xf]
        %v1906 = vld [vmem:[%s1880 + $0x64] sm:$0xf]
        %v1907 = vld [vmem:[%s1880 + $0x68] sm:$0xf]
        %v1908 = vld [vmem:[%s1880 + $0x6c] sm:$0xf]
        %v1909 = vld [vmem:[%s1880 + $0x70] sm:$0xf]
        %v1910 = vld [vmem:[%s1880 + $0x74] sm:$0xf]
        %v1911 = vld [vmem:[%s1880 + $0x78] sm:$0xf]
        %v1912 = vld [vmem:[%s1880 + $0x7c] sm:$0xf]
        %v1913 = vld [vmem:[%s1880 + $0x80] sm:$0xf]
        %v1914 = vld [vmem:[%s1880 + $0x84] sm:$0xf]
        %v1915 = vld [vmem:[%s1880 + $0x88] sm:$0xf]
        %v1916 = vld [vmem:[%s1880 + $0x8c] sm:$0xf]
        %v1917 = vld [vmem:[%s1880 + $0x90] sm:$0xf]
        %v1918 = vld [vmem:[%s1880 + $0x94] sm:$0xf]
        %v1919 = vld [vmem:[%s1880 + $0x98] sm:$0xf]
        %v1920 = vld [vmem:[%s1880 + $0x9c] sm:$0xf]
        %v1921 = vld [vmem:[%s1880 + $0xa0] sm:$0xf]
        %v1922 = vld [vmem:[%s1880 + $0xa4] sm:$0xf]
        %v1923 = vld [vmem:[%s1880 + $0xa8] sm:$0xf]
        %v1924 = vld [vmem:[%s1880 + $0xac] sm:$0xf]
        %v1925 = vld [vmem:[%s1880 + $0xb0] sm:$0xf]
        %v1926 = vld [vmem:[%s1880 + $0xb4] sm:$0xf]
        %v1927 = vld [vmem:[%s1880 + $0xb8] sm:$0xf]
        %v1928 = vld [vmem:[%s1880 + $0xbc] sm:$0xf]
        %v1929 = vunpack.c.l.b16 %v1863
        %v1930 = vunpack.c.h.b16 %v1863
        %v1931 = vunpack.c.l.b16 %v1867
        %v1932 = vunpack.c.l.b16 %v1870
        %v1933 = vunpack.c.h.b16 %v1870
        %v1934 = vunpack.c.l.b16 %v1873
        %v1935 = vunpack.c.l.b16 %v1876
        %v1936 = vunpack.c.h.b16 %v1876
        %v1937 = vunpack.c.l.b16 %v1879
        %v1938 = vpack.c.b16 %v1009, %v1006
        %v1939 = vpack.c.b16 %v1010, %v1007
        %v1940 = vpack.c.b16 %v1011, %v1008
        %v1941 = vpack.c.b16 %v1929, %v1012
        %v1942 = vpack.c.b16 %v1930, %v1013
        %v1943 = vpack.c.b16 %v1931, %v1014
        %v1944 = vpack.c.b16 %v1935, %v1932
        %v1945 = vpack.c.b16 %v1936, %v1933
        %v1946 = vpack.c.b16 %v1937, %v1934
        %v2004 = vunpack.c.l.b16 %v1881
        %v2005 = vunpack.c.l.b16 %v1882
        %v2006 = vunpack.c.l.b16 %v1883
        %v2007 = vunpack.c.l.b16 %v1884
        %v2008 = vunpack.c.l.b16 %v1885
        %v2009 = vunpack.c.l.b16 %v1886
        %v2010 = vunpack.c.l.b16 %v1887
        %v2011 = vunpack.c.l.b16 %v1888
        %v2012 = vunpack.c.l.b16 %v1889
        %v2013 = vunpack.c.l.b16 %v1890
        %v2014 = vunpack.c.l.b16 %v1891
        %v2015 = vunpack.c.l.b16 %v1892
        %v2016 = vunpack.c.l.b16 %v1893
        %v2017 = vunpack.c.l.b16 %v1894
        %v2018 = vunpack.c.l.b16 %v1895
        %v2019 = vunpack.c.l.b16 %v1896
        %v2020 = vunpack.c.l.b16 %v1897
        %v2021 = vunpack.c.l.b16 %v1898
        %v2022 = vunpack.c.l.b16 %v1899
        %v2023 = vunpack.c.l.b16 %v1900
        %v2024 = vunpack.c.l.b16 %v1901
        %v2025 = vunpack.c.l.b16 %v1902
        %v2026 = vunpack.c.l.b16 %v1903
        %v2027 = vunpack.c.l.b16 %v1904
        %v2028 = vunpack.c.l.b16 %v1905
        %v2029 = vunpack.c.l.b16 %v1906
        %v2030 = vunpack.c.l.b16 %v1907
        %v2031 = vunpack.c.l.b16 %v1908
        %v2032 = vunpack.c.l.b16 %v1909
        %v2033 = vunpack.c.l.b16 %v1910
        %v2034 = vunpack.c.l.b16 %v1911
        %v2035 = vunpack.c.l.b16 %v1912
        %v2036 = vunpack.c.l.b16 %v1913
        %v2037 = vunpack.c.l.b16 %v1914
        %v2038 = vunpack.c.l.b16 %v1915
        %v2039 = vunpack.c.l.b16 %v1916
        %v2040 = vunpack.c.l.b16 %v1917
        %v2041 = vunpack.c.l.b16 %v1918
        %v2042 = vunpack.c.l.b16 %v1919
        %v2043 = vunpack.c.l.b16 %v1920
        %v2044 = vunpack.c.l.b16 %v1921
        %v2045 = vunpack.c.l.b16 %v1922
        %v2046 = vunpack.c.l.b16 %v1923
        %v2047 = vunpack.c.l.b16 %v1924
        %v2048 = vunpack.c.l.b16 %v1925
        %v2049 = vunpack.c.l.b16 %v1926
        %v2050 = vunpack.c.l.b16 %v1927
        %v2051 = vunpack.c.l.b16 %v1928
        %v2052 = vpack.c.b16 %v2005, %v2004
        %v2053 = vpack.c.b16 %v2007, %v2006
        %v2054 = vpack.c.b16 %v2009, %v2008
        %v2055 = vpack.c.b16 %v2011, %v2010
        %v2056 = vpack.c.b16 %v2013, %v2012
        %v2057 = vpack.c.b16 %v2015, %v2014
        %v2058 = vpack.c.b16 %v2017, %v2016
        %v2059 = vpack.c.b16 %v2019, %v2018
        %v2060 = vpack.c.b16 %v2021, %v2020
        %v2061 = vpack.c.b16 %v2023, %v2022
        %v2062 = vpack.c.b16 %v2025, %v2024
        %v2063 = vpack.c.b16 %v2027, %v2026
        %v2064 = vpack.c.b16 %v2029, %v2028
        %v2065 = vpack.c.b16 %v2031, %v2030
        %v2066 = vpack.c.b16 %v2033, %v2032
        %v2067 = vpack.c.b16 %v2035, %v2034
        %v2068 = vpack.c.b16 %v2037, %v2036
        %v2069 = vpack.c.b16 %v2039, %v2038
        %v2070 = vpack.c.b16 %v2041, %v2040
        %v2071 = vpack.c.b16 %v2043, %v2042
        %v2072 = vpack.c.b16 %v2045, %v2044
        %v2073 = vpack.c.b16 %v2047, %v2046
        %v2074 = vpack.c.b16 %v2049, %v2048
        %v2075 = vpack.c.b16 %v2051, %v2050
        %2100 = vmatprep.subr.bf16.mxu0 0
        %2101 = vmatpush1.bf16.msra.mxu0 %v2059
        %2102 = vmatprep.subr.bf16.mxu0 0
        %2103 = vmatpush1.bf16.msra.mxu0 %v2058
        %2104 = vmatprep.subr.bf16.mxu0 0
        %2105 = vmatpush1.bf16.msra.mxu0 %v2057
        %2106 = vmatprep.subr.bf16.mxu0 0
        %2107 = vmatpush1.bf16.msra.mxu0 %v2056
        %2108 = vmatprep.subr.bf16.mxu0 0
        %2109 = vmatpush1.bf16.msra.mxu0 %v2055
        %2110 = vmatprep.subr.bf16.mxu0 0
        %2111 = vmatpush1.bf16.msra.mxu0 %v2054
        %2112 = vmatprep.subr.bf16.mxu0 0
        %2113 = vmatpush1.bf16.msra.mxu0 %v2053
        %2114 = vmatprep.subr.bf16.mxu0 0
        %2115 = vmatpush1.bf16.msra.mxu0 %v2052
        %2116 = vmatprep.subr.bf16.mxu0 0
        %2117 = vmatpush2.bf16.msra.mxu0 %v2067
        %2118 = vmatprep.subr.bf16.mxu0 0
        %2119 = vmatpush2.bf16.msra.mxu0 %v2066
        %2120 = vmatprep.subr.bf16.mxu0 0
        %2121 = vmatpush2.bf16.msra.mxu0 %v2065
        %2122 = vmatprep.subr.bf16.mxu0 0
        %2123 = vmatpush2.bf16.msra.mxu0 %v2064
        %2124 = vmatprep.subr.bf16.mxu0 0
        %2125 = vmatpush2.bf16.msra.mxu0 %v2063
        %2126 = vmatprep.subr.bf16.mxu0 0
        %2127 = vmatpush2.bf16.msra.mxu0 %v2062
        %2128 = vmatprep.subr.bf16.mxu0 0
        %2129 = vmatpush2.bf16.msra.mxu0 %v2061
        %2130 = vmatprep.subr.bf16.mxu0 0
        %2131 = vmatpush2.bf16.msra.mxu0 %v2060
        %2132 = vmatprep.mubr.bf16.mxu0 %v1442
        %2133 = vmatmul.mubr.bf16.gmra.mxu0 %v1441
        %v2134 = vpop.f32.mrf.mxu0
        %v2135 = vadd.f32 0.0, %v2134
        %v2136 = vpop.f32.mrf.mxu0
        %v2137 = vpop.f32.mrf.mxu0
        %v2138 = vadd.f32 0.0, %v2137
        %v2139 = vpop.f32.mrf.mxu0
        %2140 = vmatprep.mubr.bf16.mxu0 %v1445
        %2141 = vmatmul.mubr.bf16.gmra.mxu0 %v1444
        %v2142 = vpop.f32.mrf.mxu0
        %v2143 = vadd.f32 0.0, %v2142
        %v2144 = vpop.f32.mrf.mxu0
        %v2145 = vpop.f32.mrf.mxu0
        %v2146 = vadd.f32 0.0, %v2145
        %v2147 = vpop.f32.mrf.mxu0
        %2148 = vmatprep.mubr.bf16.mxu0 %v1448
        %2149 = vmatmul.mubr.bf16.gmra.mxu0 %v1447
        %v2150 = vpop.f32.mrf.mxu0
        %v2151 = vadd.f32 0.0, %v2150
        %v2152 = vpop.f32.mrf.mxu0
        %v2153 = vpop.f32.mrf.mxu0
        %v2154 = vadd.f32 0.0, %v2153
        %v2155 = vpop.f32.mrf.mxu0
        %2156 = vmatprep.mubr.bf16.mxu0 %v1451
        %2157 = vmatmul.mubr.bf16.gmra.mxu0 %v1450
        %v2158 = vpop.f32.mrf.mxu0
        %v2159 = vadd.f32 0.0, %v2158
        %v2160 = vpop.f32.mrf.mxu0
        %v2161 = vpop.f32.mrf.mxu0
        %v2162 = vadd.f32 0.0, %v2161
        %v2163 = vpop.f32.mrf.mxu0
        %2164 = vmatprep.mubr.bf16.mxu0 %v1454
        %2165 = vmatmul.mubr.bf16.gmra.mxu0 %v1453
        %v2166 = vpop.f32.mrf.mxu0
        %v2167 = vadd.f32 0.0, %v2166
        %v2168 = vpop.f32.mrf.mxu0
        %v2169 = vpop.f32.mrf.mxu0
        %v2170 = vadd.f32 0.0, %v2169
        %v2171 = vpop.f32.mrf.mxu0
        %2172 = vmatprep.mubr.bf16.mxu0 %v1457
        %2173 = vmatmul.mubr.bf16.gmra.mxu0 %v1456
        %v2174 = vpop.f32.mrf.mxu0
        %v2175 = vadd.f32 0.0, %v2174
        %v2176 = vpop.f32.mrf.mxu0
        %v2177 = vpop.f32.mrf.mxu0
        %v2178 = vadd.f32 0.0, %v2177
        %v2179 = vpop.f32.mrf.mxu0
        %2180 = vmatprep.mubr.bf16.mxu0 %v1939
        %2181 = vmatmul.mubr.bf16.gmra.mxu0 %v1938
        %v2182 = vpop.f32.mrf.mxu0
        %v2183 = vadd.f32 0.0, %v2182
        %v2184 = vpop.f32.mrf.mxu0
        %v2185 = vpop.f32.mrf.mxu0
        %v2186 = vadd.f32 0.0, %v2185
        %v2187 = vpop.f32.mrf.mxu0
        %2188 = vmatprep.mubr.bf16.mxu0 %v1942
        %2189 = vmatmul.mubr.bf16.gmra.mxu0 %v1941
        %v2190 = vpop.f32.mrf.mxu0
        %v2191 = vadd.f32 0.0, %v2190
        %v2192 = vpop.f32.mrf.mxu0
        %v2193 = vpop.f32.mrf.mxu0
        %v2194 = vadd.f32 0.0, %v2193
        %v2195 = vpop.f32.mrf.mxu0
        %2196 = vmatprep.mubr.bf16.mxu0 %v1945
        %2197 = vmatmul.mubr.bf16.gmra.mxu0 %v1944
        %v2198 = vpop.f32.mrf.mxu0
        %v2199 = vadd.f32 0.0, %v2198
        %v2200 = vpop.f32.mrf.mxu0
        %v2201 = vpop.f32.mrf.mxu0
        %v2202 = vadd.f32 0.0, %v2201
        %v2203 = vpop.f32.mrf.mxu0
        %2204 = vdwg.mxu0
        %2205 = vmatprep.subr.bf16.mxu0 0
        %2206 = vmatpush1.bf16.msra.mxu0 %v2075
        %2207 = vmatprep.subr.bf16.mxu0 0
        %2208 = vmatpush1.bf16.msra.mxu0 %v2074
        %2209 = vmatprep.subr.bf16.mxu0 0
        %2210 = vmatpush1.bf16.msra.mxu0 %v2073
        %2211 = vmatprep.subr.bf16.mxu0 0
        %2212 = vmatpush1.bf16.msra.mxu0 %v2072
        %2213 = vmatprep.subr.bf16.mxu0 0
        %2214 = vmatpush1.bf16.msra.mxu0 %v2071
        %2215 = vmatprep.subr.bf16.mxu0 0
        %2216 = vmatpush1.bf16.msra.mxu0 %v2070
        %2217 = vmatprep.subr.bf16.mxu0 0
        %2218 = vmatpush1.bf16.msra.mxu0 %v2069
        %2219 = vmatprep.subr.bf16.mxu0 0
        %2220 = vmatpush1.bf16.msra.mxu0 %v2068
        %2221 = vmatprep.subr.bf16.mxu0 0
        %2222 = vmatpush2.bf16.msra.mxu0 0
        %2223 = vmatprep.subr.bf16.mxu0 0
        %2224 = vmatpush2.bf16.msra.mxu0 0
        %2225 = vmatprep.subr.bf16.mxu0 0
        %2226 = vmatpush2.bf16.msra.mxu0 0
        %2227 = vmatprep.subr.bf16.mxu0 0
        %2228 = vmatpush2.bf16.msra.mxu0 0
        %2229 = vmatprep.subr.bf16.mxu0 0
        %2230 = vmatpush2.bf16.msra.mxu0 0
        %2231 = vmatprep.subr.bf16.mxu0 0
        %2232 = vmatpush2.bf16.msra.mxu0 0
        %2233 = vmatprep.subr.bf16.mxu0 0
        %2234 = vmatpush2.bf16.msra.mxu0 0
        %2235 = vmatprep.subr.bf16.mxu0 0
        %2236 = vmatpush2.bf16.msra.mxu0 0
        %2237 = vmatprep.mubr.bf16.mxu0 0
        %2238 = vmatmul.mubr.bf16.gmra.mxu0 %v1443
        %v2239 = vpop.f32.mrf.mxu0
        %v2240 = vadd.f32 %v2135, %v2239
        %v2241 = vpop.f32.mrf.mxu0
        %v2242 = vpop.f32.mrf.mxu0
        %v2243 = vadd.f32 %v2138, %v2242
        %v2244 = vpop.f32.mrf.mxu0
        %2245 = vmatprep.mubr.bf16.mxu0 0
        %2246 = vmatmul.mubr.bf16.gmra.mxu0 %v1446
        %v2247 = vpop.f32.mrf.mxu0
        %v2248 = vadd.f32 %v2143, %v2247
        %v2249 = vpop.f32.mrf.mxu0
        %v2250 = vpop.f32.mrf.mxu0
        %v2251 = vadd.f32 %v2146, %v2250
        %v2252 = vpop.f32.mrf.mxu0
        %2253 = vmatprep.mubr.bf16.mxu0 0
        %2254 = vmatmul.mubr.bf16.gmra.mxu0 %v1449
        %v2255 = vpop.f32.mrf.mxu0
        %v2256 = vadd.f32 %v2151, %v2255
        %v2257 = vpop.f32.mrf.mxu0
        %v2258 = vpop.f32.mrf.mxu0
        %v2259 = vadd.f32 %v2154, %v2258
        %v2260 = vpop.f32.mrf.mxu0
        %2261 = vmatprep.mubr.bf16.mxu0 0
        %2262 = vmatmul.mubr.bf16.gmra.mxu0 %v1452
        %v2263 = vpop.f32.mrf.mxu0
        %v2264 = vadd.f32 %v2159, %v2263
        %v2265 = vpop.f32.mrf.mxu0
        %v2266 = vpop.f32.mrf.mxu0
        %v2267 = vadd.f32 %v2162, %v2266
        %v2268 = vpop.f32.mrf.mxu0
        %2269 = vmatprep.mubr.bf16.mxu0 0
        %2270 = vmatmul.mubr.bf16.gmra.mxu0 %v1455
        %v2271 = vpop.f32.mrf.mxu0
        %v2272 = vadd.f32 %v2167, %v2271
        %v2273 = vpop.f32.mrf.mxu0
        %v2274 = vpop.f32.mrf.mxu0
        %v2275 = vadd.f32 %v2170, %v2274
        %v2276 = vpop.f32.mrf.mxu0
        %2277 = vmatprep.mubr.bf16.mxu0 0
        %2278 = vmatmul.mubr.bf16.gmra.mxu0 %v1458
        %v2279 = vpop.f32.mrf.mxu0
        %v2280 = vadd.f32 %v2175, %v2279
        %v2281 = vpop.f32.mrf.mxu0
        %v2282 = vpop.f32.mrf.mxu0
        %v2283 = vadd.f32 %v2178, %v2282
        %v2284 = vpop.f32.mrf.mxu0
        %2285 = vmatprep.mubr.bf16.mxu0 0
        %2286 = vmatmul.mubr.bf16.gmra.mxu0 %v1940
        %v2287 = vpop.f32.mrf.mxu0
        %v2288 = vadd.f32 %v2183, %v2287
        %v2289 = vpop.f32.mrf.mxu0
        %v2290 = vpop.f32.mrf.mxu0
        %v2291 = vadd.f32 %v2186, %v2290
        %v2292 = vpop.f32.mrf.mxu0
        %2293 = vmatprep.mubr.bf16.mxu0 0
        %2294 = vmatmul.mubr.bf16.gmra.mxu0 %v1943
        %v2295 = vpop.f32.mrf.mxu0
        %v2296 = vadd.f32 %v2191, %v2295
        %v2297 = vpop.f32.mrf.mxu0
        %v2298 = vpop.f32.mrf.mxu0
        %v2299 = vadd.f32 %v2194, %v2298
        %v2300 = vpop.f32.mrf.mxu0
        %2301 = vmatprep.mubr.bf16.mxu0 0
        %2302 = vmatmul.mubr.bf16.gmra.mxu0 %v1946
        %v2303 = vpop.f32.mrf.mxu0
        %v2304 = vadd.f32 %v2199, %v2303
        %v2305 = vpop.f32.mrf.mxu0
        %v2306 = vpop.f32.mrf.mxu0
        %v2307 = vadd.f32 %v2202, %v2306
        %v2308 = vpop.f32.mrf.mxu0
        %2309 = vdwg.mxu0
        %v2310 = vadd.f32 %v1770, %v2240
        %v2311 = vadd.f32 %v1773, %v2243
        %v2312 = vadd.f32 %v1778, %v2248
        %v2313 = vadd.f32 %v1781, %v2251
        %v2314 = vadd.f32 %v1786, %v2256
        %v2315 = vadd.f32 %v1789, %v2259
        %v2316 = vadd.f32 %v1794, %v2264
        %v2317 = vadd.f32 %v1797, %v2267
        %v2318 = vadd.f32 %v1802, %v2272
        %v2319 = vadd.f32 %v1805, %v2275
        %v2320 = vadd.f32 %v1810, %v2280
        %v2321 = vadd.f32 %v1813, %v2283
        %v2322 = vadd.f32 %v1818, %v2288
        %v2323 = vadd.f32 %v1821, %v2291
        %v2324 = vadd.f32 %v1826, %v2296
        %v2325 = vadd.f32 %v1829, %v2299
        %v2326 = vadd.f32 %v1834, %v2304
        %v2327 = vadd.f32 %v1837, %v2307
        %s2328 = smul.u32 %s32, 4
        %s2329 = ssub.s32 %s2328, 1
        %v2330 = vstv %s2329
        %v2331 = vadd.s32 %v2330, 1
        %v2332 = vadd.s32 %v2330, 2
        %v2333 = vadd.s32 %v2330, 3
        %v2334 = vadd.s32 %v2330, 4
        %v2335 = vadd.s32 %v2330, 5
        %v2336 = vlaneseq
        %v2337 = vshrl.u32 %v2336, 7
        %v2338 = vadd.s32 %v2337, 8
        %v2339 = vadd.s32 %v2337, 16
        %v2340 = vsub.s32 %v2337, 1
        %v2341 = vsub.s32 %v2338, 1
        %v2342 = vsub.s32 %v2339, 1
        %vm2343 = vcmp.ge.s32.totalorder %v2330, 0
        %vm2344 = vcmp.ge.s32.totalorder %v2331, 0
        %vm2345 = vcmp.ge.s32.totalorder %v2332, 0
        %vm2346 = vcmp.ge.s32.totalorder %v2333, 0
        %vm2347 = vcmp.ge.s32.totalorder %v2334, 0
        %vm2348 = vcmp.ge.s32.totalorder %v2335, 0
        %vm2349 = vcmp.lt.s32.totalorder %v2330, 16
        %vm2350 = vcmp.lt.s32.totalorder %v2331, 16
        %vm2351 = vcmp.lt.s32.totalorder %v2332, 16
        %vm2352 = vcmp.lt.s32.totalorder %v2333, 16
        %vm2353 = vcmp.lt.s32.totalorder %v2334, 16
        %vm2354 = vcmp.lt.s32.totalorder %v2335, 16
        %vm2355 = vmand %vm2343, %vm2349
        %vm2356 = vmand %vm2344, %vm2350
        %vm2357 = vmand %vm2345, %vm2351
        %vm2358 = vmand %vm2346, %vm2352
        %vm2359 = vmand %vm2347, %vm2353
        %vm2360 = vmand %vm2348, %vm2354
        %vm2361 = vcmp.ge.s32.totalorder %v2340, 0
        %vm2362 = vcmp.ge.s32.totalorder %v2341, 0
        %vm2363 = vcmp.ge.s32.totalorder %v2342, 0
        %vm2364 = vmand %vm2355, %vm2361
        %vm2365 = vmand %vm2355, %vm2362
        %vm2366 = vmand %vm2355, %vm2363
        %vm2367 = vmand %vm2356, %vm2361
        %vm2368 = vmand %vm2356, %vm2362
        %vm2369 = vmand %vm2356, %vm2363
        %vm2370 = vmand %vm2357, %vm2361
        %vm2371 = vmand %vm2357, %vm2362
        %vm2372 = vmand %vm2357, %vm2363
        %vm2373 = vmand %vm2358, %vm2361
        %vm2374 = vmand %vm2358, %vm2362
        %vm2375 = vmand %vm2358, %vm2363
        %vm2376 = vmand %vm2359, %vm2361
        %vm2377 = vmand %vm2359, %vm2362
        %vm2378 = vmand %vm2359, %vm2363
        %vm2379 = vmand %vm2360, %vm2361
        %vm2380 = vmand %vm2360, %vm2362
        %vm2381 = vmand %vm2360, %vm2363
        %vm2382 = vcmp.lt.s32.totalorder %v2340, 16
        %vm2383 = vcmp.lt.s32.totalorder %v2341, 16
        %vm2384 = vcmp.lt.s32.totalorder %v2342, 16
        %vm2385 = vmand %vm2364, %vm2382
        %vm2386 = vmand %vm2365, %vm2383
        %vm2387 = vmand %vm2366, %vm2384
        %vm2388 = vmand %vm2367, %vm2382
        %vm2389 = vmand %vm2368, %vm2383
        %vm2390 = vmand %vm2369, %vm2384
        %vm2391 = vmand %vm2370, %vm2382
        %vm2392 = vmand %vm2371, %vm2383
        %vm2393 = vmand %vm2372, %vm2384
        %vm2394 = vmand %vm2373, %vm2382
        %vm2395 = vmand %vm2374, %vm2383
        %vm2396 = vmand %vm2375, %vm2384
        %vm2397 = vmand %vm2376, %vm2382
        %vm2398 = vmand %vm2377, %vm2383
        %vm2399 = vmand %vm2378, %vm2384
        %vm2400 = vmand %vm2379, %vm2382
        %vm2401 = vmand %vm2380, %vm2383
        %vm2402 = vmand %vm2381, %vm2384
        %v2403 = vld [vmem:[%s3] sm:$0x1]
        %v2405 = vlaneseq
        %v2406 = vshrl.u32 %v2405, 7
        %v2407 = vsub.s32 0, %v2406
        %v2408 = vrot.slane %v2403, %v2407
        %v2410 = vadd.f32 %v2310, %v2408
        %v2411 = vadd.f32 %v2311, %v2408
        %v2412 = vadd.f32 %v2312, %v2408
        %v2413 = vadd.f32 %v2313, %v2408
        %v2414 = vadd.f32 %v2314, %v2408
        %v2415 = vadd.f32 %v2315, %v2408
        %v2416 = vadd.f32 %v2316, %v2408
        %v2417 = vadd.f32 %v2317, %v2408
        %v2418 = vadd.f32 %v2318, %v2408
        %v2419 = vadd.f32 %v2319, %v2408
        %v2420 = vadd.f32 %v2320, %v2408
        %v2421 = vadd.f32 %v2321, %v2408
        %v2422 = vadd.f32 %v2322, %v2408
        %v2423 = vadd.f32 %v2323, %v2408
        %v2424 = vadd.f32 %v2324, %v2408
        %v2425 = vadd.f32 %v2325, %v2408
        %v2426 = vadd.f32 %v2326, %v2408
        %v2427 = vadd.f32 %v2327, %v2408
        %v2428 = vmax.f32 %v2410, 0.0
        %v2429 = vmax.f32 %v2411, 0.0
        %v2430 = vmax.f32 %v2412, 0.0
        %v2431 = vmax.f32 %v2413, 0.0
        %v2432 = vmax.f32 %v2414, 0.0
        %v2433 = vmax.f32 %v2415, 0.0
        %v2434 = vmax.f32 %v2416, 0.0
        %v2435 = vmax.f32 %v2417, 0.0
        %v2436 = vmax.f32 %v2418, 0.0
        %v2437 = vmax.f32 %v2419, 0.0
        %v2438 = vmax.f32 %v2420, 0.0
        %v2439 = vmax.f32 %v2421, 0.0
        %v2440 = vmax.f32 %v2422, 0.0
        %v2441 = vmax.f32 %v2423, 0.0
        %v2442 = vmax.f32 %v2424, 0.0
        %v2443 = vmax.f32 %v2425, 0.0
        %v2444 = vmax.f32 %v2426, 0.0
        %v2445 = vmax.f32 %v2427, 0.0
        %v2446 = vsel %vm2385, 1, 0
        %v2447 = vsel %vm2386, 1, 0
        %v2448 = vsel %vm2387, 1, 0
        %v2449 = vsel %vm2388, 1, 0
        %v2450 = vsel %vm2389, 1, 0
        %v2451 = vsel %vm2390, 1, 0
        %v2452 = vsel %vm2391, 1, 0
        %v2453 = vsel %vm2392, 1, 0
        %v2454 = vsel %vm2393, 1, 0
        %v2455 = vsel %vm2394, 1, 0
        %v2456 = vsel %vm2395, 1, 0
        %v2457 = vsel %vm2396, 1, 0
        %v2458 = vsel %vm2397, 1, 0
        %v2459 = vsel %vm2398, 1, 0
        %v2460 = vsel %vm2399, 1, 0
        %v2461 = vsel %vm2400, 1, 0
        %v2462 = vsel %vm2401, 1, 0
        %v2463 = vsel %vm2402, 1, 0
        %vm2464 = vcmp.eq.s32.totalorder %v2446, 1
        %vm2465 = vcmp.eq.s32.totalorder %v2447, 1
        %vm2466 = vcmp.eq.s32.totalorder %v2448, 1
        %vm2467 = vcmp.eq.s32.totalorder %v2449, 1
        %vm2468 = vcmp.eq.s32.totalorder %v2450, 1
        %vm2469 = vcmp.eq.s32.totalorder %v2451, 1
        %vm2470 = vcmp.eq.s32.totalorder %v2452, 1
        %vm2471 = vcmp.eq.s32.totalorder %v2453, 1
        %vm2472 = vcmp.eq.s32.totalorder %v2454, 1
        %vm2473 = vcmp.eq.s32.totalorder %v2455, 1
        %vm2474 = vcmp.eq.s32.totalorder %v2456, 1
        %vm2475 = vcmp.eq.s32.totalorder %v2457, 1
        %vm2476 = vcmp.eq.s32.totalorder %v2458, 1
        %vm2477 = vcmp.eq.s32.totalorder %v2459, 1
        %vm2478 = vcmp.eq.s32.totalorder %v2460, 1
        %vm2479 = vcmp.eq.s32.totalorder %v2461, 1
        %vm2480 = vcmp.eq.s32.totalorder %v2462, 1
        %vm2481 = vcmp.eq.s32.totalorder %v2463, 1
        %v2482 = vsel %vm2464, %v2428, 0.0
        %v2483 = vsel %vm2465, %v2429, 0.0
        %v2484 = vsel %vm2466, %v2430, 0.0
        %v2485 = vsel %vm2467, %v2431, 0.0
        %v2486 = vsel %vm2468, %v2432, 0.0
        %v2487 = vsel %vm2469, %v2433, 0.0
        %v2488 = vsel %vm2470, %v2434, 0.0
        %v2489 = vsel %vm2471, %v2435, 0.0
        %v2490 = vsel %vm2472, %v2436, 0.0
        %v2491 = vsel %vm2473, %v2437, 0.0
        %v2492 = vsel %vm2474, %v2438, 0.0
        %v2493 = vsel %vm2475, %v2439, 0.0
        %v2494 = vsel %vm2476, %v2440, 0.0
        %v2495 = vsel %vm2477, %v2441, 0.0
        %v2496 = vsel %vm2478, %v2442, 0.0
        %v2497 = vsel %vm2479, %v2443, 0.0
        %v2498 = vsel %vm2480, %v2444, 0.0
        %v2499 = vsel %vm2481, %v2445, 0.0
        %v2500 = vpack.c.bf16 %v2483, %v2482
        %v2501 = vpack.c.bf16 %v2484, %v2484
        %v2502 = vpack.c.bf16 %v2486, %v2485
        %v2503 = vpack.c.bf16 %v2487, %v2487
        %v2504 = vpack.c.bf16 %v2489, %v2488
        %v2505 = vpack.c.bf16 %v2490, %v2490
        %v2506 = vpack.c.bf16 %v2492, %v2491
        %v2507 = vpack.c.bf16 %v2493, %v2493
        %v2508 = vpack.c.bf16 %v2495, %v2494
        %v2509 = vpack.c.bf16 %v2496, %v2496
        %v2510 = vpack.c.bf16 %v2498, %v2497
        %v2511 = vpack.c.bf16 %v2499, %v2499
        %v2513 = vshrl.u32 %v2500, 16
        %v2515 = vshll.u32 %v2500, 16
        %v2517 = vrot.slane %v2515, 1
        %v2518 = vor.u32 %v2513, %v2517
        %v2520 = vshll.u32 %v2501, 16
        %v2522 = vrot.slane %v2520, 1
        %v2523 = vsel %vm419, %v2518, %v2522
        %v2525 = vshrl.u32 %v2502, 16
        %v2527 = vshll.u32 %v2502, 16
        %v2529 = vrot.slane %v2527, 1
        %v2530 = vor.u32 %v2525, %v2529
        %v2532 = vshll.u32 %v2503, 16
        %v2534 = vrot.slane %v2532, 1
        %v2535 = vsel %vm419, %v2530, %v2534
        %v2537 = vshrl.u32 %v2504, 16
        %v2539 = vshll.u32 %v2504, 16
        %v2541 = vrot.slane %v2539, 1
        %v2542 = vor.u32 %v2537, %v2541
        %v2544 = vshll.u32 %v2505, 16
        %v2546 = vrot.slane %v2544, 1
        %v2547 = vsel %vm419, %v2542, %v2546
        %v2549 = vshrl.u32 %v2506, 16
        %v2551 = vshll.u32 %v2506, 16
        %v2553 = vrot.slane %v2551, 1
        %v2554 = vor.u32 %v2549, %v2553
        %v2556 = vshll.u32 %v2507, 16
        %v2558 = vrot.slane %v2556, 1
        %v2559 = vsel %vm419, %v2554, %v2558
        %v2561 = vshrl.u32 %v2508, 16
        %v2563 = vshll.u32 %v2508, 16
        %v2565 = vrot.slane %v2563, 1
        %v2566 = vor.u32 %v2561, %v2565
        %v2568 = vshll.u32 %v2509, 16
        %v2570 = vrot.slane %v2568, 1
        %v2571 = vsel %vm419, %v2566, %v2570
        %v2573 = vshrl.u32 %v2510, 16
        %v2575 = vshll.u32 %v2510, 16
        %v2577 = vrot.slane %v2575, 1
        %v2578 = vor.u32 %v2573, %v2577
        %v2580 = vshll.u32 %v2511, 16
        %v2582 = vrot.slane %v2580, 1
        %v2583 = vsel %vm419, %v2578, %v2582
        %v2602 = vrot.slane %v2500, 1
        %v2603 = vrot.slane %v2501, 1
        %v2604 = vsel %vm556, %v2602, %v2603
        %v2605 = vrot.slane %v2502, 1
        %v2606 = vrot.slane %v2503, 1
        %v2607 = vsel %vm556, %v2605, %v2606
        %v2608 = vrot.slane %v2504, 1
        %v2609 = vrot.slane %v2505, 1
        %v2610 = vsel %vm556, %v2608, %v2609
        %v2611 = vrot.slane %v2506, 1
        %v2612 = vrot.slane %v2507, 1
        %v2613 = vsel %vm556, %v2611, %v2612
        %v2614 = vrot.slane %v2508, 1
        %v2615 = vrot.slane %v2509, 1
        %v2616 = vsel %vm556, %v2614, %v2615
        %v2617 = vrot.slane %v2510, 1
        %v2618 = vrot.slane %v2511, 1
        %v2619 = vsel %vm556, %v2617, %v2618
        %v2626 = vld [vmem:[#allocation8] sm:$0xf]
        %v2627 = vld [vmem:[#allocation8 + $0x4] sm:$0xf]
        %v2628 = vld [vmem:[#allocation8 + $0x8] sm:$0xf]
        %v2629 = vld [vmem:[#allocation8 + $0xc] sm:$0xf]
        %v2630 = vld [vmem:[#allocation8 + $0x10] sm:$0xf]
        %v2631 = vld [vmem:[#allocation8 + $0x14] sm:$0xf]
        %v2632 = vld [vmem:[#allocation8 + $0x18] sm:$0xf]
        %v2633 = vld [vmem:[#allocation8 + $0x1c] sm:$0xf]
        %v2634 = vld [vmem:[#allocation8 + $0x20] sm:$0xf]
        %v2635 = vld [vmem:[#allocation8 + $0x24] sm:$0xf]
        %v2636 = vld [vmem:[#allocation8 + $0x28] sm:$0xf]
        %v2637 = vld [vmem:[#allocation8 + $0x2c] sm:$0xf]
        %v2638 = vld [vmem:[#allocation8 + $0x30] sm:$0xf]
        %v2639 = vld [vmem:[#allocation8 + $0x34] sm:$0xf]
        %v2640 = vld [vmem:[#allocation8 + $0x38] sm:$0xf]
        %v2641 = vld [vmem:[#allocation8 + $0x3c] sm:$0xf]
        %v2642 = vld [vmem:[#allocation8 + $0x40] sm:$0xf]
        %v2643 = vld [vmem:[#allocation8 + $0x44] sm:$0xf]
        %v2644 = vld [vmem:[#allocation8 + $0x48] sm:$0xf]
        %v2645 = vld [vmem:[#allocation8 + $0x4c] sm:$0xf]
        %v2646 = vld [vmem:[#allocation8 + $0x50] sm:$0xf]
        %v2647 = vld [vmem:[#allocation8 + $0x54] sm:$0xf]
        %v2648 = vld [vmem:[#allocation8 + $0x58] sm:$0xf]
        %v2649 = vld [vmem:[#allocation8 + $0x5c] sm:$0xf]
        %v2650 = vld [vmem:[#allocation8 + $0x60] sm:$0xf]
        %v2651 = vld [vmem:[#allocation8 + $0x64] sm:$0xf]
        %v2652 = vld [vmem:[#allocation8 + $0x68] sm:$0xf]
        %v2653 = vld [vmem:[#allocation8 + $0x6c] sm:$0xf]
        %v2654 = vld [vmem:[#allocation8 + $0x70] sm:$0xf]
        %v2655 = vld [vmem:[#allocation8 + $0x74] sm:$0xf]
        %v2656 = vld [vmem:[#allocation8 + $0x78] sm:$0xf]
        %v2657 = vld [vmem:[#allocation8 + $0x7c] sm:$0xf]
        %v2658 = vld [vmem:[#allocation8 + $0x80] sm:$0xf]
        %v2659 = vld [vmem:[#allocation8 + $0x84] sm:$0xf]
        %v2660 = vld [vmem:[#allocation8 + $0x88] sm:$0xf]
        %v2661 = vld [vmem:[#allocation8 + $0x8c] sm:$0xf]
        %v2662 = vld [vmem:[#allocation8 + $0x90] sm:$0xf]
        %v2663 = vld [vmem:[#allocation8 + $0x94] sm:$0xf]
        %v2664 = vld [vmem:[#allocation8 + $0x98] sm:$0xf]
        %v2665 = vld [vmem:[#allocation8 + $0x9c] sm:$0xf]
        %v2666 = vld [vmem:[#allocation8 + $0xa0] sm:$0xf]
        %v2667 = vld [vmem:[#allocation8 + $0xa4] sm:$0xf]
        %v2668 = vld [vmem:[#allocation8 + $0xa8] sm:$0xf]
        %v2669 = vld [vmem:[#allocation8 + $0xac] sm:$0xf]
        %v2670 = vld [vmem:[#allocation8 + $0xb0] sm:$0xf]
        %v2671 = vld [vmem:[#allocation8 + $0xb4] sm:$0xf]
        %v2672 = vld [vmem:[#allocation8 + $0xb8] sm:$0xf]
        %v2673 = vld [vmem:[#allocation8 + $0xbc] sm:$0xf]
        %s2674 = scalar_lea.vmem [#allocation8], 192
        %v2675 = vld [vmem:[%s2674] sm:$0xf]
        %v2676 = vld [vmem:[%s2674 + $0x4] sm:$0xf]
        %v2677 = vld [vmem:[%s2674 + $0x8] sm:$0xf]
        %v2678 = vld [vmem:[%s2674 + $0xc] sm:$0xf]
        %v2679 = vld [vmem:[%s2674 + $0x10] sm:$0xf]
        %v2680 = vld [vmem:[%s2674 + $0x14] sm:$0xf]
        %v2681 = vld [vmem:[%s2674 + $0x18] sm:$0xf]
        %v2682 = vld [vmem:[%s2674 + $0x1c] sm:$0xf]
        %v2683 = vld [vmem:[%s2674 + $0x20] sm:$0xf]
        %v2684 = vld [vmem:[%s2674 + $0x24] sm:$0xf]
        %v2685 = vld [vmem:[%s2674 + $0x28] sm:$0xf]
        %v2686 = vld [vmem:[%s2674 + $0x2c] sm:$0xf]
        %v2687 = vld [vmem:[%s2674 + $0x30] sm:$0xf]
        %v2688 = vld [vmem:[%s2674 + $0x34] sm:$0xf]
        %v2689 = vld [vmem:[%s2674 + $0x38] sm:$0xf]
        %v2690 = vld [vmem:[%s2674 + $0x3c] sm:$0xf]
        %v2691 = vld [vmem:[%s2674 + $0x40] sm:$0xf]
        %v2692 = vld [vmem:[%s2674 + $0x44] sm:$0xf]
        %v2693 = vld [vmem:[%s2674 + $0x48] sm:$0xf]
        %v2694 = vld [vmem:[%s2674 + $0x4c] sm:$0xf]
        %v2695 = vld [vmem:[%s2674 + $0x50] sm:$0xf]
        %v2696 = vld [vmem:[%s2674 + $0x54] sm:$0xf]
        %v2697 = vld [vmem:[%s2674 + $0x58] sm:$0xf]
        %v2698 = vld [vmem:[%s2674 + $0x5c] sm:$0xf]
        %v2699 = vld [vmem:[%s2674 + $0x60] sm:$0xf]
        %v2700 = vld [vmem:[%s2674 + $0x64] sm:$0xf]
        %v2701 = vld [vmem:[%s2674 + $0x68] sm:$0xf]
        %v2702 = vld [vmem:[%s2674 + $0x6c] sm:$0xf]
        %v2703 = vld [vmem:[%s2674 + $0x70] sm:$0xf]
        %v2704 = vld [vmem:[%s2674 + $0x74] sm:$0xf]
        %v2705 = vld [vmem:[%s2674 + $0x78] sm:$0xf]
        %v2706 = vld [vmem:[%s2674 + $0x7c] sm:$0xf]
        %v2707 = vld [vmem:[%s2674 + $0x80] sm:$0xf]
        %v2708 = vld [vmem:[%s2674 + $0x84] sm:$0xf]
        %v2709 = vld [vmem:[%s2674 + $0x88] sm:$0xf]
        %v2710 = vld [vmem:[%s2674 + $0x8c] sm:$0xf]
        %v2711 = vld [vmem:[%s2674 + $0x90] sm:$0xf]
        %v2712 = vld [vmem:[%s2674 + $0x94] sm:$0xf]
        %v2713 = vld [vmem:[%s2674 + $0x98] sm:$0xf]
        %v2714 = vld [vmem:[%s2674 + $0x9c] sm:$0xf]
        %v2715 = vld [vmem:[%s2674 + $0xa0] sm:$0xf]
        %v2716 = vld [vmem:[%s2674 + $0xa4] sm:$0xf]
        %v2717 = vld [vmem:[%s2674 + $0xa8] sm:$0xf]
        %v2718 = vld [vmem:[%s2674 + $0xac] sm:$0xf]
        %v2719 = vld [vmem:[%s2674 + $0xb0] sm:$0xf]
        %v2720 = vld [vmem:[%s2674 + $0xb4] sm:$0xf]
        %v2721 = vld [vmem:[%s2674 + $0xb8] sm:$0xf]
        %v2722 = vld [vmem:[%s2674 + $0xbc] sm:$0xf]
        %v2771 = vunpack.c.l.b16 %v2675
        %v2772 = vunpack.c.l.b16 %v2676
        %v2773 = vunpack.c.l.b16 %v2677
        %v2774 = vunpack.c.l.b16 %v2678
        %v2775 = vunpack.c.l.b16 %v2679
        %v2776 = vunpack.c.l.b16 %v2680
        %v2777 = vunpack.c.l.b16 %v2681
        %v2778 = vunpack.c.l.b16 %v2682
        %v2779 = vunpack.c.l.b16 %v2683
        %v2780 = vunpack.c.l.b16 %v2684
        %v2781 = vunpack.c.l.b16 %v2685
        %v2782 = vunpack.c.l.b16 %v2686
        %v2783 = vunpack.c.l.b16 %v2687
        %v2784 = vunpack.c.l.b16 %v2688
        %v2785 = vunpack.c.l.b16 %v2689
        %v2786 = vunpack.c.l.b16 %v2690
        %v2787 = vunpack.c.l.b16 %v2691
        %v2788 = vunpack.c.l.b16 %v2692
        %v2789 = vunpack.c.l.b16 %v2693
        %v2790 = vunpack.c.l.b16 %v2694
        %v2791 = vunpack.c.l.b16 %v2695
        %v2792 = vunpack.c.l.b16 %v2696
        %v2793 = vunpack.c.l.b16 %v2697
        %v2794 = vunpack.c.l.b16 %v2698
        %v2795 = vunpack.c.l.b16 %v2699
        %v2796 = vunpack.c.l.b16 %v2700
        %v2797 = vunpack.c.l.b16 %v2701
        %v2798 = vunpack.c.l.b16 %v2702
        %v2799 = vunpack.c.l.b16 %v2703
        %v2800 = vunpack.c.l.b16 %v2704
        %v2801 = vunpack.c.l.b16 %v2705
        %v2802 = vunpack.c.l.b16 %v2706
        %v2803 = vunpack.c.l.b16 %v2707
        %v2804 = vunpack.c.l.b16 %v2708
        %v2805 = vunpack.c.l.b16 %v2709
        %v2806 = vunpack.c.l.b16 %v2710
        %v2807 = vunpack.c.l.b16 %v2711
        %v2808 = vunpack.c.l.b16 %v2712
        %v2809 = vunpack.c.l.b16 %v2713
        %v2810 = vunpack.c.l.b16 %v2714
        %v2811 = vunpack.c.l.b16 %v2715
        %v2812 = vunpack.c.l.b16 %v2716
        %v2813 = vunpack.c.l.b16 %v2717
        %v2814 = vunpack.c.l.b16 %v2718
        %v2815 = vunpack.c.l.b16 %v2719
        %v2816 = vunpack.c.l.b16 %v2720
        %v2817 = vunpack.c.l.b16 %v2721
        %v2818 = vunpack.c.l.b16 %v2722
        %v2819 = vpack.c.b16 %v2772, %v2771
        %v2820 = vpack.c.b16 %v2774, %v2773
        %v2821 = vpack.c.b16 %v2776, %v2775
        %v2822 = vpack.c.b16 %v2778, %v2777
        %v2823 = vpack.c.b16 %v2780, %v2779
        %v2824 = vpack.c.b16 %v2782, %v2781
        %v2825 = vpack.c.b16 %v2784, %v2783
        %v2826 = vpack.c.b16 %v2786, %v2785
        %v2827 = vpack.c.b16 %v2788, %v2787
        %v2828 = vpack.c.b16 %v2790, %v2789
        %v2829 = vpack.c.b16 %v2792, %v2791
        %v2830 = vpack.c.b16 %v2794, %v2793
        %v2831 = vpack.c.b16 %v2796, %v2795
        %v2832 = vpack.c.b16 %v2798, %v2797
        %v2833 = vpack.c.b16 %v2800, %v2799
        %v2834 = vpack.c.b16 %v2802, %v2801
        %v2835 = vpack.c.b16 %v2804, %v2803
        %v2836 = vpack.c.b16 %v2806, %v2805
        %v2837 = vpack.c.b16 %v2808, %v2807
        %v2838 = vpack.c.b16 %v2810, %v2809
        %v2839 = vpack.c.b16 %v2812, %v2811
        %v2840 = vpack.c.b16 %v2814, %v2813
        %v2841 = vpack.c.b16 %v2816, %v2815
        %v2842 = vpack.c.b16 %v2818, %v2817
        %2867 = vmatprep.subr.bf16.mxu0 0
        %2868 = vmatpush1.bf16.msra.mxu0 %v2826
        %2869 = vmatprep.subr.bf16.mxu0 0
        %2870 = vmatpush1.bf16.msra.mxu0 %v2825
        %2871 = vmatprep.subr.bf16.mxu0 0
        %2872 = vmatpush1.bf16.msra.mxu0 %v2824
        %2873 = vmatprep.subr.bf16.mxu0 0
        %2874 = vmatpush1.bf16.msra.mxu0 %v2823
        %2875 = vmatprep.subr.bf16.mxu0 0
        %2876 = vmatpush1.bf16.msra.mxu0 %v2822
        %2877 = vmatprep.subr.bf16.mxu0 0
        %2878 = vmatpush1.bf16.msra.mxu0 %v2821
        %2879 = vmatprep.subr.bf16.mxu0 0
        %2880 = vmatpush1.bf16.msra.mxu0 %v2820
        %2881 = vmatprep.subr.bf16.mxu0 0
        %2882 = vmatpush1.bf16.msra.mxu0 %v2819
        %2883 = vmatprep.subr.bf16.mxu0 0
        %2884 = vmatpush2.bf16.msra.mxu0 %v2834
        %2885 = vmatprep.subr.bf16.mxu0 0
        %2886 = vmatpush2.bf16.msra.mxu0 %v2833
        %2887 = vmatprep.subr.bf16.mxu0 0
        %2888 = vmatpush2.bf16.msra.mxu0 %v2832
        %2889 = vmatprep.subr.bf16.mxu0 0
        %2890 = vmatpush2.bf16.msra.mxu0 %v2831
        %2891 = vmatprep.subr.bf16.mxu0 0
        %2892 = vmatpush2.bf16.msra.mxu0 %v2830
        %2893 = vmatprep.subr.bf16.mxu0 0
        %2894 = vmatpush2.bf16.msra.mxu0 %v2829
        %2895 = vmatprep.subr.bf16.mxu0 0
        %2896 = vmatpush2.bf16.msra.mxu0 %v2828
        %2897 = vmatprep.subr.bf16.mxu0 0
        %2898 = vmatpush2.bf16.msra.mxu0 %v2827
        %2899 = vmatprep.mubr.bf16.mxu0 %v2535
        %2900 = vmatmul.mubr.bf16.gmra.mxu0 %v2502
        %v2901 = vpop.f32.mrf.mxu0
        %v2902 = vadd.f32 0.0, %v2901
        %v2903 = vpop.f32.mrf.mxu0
        %v2904 = vpop.f32.mrf.mxu0
        %v2905 = vadd.f32 0.0, %v2904
        %v2906 = vpop.f32.mrf.mxu0
        %2907 = vmatprep.mubr.bf16.mxu0 %v2547
        %2908 = vmatmul.mubr.bf16.gmra.mxu0 %v2504
        %v2909 = vpop.f32.mrf.mxu0
        %v2910 = vadd.f32 0.0, %v2909
        %v2911 = vpop.f32.mrf.mxu0
        %v2912 = vpop.f32.mrf.mxu0
        %v2913 = vadd.f32 0.0, %v2912
        %v2914 = vpop.f32.mrf.mxu0
        %2915 = vmatprep.mubr.bf16.mxu0 %v2559
        %2916 = vmatmul.mubr.bf16.gmra.mxu0 %v2506
        %v2917 = vpop.f32.mrf.mxu0
        %v2918 = vadd.f32 0.0, %v2917
        %v2919 = vpop.f32.mrf.mxu0
        %v2920 = vpop.f32.mrf.mxu0
        %v2921 = vadd.f32 0.0, %v2920
        %v2922 = vpop.f32.mrf.mxu0
        %2923 = vmatprep.mubr.bf16.mxu0 %v2571
        %2924 = vmatmul.mubr.bf16.gmra.mxu0 %v2508
        %v2925 = vpop.f32.mrf.mxu0
        %v2926 = vadd.f32 0.0, %v2925
        %v2927 = vpop.f32.mrf.mxu0
        %v2928 = vpop.f32.mrf.mxu0
        %v2929 = vadd.f32 0.0, %v2928
        %v2930 = vpop.f32.mrf.mxu0
        %2931 = vdwg.mxu0
        %2932 = vmatprep.subr.bf16.mxu0 0
        %2933 = vmatpush1.bf16.msra.mxu0 %v2842
        %2934 = vmatprep.subr.bf16.mxu0 0
        %2935 = vmatpush1.bf16.msra.mxu0 %v2841
        %2936 = vmatprep.subr.bf16.mxu0 0
        %2937 = vmatpush1.bf16.msra.mxu0 %v2840
        %2938 = vmatprep.subr.bf16.mxu0 0
        %2939 = vmatpush1.bf16.msra.mxu0 %v2839
        %2940 = vmatprep.subr.bf16.mxu0 0
        %2941 = vmatpush1.bf16.msra.mxu0 %v2838
        %2942 = vmatprep.subr.bf16.mxu0 0
        %2943 = vmatpush1.bf16.msra.mxu0 %v2837
        %2944 = vmatprep.subr.bf16.mxu0 0
        %2945 = vmatpush1.bf16.msra.mxu0 %v2836
        %2946 = vmatprep.subr.bf16.mxu0 0
        %2947 = vmatpush1.bf16.msra.mxu0 %v2835
        %2948 = vmatprep.subr.bf16.mxu0 0
        %2949 = vmatpush2.bf16.msra.mxu0 0
        %2950 = vmatprep.subr.bf16.mxu0 0
        %2951 = vmatpush2.bf16.msra.mxu0 0
        %2952 = vmatprep.subr.bf16.mxu0 0
        %2953 = vmatpush2.bf16.msra.mxu0 0
        %2954 = vmatprep.subr.bf16.mxu0 0
        %2955 = vmatpush2.bf16.msra.mxu0 0
        %2956 = vmatprep.subr.bf16.mxu0 0
        %2957 = vmatpush2.bf16.msra.mxu0 0
        %2958 = vmatprep.subr.bf16.mxu0 0
        %2959 = vmatpush2.bf16.msra.mxu0 0
        %2960 = vmatprep.subr.bf16.mxu0 0
        %2961 = vmatpush2.bf16.msra.mxu0 0
        %2962 = vmatprep.subr.bf16.mxu0 0
        %2963 = vmatpush2.bf16.msra.mxu0 0
        %2964 = vmatprep.mubr.bf16.mxu0 0
        %2965 = vmatmul.mubr.bf16.gmra.mxu0 %v2607
        %v2966 = vpop.f32.mrf.mxu0
        %v2967 = vadd.f32 %v2902, %v2966
        %v2968 = vpop.f32.mrf.mxu0
        %v2969 = vpop.f32.mrf.mxu0
        %v2970 = vadd.f32 %v2905, %v2969
        %v2971 = vpop.f32.mrf.mxu0
        %2972 = vmatprep.mubr.bf16.mxu0 0
        %2973 = vmatmul.mubr.bf16.gmra.mxu0 %v2610
        %v2974 = vpop.f32.mrf.mxu0
        %v2975 = vadd.f32 %v2910, %v2974
        %v2976 = vpop.f32.mrf.mxu0
        %v2977 = vpop.f32.mrf.mxu0
        %v2978 = vadd.f32 %v2913, %v2977
        %v2979 = vpop.f32.mrf.mxu0
        %2980 = vmatprep.mubr.bf16.mxu0 0
        %2981 = vmatmul.mubr.bf16.gmra.mxu0 %v2613
        %v2982 = vpop.f32.mrf.mxu0
        %v2983 = vadd.f32 %v2918, %v2982
        %v2984 = vpop.f32.mrf.mxu0
        %v2985 = vpop.f32.mrf.mxu0
        %v2986 = vadd.f32 %v2921, %v2985
        %v2987 = vpop.f32.mrf.mxu0
        %2988 = vmatprep.mubr.bf16.mxu0 0
        %2989 = vmatmul.mubr.bf16.gmra.mxu0 %v2616
        %v2990 = vpop.f32.mrf.mxu0
        %v2991 = vadd.f32 %v2926, %v2990
        %v2992 = vpop.f32.mrf.mxu0
        %v2993 = vpop.f32.mrf.mxu0
        %v2994 = vadd.f32 %v2929, %v2993
        %v2995 = vpop.f32.mrf.mxu0
        %2996 = vdwg.mxu0
        %v3045 = vunpack.c.l.b16 %v2626
        %v3046 = vunpack.c.l.b16 %v2627
        %v3047 = vunpack.c.l.b16 %v2628
        %v3048 = vunpack.c.l.b16 %v2629
        %v3049 = vunpack.c.l.b16 %v2630
        %v3050 = vunpack.c.l.b16 %v2631
        %v3051 = vunpack.c.l.b16 %v2632
        %v3052 = vunpack.c.l.b16 %v2633
        %v3053 = vunpack.c.l.b16 %v2634
        %v3054 = vunpack.c.l.b16 %v2635
        %v3055 = vunpack.c.l.b16 %v2636
        %v3056 = vunpack.c.l.b16 %v2637
        %v3057 = vunpack.c.l.b16 %v2638
        %v3058 = vunpack.c.l.b16 %v2639
        %v3059 = vunpack.c.l.b16 %v2640
        %v3060 = vunpack.c.l.b16 %v2641
        %v3061 = vunpack.c.l.b16 %v2642
        %v3062 = vunpack.c.l.b16 %v2643
        %v3063 = vunpack.c.l.b16 %v2644
        %v3064 = vunpack.c.l.b16 %v2645
        %v3065 = vunpack.c.l.b16 %v2646
        %v3066 = vunpack.c.l.b16 %v2647
        %v3067 = vunpack.c.l.b16 %v2648
        %v3068 = vunpack.c.l.b16 %v2649
        %v3069 = vunpack.c.l.b16 %v2650
        %v3070 = vunpack.c.l.b16 %v2651
        %v3071 = vunpack.c.l.b16 %v2652
        %v3072 = vunpack.c.l.b16 %v2653
        %v3073 = vunpack.c.l.b16 %v2654
        %v3074 = vunpack.c.l.b16 %v2655
        %v3075 = vunpack.c.l.b16 %v2656
        %v3076 = vunpack.c.l.b16 %v2657
        %v3077 = vunpack.c.l.b16 %v2658
        %v3078 = vunpack.c.l.b16 %v2659
        %v3079 = vunpack.c.l.b16 %v2660
        %v3080 = vunpack.c.l.b16 %v2661
        %v3081 = vunpack.c.l.b16 %v2662
        %v3082 = vunpack.c.l.b16 %v2663
        %v3083 = vunpack.c.l.b16 %v2664
        %v3084 = vunpack.c.l.b16 %v2665
        %v3085 = vunpack.c.l.b16 %v2666
        %v3086 = vunpack.c.l.b16 %v2667
        %v3087 = vunpack.c.l.b16 %v2668
        %v3088 = vunpack.c.l.b16 %v2669
        %v3089 = vunpack.c.l.b16 %v2670
        %v3090 = vunpack.c.l.b16 %v2671
        %v3091 = vunpack.c.l.b16 %v2672
        %v3092 = vunpack.c.l.b16 %v2673
        %v3093 = vpack.c.b16 %v3046, %v3045
        %v3094 = vpack.c.b16 %v3048, %v3047
        %v3095 = vpack.c.b16 %v3050, %v3049
        %v3096 = vpack.c.b16 %v3052, %v3051
        %v3097 = vpack.c.b16 %v3054, %v3053
        %v3098 = vpack.c.b16 %v3056, %v3055
        %v3099 = vpack.c.b16 %v3058, %v3057
        %v3100 = vpack.c.b16 %v3060, %v3059
        %v3101 = vpack.c.b16 %v3062, %v3061
        %v3102 = vpack.c.b16 %v3064, %v3063
        %v3103 = vpack.c.b16 %v3066, %v3065
        %v3104 = vpack.c.b16 %v3068, %v3067
        %v3105 = vpack.c.b16 %v3070, %v3069
        %v3106 = vpack.c.b16 %v3072, %v3071
        %v3107 = vpack.c.b16 %v3074, %v3073
        %v3108 = vpack.c.b16 %v3076, %v3075
        %v3109 = vpack.c.b16 %v3078, %v3077
        %v3110 = vpack.c.b16 %v3080, %v3079
        %v3111 = vpack.c.b16 %v3082, %v3081
        %v3112 = vpack.c.b16 %v3084, %v3083
        %v3113 = vpack.c.b16 %v3086, %v3085
        %v3114 = vpack.c.b16 %v3088, %v3087
        %v3115 = vpack.c.b16 %v3090, %v3089
        %v3116 = vpack.c.b16 %v3092, %v3091
        %3141 = vmatprep.subr.bf16.mxu0 0
        %3142 = vmatpush1.bf16.msra.mxu0 %v3100
        %3143 = vmatprep.subr.bf16.mxu0 0
        %3144 = vmatpush1.bf16.msra.mxu0 %v3099
        %3145 = vmatprep.subr.bf16.mxu0 0
        %3146 = vmatpush1.bf16.msra.mxu0 %v3098
        %3147 = vmatprep.subr.bf16.mxu0 0
        %3148 = vmatpush1.bf16.msra.mxu0 %v3097
        %3149 = vmatprep.subr.bf16.mxu0 0
        %3150 = vmatpush1.bf16.msra.mxu0 %v3096
        %3151 = vmatprep.subr.bf16.mxu0 0
        %3152 = vmatpush1.bf16.msra.mxu0 %v3095
        %3153 = vmatprep.subr.bf16.mxu0 0
        %3154 = vmatpush1.bf16.msra.mxu0 %v3094
        %3155 = vmatprep.subr.bf16.mxu0 0
        %3156 = vmatpush1.bf16.msra.mxu0 %v3093
        %3157 = vmatprep.subr.bf16.mxu0 0
        %3158 = vmatpush2.bf16.msra.mxu0 %v3108
        %3159 = vmatprep.subr.bf16.mxu0 0
        %3160 = vmatpush2.bf16.msra.mxu0 %v3107
        %3161 = vmatprep.subr.bf16.mxu0 0
        %3162 = vmatpush2.bf16.msra.mxu0 %v3106
        %3163 = vmatprep.subr.bf16.mxu0 0
        %3164 = vmatpush2.bf16.msra.mxu0 %v3105
        %3165 = vmatprep.subr.bf16.mxu0 0
        %3166 = vmatpush2.bf16.msra.mxu0 %v3104
        %3167 = vmatprep.subr.bf16.mxu0 0
        %3168 = vmatpush2.bf16.msra.mxu0 %v3103
        %3169 = vmatprep.subr.bf16.mxu0 0
        %3170 = vmatpush2.bf16.msra.mxu0 %v3102
        %3171 = vmatprep.subr.bf16.mxu0 0
        %3172 = vmatpush2.bf16.msra.mxu0 %v3101
        %3173 = vmatprep.mubr.bf16.mxu0 %v2523
        %3174 = vmatmul.mubr.bf16.gmra.mxu0 %v2500
        %v3175 = vpop.f32.mrf.mxu0
        %v3176 = vadd.f32 %v2967, %v3175
        %v3177 = vpop.f32.mrf.mxu0
        %v3178 = vpop.f32.mrf.mxu0
        %v3179 = vadd.f32 %v2970, %v3178
        %v3180 = vpop.f32.mrf.mxu0
        %3181 = vmatprep.mubr.bf16.mxu0 %v2535
        %3182 = vmatmul.mubr.bf16.gmra.mxu0 %v2502
        %v3183 = vpop.f32.mrf.mxu0
        %v3184 = vadd.f32 %v2975, %v3183
        %v3185 = vpop.f32.mrf.mxu0
        %v3186 = vpop.f32.mrf.mxu0
        %v3187 = vadd.f32 %v2978, %v3186
        %v3188 = vpop.f32.mrf.mxu0
        %3189 = vmatprep.mubr.bf16.mxu0 %v2547
        %3190 = vmatmul.mubr.bf16.gmra.mxu0 %v2504
        %v3191 = vpop.f32.mrf.mxu0
        %v3192 = vadd.f32 %v2983, %v3191
        %v3193 = vpop.f32.mrf.mxu0
        %v3194 = vpop.f32.mrf.mxu0
        %v3195 = vadd.f32 %v2986, %v3194
        %v3196 = vpop.f32.mrf.mxu0
        %3197 = vmatprep.mubr.bf16.mxu0 %v2559
        %3198 = vmatmul.mubr.bf16.gmra.mxu0 %v2506
        %v3199 = vpop.f32.mrf.mxu0
        %v3200 = vadd.f32 %v2991, %v3199
        %v3201 = vpop.f32.mrf.mxu0
        %v3202 = vpop.f32.mrf.mxu0
        %v3203 = vadd.f32 %v2994, %v3202
        %v3204 = vpop.f32.mrf.mxu0
        %3205 = vdwg.mxu0
        %3206 = vmatprep.subr.bf16.mxu0 0
        %3207 = vmatpush1.bf16.msra.mxu0 %v3116
        %3208 = vmatprep.subr.bf16.mxu0 0
        %3209 = vmatpush1.bf16.msra.mxu0 %v3115
        %3210 = vmatprep.subr.bf16.mxu0 0
        %3211 = vmatpush1.bf16.msra.mxu0 %v3114
        %3212 = vmatprep.subr.bf16.mxu0 0
        %3213 = vmatpush1.bf16.msra.mxu0 %v3113
        %3214 = vmatprep.subr.bf16.mxu0 0
        %3215 = vmatpush1.bf16.msra.mxu0 %v3112
        %3216 = vmatprep.subr.bf16.mxu0 0
        %3217 = vmatpush1.bf16.msra.mxu0 %v3111
        %3218 = vmatprep.subr.bf16.mxu0 0
        %3219 = vmatpush1.bf16.msra.mxu0 %v3110
        %3220 = vmatprep.subr.bf16.mxu0 0
        %3221 = vmatpush1.bf16.msra.mxu0 %v3109
        %3222 = vmatprep.subr.bf16.mxu0 0
        %3223 = vmatpush2.bf16.msra.mxu0 0
        %3224 = vmatprep.subr.bf16.mxu0 0
        %3225 = vmatpush2.bf16.msra.mxu0 0
        %3226 = vmatprep.subr.bf16.mxu0 0
        %3227 = vmatpush2.bf16.msra.mxu0 0
        %3228 = vmatprep.subr.bf16.mxu0 0
        %3229 = vmatpush2.bf16.msra.mxu0 0
        %3230 = vmatprep.subr.bf16.mxu0 0
        %3231 = vmatpush2.bf16.msra.mxu0 0
        %3232 = vmatprep.subr.bf16.mxu0 0
        %3233 = vmatpush2.bf16.msra.mxu0 0
        %3234 = vmatprep.subr.bf16.mxu0 0
        %3235 = vmatpush2.bf16.msra.mxu0 0
        %3236 = vmatprep.subr.bf16.mxu0 0
        %3237 = vmatpush2.bf16.msra.mxu0 0
        %3238 = vmatprep.mubr.bf16.mxu0 0
        %3239 = vmatmul.mubr.bf16.gmra.mxu0 %v2604
        %v3240 = vpop.f32.mrf.mxu0
        %v3241 = vadd.f32 %v3176, %v3240
        %v3242 = vpop.f32.mrf.mxu0
        %v3243 = vpop.f32.mrf.mxu0
        %v3244 = vadd.f32 %v3179, %v3243
        %v3245 = vpop.f32.mrf.mxu0
        %3246 = vmatprep.mubr.bf16.mxu0 0
        %3247 = vmatmul.mubr.bf16.gmra.mxu0 %v2607
        %v3248 = vpop.f32.mrf.mxu0
        %v3249 = vadd.f32 %v3184, %v3248
        %v3250 = vpop.f32.mrf.mxu0
        %v3251 = vpop.f32.mrf.mxu0
        %v3252 = vadd.f32 %v3187, %v3251
        %v3253 = vpop.f32.mrf.mxu0
        %3254 = vmatprep.mubr.bf16.mxu0 0
        %3255 = vmatmul.mubr.bf16.gmra.mxu0 %v2610
        %v3256 = vpop.f32.mrf.mxu0
        %v3257 = vadd.f32 %v3192, %v3256
        %v3258 = vpop.f32.mrf.mxu0
        %v3259 = vpop.f32.mrf.mxu0
        %v3260 = vadd.f32 %v3195, %v3259
        %v3261 = vpop.f32.mrf.mxu0
        %3262 = vmatprep.mubr.bf16.mxu0 0
        %3263 = vmatmul.mubr.bf16.gmra.mxu0 %v2613
        %v3264 = vpop.f32.mrf.mxu0
        %v3265 = vadd.f32 %v3200, %v3264
        %v3266 = vpop.f32.mrf.mxu0
        %v3267 = vpop.f32.mrf.mxu0
        %v3268 = vadd.f32 %v3203, %v3267
        %v3269 = vpop.f32.mrf.mxu0
        %3270 = vdwg.mxu0
        %s3271 = scalar_lea.vmem [#allocation8], 384
        %v3272 = vld [vmem:[%s3271] sm:$0xf]
        %v3273 = vld [vmem:[%s3271 + $0x4] sm:$0xf]
        %v3274 = vld [vmem:[%s3271 + $0x8] sm:$0xf]
        %v3275 = vld [vmem:[%s3271 + $0xc] sm:$0xf]
        %v3276 = vld [vmem:[%s3271 + $0x10] sm:$0xf]
        %v3277 = vld [vmem:[%s3271 + $0x14] sm:$0xf]
        %v3278 = vld [vmem:[%s3271 + $0x18] sm:$0xf]
        %v3279 = vld [vmem:[%s3271 + $0x1c] sm:$0xf]
        %v3280 = vld [vmem:[%s3271 + $0x20] sm:$0xf]
        %v3281 = vld [vmem:[%s3271 + $0x24] sm:$0xf]
        %v3282 = vld [vmem:[%s3271 + $0x28] sm:$0xf]
        %v3283 = vld [vmem:[%s3271 + $0x2c] sm:$0xf]
        %v3284 = vld [vmem:[%s3271 + $0x30] sm:$0xf]
        %v3285 = vld [vmem:[%s3271 + $0x34] sm:$0xf]
        %v3286 = vld [vmem:[%s3271 + $0x38] sm:$0xf]
        %v3287 = vld [vmem:[%s3271 + $0x3c] sm:$0xf]
        %v3288 = vld [vmem:[%s3271 + $0x40] sm:$0xf]
        %v3289 = vld [vmem:[%s3271 + $0x44] sm:$0xf]
        %v3290 = vld [vmem:[%s3271 + $0x48] sm:$0xf]
        %v3291 = vld [vmem:[%s3271 + $0x4c] sm:$0xf]
        %v3292 = vld [vmem:[%s3271 + $0x50] sm:$0xf]
        %v3293 = vld [vmem:[%s3271 + $0x54] sm:$0xf]
        %v3294 = vld [vmem:[%s3271 + $0x58] sm:$0xf]
        %v3295 = vld [vmem:[%s3271 + $0x5c] sm:$0xf]
        %v3296 = vld [vmem:[%s3271 + $0x60] sm:$0xf]
        %v3297 = vld [vmem:[%s3271 + $0x64] sm:$0xf]
        %v3298 = vld [vmem:[%s3271 + $0x68] sm:$0xf]
        %v3299 = vld [vmem:[%s3271 + $0x6c] sm:$0xf]
        %v3300 = vld [vmem:[%s3271 + $0x70] sm:$0xf]
        %v3301 = vld [vmem:[%s3271 + $0x74] sm:$0xf]
        %v3302 = vld [vmem:[%s3271 + $0x78] sm:$0xf]
        %v3303 = vld [vmem:[%s3271 + $0x7c] sm:$0xf]
        %v3304 = vld [vmem:[%s3271 + $0x80] sm:$0xf]
        %v3305 = vld [vmem:[%s3271 + $0x84] sm:$0xf]
        %v3306 = vld [vmem:[%s3271 + $0x88] sm:$0xf]
        %v3307 = vld [vmem:[%s3271 + $0x8c] sm:$0xf]
        %v3308 = vld [vmem:[%s3271 + $0x90] sm:$0xf]
        %v3309 = vld [vmem:[%s3271 + $0x94] sm:$0xf]
        %v3310 = vld [vmem:[%s3271 + $0x98] sm:$0xf]
        %v3311 = vld [vmem:[%s3271 + $0x9c] sm:$0xf]
        %v3312 = vld [vmem:[%s3271 + $0xa0] sm:$0xf]
        %v3313 = vld [vmem:[%s3271 + $0xa4] sm:$0xf]
        %v3314 = vld [vmem:[%s3271 + $0xa8] sm:$0xf]
        %v3315 = vld [vmem:[%s3271 + $0xac] sm:$0xf]
        %v3316 = vld [vmem:[%s3271 + $0xb0] sm:$0xf]
        %v3317 = vld [vmem:[%s3271 + $0xb4] sm:$0xf]
        %v3318 = vld [vmem:[%s3271 + $0xb8] sm:$0xf]
        %v3319 = vld [vmem:[%s3271 + $0xbc] sm:$0xf]
        %v3368 = vunpack.c.l.b16 %v3272
        %v3369 = vunpack.c.l.b16 %v3273
        %v3370 = vunpack.c.l.b16 %v3274
        %v3371 = vunpack.c.l.b16 %v3275
        %v3372 = vunpack.c.l.b16 %v3276
        %v3373 = vunpack.c.l.b16 %v3277
        %v3374 = vunpack.c.l.b16 %v3278
        %v3375 = vunpack.c.l.b16 %v3279
        %v3376 = vunpack.c.l.b16 %v3280
        %v3377 = vunpack.c.l.b16 %v3281
        %v3378 = vunpack.c.l.b16 %v3282
        %v3379 = vunpack.c.l.b16 %v3283
        %v3380 = vunpack.c.l.b16 %v3284
        %v3381 = vunpack.c.l.b16 %v3285
        %v3382 = vunpack.c.l.b16 %v3286
        %v3383 = vunpack.c.l.b16 %v3287
        %v3384 = vunpack.c.l.b16 %v3288
        %v3385 = vunpack.c.l.b16 %v3289
        %v3386 = vunpack.c.l.b16 %v3290
        %v3387 = vunpack.c.l.b16 %v3291
        %v3388 = vunpack.c.l.b16 %v3292
        %v3389 = vunpack.c.l.b16 %v3293
        %v3390 = vunpack.c.l.b16 %v3294
        %v3391 = vunpack.c.l.b16 %v3295
        %v3392 = vunpack.c.l.b16 %v3296
        %v3393 = vunpack.c.l.b16 %v3297
        %v3394 = vunpack.c.l.b16 %v3298
        %v3395 = vunpack.c.l.b16 %v3299
        %v3396 = vunpack.c.l.b16 %v3300
        %v3397 = vunpack.c.l.b16 %v3301
        %v3398 = vunpack.c.l.b16 %v3302
        %v3399 = vunpack.c.l.b16 %v3303
        %v3400 = vunpack.c.l.b16 %v3304
        %v3401 = vunpack.c.l.b16 %v3305
        %v3402 = vunpack.c.l.b16 %v3306
        %v3403 = vunpack.c.l.b16 %v3307
        %v3404 = vunpack.c.l.b16 %v3308
        %v3405 = vunpack.c.l.b16 %v3309
        %v3406 = vunpack.c.l.b16 %v3310
        %v3407 = vunpack.c.l.b16 %v3311
        %v3408 = vunpack.c.l.b16 %v3312
        %v3409 = vunpack.c.l.b16 %v3313
        %v3410 = vunpack.c.l.b16 %v3314
        %v3411 = vunpack.c.l.b16 %v3315
        %v3412 = vunpack.c.l.b16 %v3316
        %v3413 = vunpack.c.l.b16 %v3317
        %v3414 = vunpack.c.l.b16 %v3318
        %v3415 = vunpack.c.l.b16 %v3319
        %v3416 = vpack.c.b16 %v3369, %v3368
        %v3417 = vpack.c.b16 %v3371, %v3370
        %v3418 = vpack.c.b16 %v3373, %v3372
        %v3419 = vpack.c.b16 %v3375, %v3374
        %v3420 = vpack.c.b16 %v3377, %v3376
        %v3421 = vpack.c.b16 %v3379, %v3378
        %v3422 = vpack.c.b16 %v3381, %v3380
        %v3423 = vpack.c.b16 %v3383, %v3382
        %v3424 = vpack.c.b16 %v3385, %v3384
        %v3425 = vpack.c.b16 %v3387, %v3386
        %v3426 = vpack.c.b16 %v3389, %v3388
        %v3427 = vpack.c.b16 %v3391, %v3390
        %v3428 = vpack.c.b16 %v3393, %v3392
        %v3429 = vpack.c.b16 %v3395, %v3394
        %v3430 = vpack.c.b16 %v3397, %v3396
        %v3431 = vpack.c.b16 %v3399, %v3398
        %v3432 = vpack.c.b16 %v3401, %v3400
        %v3433 = vpack.c.b16 %v3403, %v3402
        %v3434 = vpack.c.b16 %v3405, %v3404
        %v3435 = vpack.c.b16 %v3407, %v3406
        %v3436 = vpack.c.b16 %v3409, %v3408
        %v3437 = vpack.c.b16 %v3411, %v3410
        %v3438 = vpack.c.b16 %v3413, %v3412
        %v3439 = vpack.c.b16 %v3415, %v3414
        %3464 = vmatprep.subr.bf16.mxu0 0
        %3465 = vmatpush1.bf16.msra.mxu0 %v3423
        %3466 = vmatprep.subr.bf16.mxu0 0
        %3467 = vmatpush1.bf16.msra.mxu0 %v3422
        %3468 = vmatprep.subr.bf16.mxu0 0
        %3469 = vmatpush1.bf16.msra.mxu0 %v3421
        %3470 = vmatprep.subr.bf16.mxu0 0
        %3471 = vmatpush1.bf16.msra.mxu0 %v3420
        %3472 = vmatprep.subr.bf16.mxu0 0
        %3473 = vmatpush1.bf16.msra.mxu0 %v3419
        %3474 = vmatprep.subr.bf16.mxu0 0
        %3475 = vmatpush1.bf16.msra.mxu0 %v3418
        %3476 = vmatprep.subr.bf16.mxu0 0
        %3477 = vmatpush1.bf16.msra.mxu0 %v3417
        %3478 = vmatprep.subr.bf16.mxu0 0
        %3479 = vmatpush1.bf16.msra.mxu0 %v3416
        %3480 = vmatprep.subr.bf16.mxu0 0
        %3481 = vmatpush2.bf16.msra.mxu0 %v3431
        %3482 = vmatprep.subr.bf16.mxu0 0
        %3483 = vmatpush2.bf16.msra.mxu0 %v3430
        %3484 = vmatprep.subr.bf16.mxu0 0
        %3485 = vmatpush2.bf16.msra.mxu0 %v3429
        %3486 = vmatprep.subr.bf16.mxu0 0
        %3487 = vmatpush2.bf16.msra.mxu0 %v3428
        %3488 = vmatprep.subr.bf16.mxu0 0
        %3489 = vmatpush2.bf16.msra.mxu0 %v3427
        %3490 = vmatprep.subr.bf16.mxu0 0
        %3491 = vmatpush2.bf16.msra.mxu0 %v3426
        %3492 = vmatprep.subr.bf16.mxu0 0
        %3493 = vmatpush2.bf16.msra.mxu0 %v3425
        %3494 = vmatprep.subr.bf16.mxu0 0
        %3495 = vmatpush2.bf16.msra.mxu0 %v3424
        %3496 = vmatprep.mubr.bf16.mxu0 %v2547
        %3497 = vmatmul.mubr.bf16.gmra.mxu0 %v2504
        %v3498 = vpop.f32.mrf.mxu0
        %v3499 = vadd.f32 0.0, %v3498
        %v3500 = vpop.f32.mrf.mxu0
        %v3501 = vpop.f32.mrf.mxu0
        %v3502 = vadd.f32 0.0, %v3501
        %v3503 = vpop.f32.mrf.mxu0
        %3504 = vmatprep.mubr.bf16.mxu0 %v2559
        %3505 = vmatmul.mubr.bf16.gmra.mxu0 %v2506
        %v3506 = vpop.f32.mrf.mxu0
        %v3507 = vadd.f32 0.0, %v3506
        %v3508 = vpop.f32.mrf.mxu0
        %v3509 = vpop.f32.mrf.mxu0
        %v3510 = vadd.f32 0.0, %v3509
        %v3511 = vpop.f32.mrf.mxu0
        %3512 = vmatprep.mubr.bf16.mxu0 %v2571
        %3513 = vmatmul.mubr.bf16.gmra.mxu0 %v2508
        %v3514 = vpop.f32.mrf.mxu0
        %v3515 = vadd.f32 0.0, %v3514
        %v3516 = vpop.f32.mrf.mxu0
        %v3517 = vpop.f32.mrf.mxu0
        %v3518 = vadd.f32 0.0, %v3517
        %v3519 = vpop.f32.mrf.mxu0
        %3520 = vmatprep.mubr.bf16.mxu0 %v2583
        %3521 = vmatmul.mubr.bf16.gmra.mxu0 %v2510
        %v3522 = vpop.f32.mrf.mxu0
        %v3523 = vadd.f32 0.0, %v3522
        %v3524 = vpop.f32.mrf.mxu0
        %v3525 = vpop.f32.mrf.mxu0
        %v3526 = vadd.f32 0.0, %v3525
        %v3527 = vpop.f32.mrf.mxu0
        %3528 = vdwg.mxu0
        %3529 = vmatprep.subr.bf16.mxu0 0
        %3530 = vmatpush1.bf16.msra.mxu0 %v3439
        %3531 = vmatprep.subr.bf16.mxu0 0
        %3532 = vmatpush1.bf16.msra.mxu0 %v3438
        %3533 = vmatprep.subr.bf16.mxu0 0
        %3534 = vmatpush1.bf16.msra.mxu0 %v3437
        %3535 = vmatprep.subr.bf16.mxu0 0
        %3536 = vmatpush1.bf16.msra.mxu0 %v3436
        %3537 = vmatprep.subr.bf16.mxu0 0
        %3538 = vmatpush1.bf16.msra.mxu0 %v3435
        %3539 = vmatprep.subr.bf16.mxu0 0
        %3540 = vmatpush1.bf16.msra.mxu0 %v3434
        %3541 = vmatprep.subr.bf16.mxu0 0
        %3542 = vmatpush1.bf16.msra.mxu0 %v3433
        %3543 = vmatprep.subr.bf16.mxu0 0
        %3544 = vmatpush1.bf16.msra.mxu0 %v3432
        %3545 = vmatprep.subr.bf16.mxu0 0
        %3546 = vmatpush2.bf16.msra.mxu0 0
        %3547 = vmatprep.subr.bf16.mxu0 0
        %3548 = vmatpush2.bf16.msra.mxu0 0
        %3549 = vmatprep.subr.bf16.mxu0 0
        %3550 = vmatpush2.bf16.msra.mxu0 0
        %3551 = vmatprep.subr.bf16.mxu0 0
        %3552 = vmatpush2.bf16.msra.mxu0 0
        %3553 = vmatprep.subr.bf16.mxu0 0
        %3554 = vmatpush2.bf16.msra.mxu0 0
        %3555 = vmatprep.subr.bf16.mxu0 0
        %3556 = vmatpush2.bf16.msra.mxu0 0
        %3557 = vmatprep.subr.bf16.mxu0 0
        %3558 = vmatpush2.bf16.msra.mxu0 0
        %3559 = vmatprep.subr.bf16.mxu0 0
        %3560 = vmatpush2.bf16.msra.mxu0 0
        %3561 = vmatprep.mubr.bf16.mxu0 0
        %3562 = vmatmul.mubr.bf16.gmra.mxu0 %v2610
        %v3563 = vpop.f32.mrf.mxu0
        %v3564 = vadd.f32 %v3499, %v3563
        %v3565 = vpop.f32.mrf.mxu0
        %v3566 = vpop.f32.mrf.mxu0
        %v3567 = vadd.f32 %v3502, %v3566
        %v3568 = vpop.f32.mrf.mxu0
        %3569 = vmatprep.mubr.bf16.mxu0 0
        %3570 = vmatmul.mubr.bf16.gmra.mxu0 %v2613
        %v3571 = vpop.f32.mrf.mxu0
        %v3572 = vadd.f32 %v3507, %v3571
        %v3573 = vpop.f32.mrf.mxu0
        %v3574 = vpop.f32.mrf.mxu0
        %v3575 = vadd.f32 %v3510, %v3574
        %v3576 = vpop.f32.mrf.mxu0
        %3577 = vmatprep.mubr.bf16.mxu0 0
        %3578 = vmatmul.mubr.bf16.gmra.mxu0 %v2616
        %v3579 = vpop.f32.mrf.mxu0
        %v3580 = vadd.f32 %v3515, %v3579
        %v3581 = vpop.f32.mrf.mxu0
        %v3582 = vpop.f32.mrf.mxu0
        %v3583 = vadd.f32 %v3518, %v3582
        %v3584 = vpop.f32.mrf.mxu0
        %3585 = vmatprep.mubr.bf16.mxu0 0
        %3586 = vmatmul.mubr.bf16.gmra.mxu0 %v2619
        %v3587 = vpop.f32.mrf.mxu0
        %v3588 = vadd.f32 %v3523, %v3587
        %v3589 = vpop.f32.mrf.mxu0
        %v3590 = vpop.f32.mrf.mxu0
        %v3591 = vadd.f32 %v3526, %v3590
        %v3592 = vpop.f32.mrf.mxu0
        %3593 = vdwg.mxu0
        %v3594 = vadd.f32 %v3241, %v3564
        %v3595 = vadd.f32 %v3244, %v3567
        %v3596 = vadd.f32 %v3249, %v3572
        %v3597 = vadd.f32 %v3252, %v3575
        %v3598 = vadd.f32 %v3257, %v3580
        %v3599 = vadd.f32 %v3260, %v3583
        %v3600 = vadd.f32 %v3265, %v3588
        %v3601 = vadd.f32 %v3268, %v3591
        %v3602 = vld [vmem:[%s5] sm:$0x1]
        %v3604 = vlaneseq
        %v3605 = vshrl.u32 %v3604, 7
        %v3606 = vsub.s32 0, %v3605
        %v3607 = vrot.slane %v3602, %v3606
        %v3609 = vadd.f32 %v3594, %v3607
        %v3610 = vadd.f32 %v3595, %v3607
        %v3611 = vadd.f32 %v3596, %v3607
        %v3612 = vadd.f32 %v3597, %v3607
        %v3613 = vadd.f32 %v3598, %v3607
        %v3614 = vadd.f32 %v3599, %v3607
        %v3615 = vadd.f32 %v3600, %v3607
        %v3616 = vadd.f32 %v3601, %v3607
        %v3617 = vadd.f32 %v3609, %v380
        %v3618 = vadd.f32 %v3610, %v381
        %v3619 = vadd.f32 %v3611, %v384
        %v3620 = vadd.f32 %v3612, %v385
        %3621 = vst [vmem:[%s365] sm:$0xff] %v3617
        %3622 = vst [vmem:[%s365 + $0x8] sm:$0xff] %v3618
        %3623 = vst [vmem:[%s365 + $0x10] sm:$0xff] %v3619
        %3624 = vst [vmem:[%s365 + $0x18] sm:$0xff] %v3620
        %v3625 = vadd.f32 %v3613, %v388
        %v3626 = vadd.f32 %v3614, %v389
        %v3627 = vadd.f32 %v3615, %v392
        %v3628 = vadd.f32 %v3616, %v393
        %s3629 = scalar_lea.vmem %s365, 32 [#allocation10]
        %3630 = vst [vmem:[%s3629] sm:$0xff] %v3625
        %3631 = vst [vmem:[%s3629 + $0x8] sm:$0xff] %v3626
        %3632 = vst [vmem:[%s3629 + $0x10] sm:$0xff] %v3627
        %3633 = vst [vmem:[%s3629 + $0x18] sm:$0xff] %v3628
        %s3634 = sand.u32 %s191, 1
        %s3635 = scalar_lea.sflag [#allocation4], %s3634
        %s3636 = sand.u32 %s191, 1
        %s3637 = smul.addr %s3636, 64
        %s3638 = scalar_lea.vmem [#allocation10], %s3637
        // Predicated region
        $region61: #{tpu_custom_call.1} parent=43 // pred_check
          %p3639 = pneg %p201
        $region62: #{tpu_custom_call.1} parent=43 // pred_check_branch
          %3641 = sbr.rel (%p3639) target = $region64
        $region63: #{tpu_custom_call.1} parent=43 // pred_region
          %s3642 = smul.u32 4, %s32
          %s3644 = ssub.s32 1024, 1024
          %3645 = vsyncadd %s3635, %s3644
          %s3646 = smul.addr %s3642, 2
          %s3647 = smul.addr %s31, 32
          %s3648 = sadd.s32 %s3646, %s3647
          %s3649 = smul.addr %s3648, 128
          %s3650 = scalar_lea.hbm %s6, %s3649
          %s3651 = sshll.u32 %s3638, 4
          %s3652 = int_to_ptr.vmem [resolvable:$true] %s3651
          %3657 = dma.vmem_to_hbm [thread:$0]  %s3652, 1024, %s3650, %s3635, 128, 128, 8
        $region64: #{tpu_custom_call.1} parent=43 // pred_fallthru
          _
      $region44: #{tpu_custom_call.1} parent=5 // pred_fallthru
        _
      %p3658 = scmp.le.s32.totalorder 2, %s22
      // Predicated region
      $region65: #{tpu_custom_call.1} parent=5 // pred_check
        %p3659 = pneg %p3658
      $region66: #{tpu_custom_call.1} parent=5 // pred_check_branch
        %3661 = sbr.rel (%p3659) target = $region68
      $region67: #{tpu_custom_call.1} parent=5 // pred_region
        %s3662 = ssub.s32 %s22, 2
        // Predicated region
        $region69: #{tpu_custom_call.1} parent=67 // pred_check
          %p3663 = pneg %p207
        $region70: #{tpu_custom_call.1} parent=67 // pred_check_branch
          %3665 = sbr.rel (%p3663) target = $region72
        $region71: #{tpu_custom_call.1} parent=67 // pred_region
          %s3666 = sand.u32 %s192, 1
          %s3667 = scalar_lea.sflag [#allocation4], %s3666
          %s3668 = sand.u32 %s192, 1
          %s3669 = smul.addr %s3668, 64
          %s3670 = scalar_lea.vmem [#allocation10], %s3669
          %3671 = dma.done %s3667, 1024
        $region72: #{tpu_custom_call.1} parent=67 // pred_fallthru
          _
      $region68: #{tpu_custom_call.1} parent=5 // pred_fallthru
        _
    $region6: #{tpu_custom_call.1} parent=1 // loop_footer
      %s26 = sadd.s32 1, %s22
    $region7: #{tpu_custom_call.1} parent=1 // loop_footer_branch
      %21 = sbr.rel target = $region3
    $region8: #{tpu_custom_call.1} parent=1 // loop_exit
      _
    %3672 = vsyncpa [#allocation3], 1
    %s3673 = scalar_lea.sflag [#allocation3], 1
    %3674 = vsyncpa %s3673, 1
    %3675 = vsyncpa [#allocation6], 1
    %s3676 = scalar_lea.sflag [#allocation6], 1
    %3677 = vsyncpa %s3676, 1
    %3678 = vsyncpa [#allocation9], 1
    %3679 = vsyncpa [#allocation4], 1
    %s3680 = scalar_lea.sflag [#allocation4], 1
    %3681 = vsyncpa %s3680, 1

</llo_original>
